<compile_context>
chip_gen: v7x
topology: tpu7x:2x2x1
jax: 0.10.0
libtpu: 0.0.40
codegen_flags: <defaults>
</compile_context>

<pallas_src>
import functools

import jax
import jax.numpy as jnp
from jax import lax
from jax.experimental import pallas as pl
from jax.experimental.pallas import tpu as pltpu

TARGET_FRAMES = 16

_VMEM = pl.BlockSpec(memory_space=pltpu.MemorySpace.VMEM)


# --------------------------- packed-parameter layout ---------------------------

def _align8(n):
    return ((n + 7) // 8) * 8


def _pack_layout(c_in, n_features, n_hidden, n_layers):
    """Row/col layout of the single packed parameter buffer (static)."""
    H = n_hidden
    secs = {}
    r = 0

    def add(name, nrows, ncols):
        nonlocal r
        secs[name] = (r, nrows, ncols)
        r = _align8(r + nrows)

    add("conv_wm", TARGET_FRAMES, c_in * 9)          # (16, C_in*9)
    add("wih0_t", n_features, 4 * H)                 # (F, 4H)
    add("xbias0", TARGET_FRAMES, 4 * H)              # (16, 4H) conv_b & b0 folded
    for l in range(n_layers - 1):
        add(f"rhs{l}", H, 8 * H)                     # [W_hh_l^T | W_ih_{l+1}^T]
    add("whh_last", H, 4 * H)                        # top layer W_hh^T
    if n_layers > 1:
        add("bias", n_layers - 1, 4 * H)             # b_ih_l + b_hh_l, l >= 1
    add("tail", 1, H + 1)                            # [lin_w (H) | lin_b (1)]

    ncols = max(v[2] for v in secs.values())
    ncols = ((ncols + 127) // 128) * 128
    return secs, r, ncols


# --------------------------- fused Pallas kernel ------------------------------

def _make_fused_kernel(secs, n_hidden, n_layers):
    H = n_hidden
    T = TARGET_FRAMES

    def kernel(cols_ref, pp_ref, o_ref):
        def load(name):
            r0, nr, nc = secs[name]
            return pp_ref[r0:r0 + nr, 0:nc]

        conv_wm = load("conv_wm")                    # (16, C_in*9)
        wih0_t = load("wih0_t")                      # (F, 4H)
        xbias0 = load("xbias0")                      # (16, 4H)
        rhs = [load(f"rhs{l}") for l in range(n_layers - 1)]   # (H, 8H) each
        whh_last = load("whh_last")                  # (H, 4H)
        biases = []
        if n_layers > 1:
            br0 = secs["bias"][0]
            biases = [pp_ref[br0 + l:br0 + l + 1, 0:4 * H]
                      for l in range(n_layers - 1)]  # (1, 4H) each
        tr0 = secs["tail"][0]
        lin_w = pp_ref[tr0:tr0 + 1, 0:H]             # (1, H)
        lin_b = pp_ref[tr0:tr0 + 1, H:H + 1]         # (1, 1)

        # Conv2d(k=3, s=2) as im2col matmul (bias folded into xbias0), then the
        # hoisted layer-0 input projection: one (16,F)@(F,4H) matmul.
        conv_mm = jnp.dot(conv_wm, cols_ref[...],
                          preferred_element_type=jnp.float32)        # (16, F)
        xproj0 = jnp.dot(conv_mm, wih0_t,
                         preferred_element_type=jnp.float32) + xbias0  # (16, 4H)

        zero_h = jnp.zeros((1, H), jnp.float32)
        zero_g = jnp.zeros((1, 4 * H), jnp.float32)
        c = [zero_h] * n_layers          # cell states
        rec = [zero_g] * n_layers        # h_{l, t-1} @ W_hh_l^T (zero at t=0)
        h_top = zero_h

        def lstm_cell(gates, c_prev):
            # Full-vreg EUP passes over the (1, 4H) gate vector, then slice.
            sig = jax.nn.sigmoid(gates)
            tnh = jnp.tanh(gates)
            c_new = sig[:, H:2 * H] * c_prev + sig[:, 0:H] * tnh[:, 2 * H:3 * H]
            h_new = sig[:, 3 * H:4 * H] * jnp.tanh(c_new)
            return h_new, c_new

        # Layer-interleaved, fully unrolled recurrence: layer l+1 consumes
        # h_{l,t} immediately; its step-t matmul is independent of layer-l's
        # step-(t+1) matmul, so the LLO scheduler can overlap them.
        for t in range(T):
            layer_in = xproj0[t:t + 1, :]
            for l in range(n_layers):
                gates = layer_in + rec[l]
                if l > 0:
                    gates = gates + biases[l - 1]
                h_l, c[l] = lstm_cell(gates, c[l])
                if l < n_layers - 1:
                    # One (1,H)@(H,8H) matmul -> [rec_l for t+1 | input of l+1].
                    both = jnp.dot(h_l, rhs[l],
                                   preferred_element_type=jnp.float32)
                    rec[l] = both[:, 0:4 * H]
                    layer_in = both[:, 4 * H:8 * H]
                else:
                    h_top = h_l
                    if t < T - 1:
                        rec[l] = jnp.dot(h_l, whh_last,
                                         preferred_element_type=jnp.float32)

        # Final Linear on the last timestep: VPU multiply + lane reduce.
        o_ref[...] = (jnp.sum(h_top * lin_w, axis=1, keepdims=True) + lin_b)

    return kernel


# --------------------------- wrappers ------------------------------------------

def prepare_params(params, n_hidden):
    """One-time conversion of PyTorch-layout params into one packed buffer."""
    H = n_hidden
    conv_w = jnp.asarray(params["conv_w"], jnp.float32)
    conv_b = jnp.asarray(params["conv_b"], jnp.float32)
    lstm = [[jnp.asarray(a, jnp.float32) for a in layer] for layer in params["lstm"]]
    lin_w = jnp.asarray(params["lin_w"], jnp.float32).reshape(-1)    # (H,)
    lin_b = jnp.asarray(params["lin_b"], jnp.float32).reshape(-1)    # (1,)

    n_layers = len(lstm)
    c_out, c_in, kh, kw = conv_w.shape
    n_features = lstm[0][0].shape[1]

    secs, nrows, ncols = _pack_layout(c_in, n_features, H, n_layers)
    buf = jnp.zeros((nrows, ncols), jnp.float32)

    def put(b, name, val):
        r0, nr, nc = secs[name]
        return b.at[r0:r0 + nr, 0:nc].set(val)

    w_ih0, w_hh0, b_ih0, b_hh0 = lstm[0]
    buf = put(buf, "conv_wm", conv_w.reshape(c_out, c_in * kh * kw))
    buf = put(buf, "wih0_t", w_ih0.T)
    # Conv bias folded through the layer-0 input projection:
    #   xproj0 = (wm @ cols) @ W_ih0^T + conv_b (x) colsum(W_ih0^T) + b0
    buf = put(buf, "xbias0",
              conv_b[:, None] * w_ih0.sum(axis=1)[None, :]
              + (b_ih0 + b_hh0)[None, :])
    for l in range(n_layers - 1):
        buf = put(buf, f"rhs{l}",
                  jnp.concatenate([lstm[l][1].T, lstm[l + 1][0].T], axis=1))
    buf = put(buf, "whh_last", lstm[n_layers - 1][1].T)
    if n_layers > 1:
        buf = put(buf, "bias",
                  jnp.stack([lstm[l][2] + lstm[l][3]
                             for l in range(1, n_layers)]))
    buf = put(buf, "tail", jnp.concatenate([lin_w, lin_b])[None, :])
    return buf


@functools.partial(jax.jit, static_argnames=("n_hidden", "seq_len", "n_layers"))
def cnn_lstm_forward(x, packed, *, n_hidden, seq_len, n_layers):
    N, C_in, Hin, Win = x.shape
    if N != 1 or seq_len * N != TARGET_FRAMES:
        # view semantics of the reference model require seq_len * batch == 16
        raise ValueError("cnn_lstm_forward supports batch=1, seq_len=16")
    Ho = (Hin - 3) // 2 + 1
    Wo = (Win - 3) // 2 + 1
    n_features = Ho * Wo

    # im2col (trace-time glue, compiled into the same XLA program):
    # cols[k, p], k ordered (ci, kh, kw), p = oh*Wo + ow.
    cols = jnp.stack(
        [x[0, :, kh::2, kw::2][:, :Ho, :Wo] for kh in range(3) for kw in range(3)],
        axis=1,
    ).reshape(C_in * 9, Ho * Wo).astype(jnp.float32)

    secs, nrows, ncols = _pack_layout(C_in, n_features, n_hidden, n_layers)
    assert packed.shape == (nrows, ncols), (packed.shape, (nrows, ncols))

    out = pl.pallas_call(
        _make_fused_kernel(secs, n_hidden, n_layers),
        out_shape=jax.ShapeDtypeStruct((N, 1), jnp.float32),
        in_specs=[_VMEM, _VMEM],
        out_specs=_VMEM,
    )(cols, packed)
    return out                                                        # (N, 1)


# --------------------------- params & reference --------------------------------

def init_params(key, n_features, n_hidden, n_layers):
    keys = jax.random.split(key, 4 + 4 * n_layers)
    kcw = 1.0 / (TARGET_FRAMES * 9) ** 0.5
    s = 1.0 / n_hidden ** 0.5
    conv_w = jax.random.uniform(keys[0], (TARGET_FRAMES, TARGET_FRAMES, 3, 3),
                                jnp.float32, -kcw, kcw)
    conv_b = jax.random.uniform(keys[1], (TARGET_FRAMES,), jnp.float32, -kcw, kcw)
    lstm = []
    for l in range(n_layers):
        in_size = n_features if l == 0 else n_hidden
        base = 2 + 4 * l
        w_ih = jax.random.uniform(keys[base + 0], (4 * n_hidden, in_size), jnp.float32, -s, s)
        w_hh = jax.random.uniform(keys[base + 1], (4 * n_hidden, n_hidden), jnp.float32, -s, s)
        b_ih = jax.random.uniform(keys[base + 2], (4 * n_hidden,), jnp.float32, -s, s)
        b_hh = jax.random.uniform(keys[base + 3], (4 * n_hidden,), jnp.float32, -s, s)
        lstm.append((w_ih, w_hh, b_ih, b_hh))
    lin_w = jax.random.uniform(keys[2 + 4 * n_layers], (1, n_hidden), jnp.float32, -s, s)
    lin_b = jax.random.uniform(keys[3 + 4 * n_layers], (1,), jnp.float32, -s, s)
    return {"conv_w": conv_w, "conv_b": conv_b, "lstm": lstm,
            "lin_w": lin_w, "lin_b": lin_b}


def reference_forward(x, params, *, n_hidden, seq_len, n_layers):
    """Pure-JAX replica of the PyTorch forward for correctness checking."""
    y = lax.conv_general_dilated(
        x, params["conv_w"], window_strides=(2, 2), padding="VALID",
        dimension_numbers=("NCHW", "OIHW", "NCHW"))
    y = y + params["conv_b"][None, :, None, None]
    h_in = y.reshape(TARGET_FRAMES, -1)
    for l in range(n_layers):
        w_ih, w_hh, b_ih, b_hh = params["lstm"][l]
        h = jnp.zeros((n_hidden,), jnp.float32)
        c = jnp.zeros((n_hidden,), jnp.float32)
        outs = []
        for t in range(TARGET_FRAMES):
            g = w_ih @ h_in[t] + b_ih + w_hh @ h + b_hh
            i = jax.nn.sigmoid(g[0:n_hidden])
            f = jax.nn.sigmoid(g[n_hidden:2 * n_hidden])
            gg = jnp.tanh(g[2 * n_hidden:3 * n_hidden])
            o = jax.nn.sigmoid(g[3 * n_hidden:4 * n_hidden])
            c = f * c + i * gg
            h = o * jnp.tanh(c)
            outs.append(h)
        h_in = jnp.stack(outs)
    last = h_in.reshape(seq_len, x.shape[0], n_hidden)[-1]
    return last @ params["lin_w"].T + params["lin_b"]


# --------------------------- main -----------------------------------------------

if __name__ == "__main__":
    # H=W=17 -> conv output spatial 8x8 -> n_features = 64 (LSTM input_size)
    n_features = 64
    n_hidden = 32
    n_layers = 2
    batch = 1                       # view semantics require seq_len * batch == 16
    seq_len = TARGET_FRAMES // batch

    key = jax.random.PRNGKey(0)
    kx, kp = jax.random.split(key)
    x = jax.random.normal(kx, (batch, TARGET_FRAMES, 17, 17), jnp.float32)
    params = init_params(kp, n_features, n_hidden, n_layers)
    packed = prepare_params(params, n_hidden)

    y = cnn_lstm_forward(x, packed, n_hidden=n_hidden, seq_len=seq_len,
                         n_layers=n_layers)
    y = jax.block_until_ready(y)

    y_ref = reference_forward(x, params, n_hidden=n_hidden, seq_len=seq_len,
                              n_layers=n_layers)
    assert y.shape == (batch, 1)
    assert jnp.allclose(y, y_ref, atol=1e-4, rtol=1e-4), (y, y_ref)
    print("KERNEL_OK")
</pallas_src>

<mosaic_0001>
module attributes {stable_mosaic.version = 11 : i64} {
  func.func @kernel(%arg0: memref<144x64xf32, #tpu.memory_space<vmem>>, %arg1: memref<176x256xf32, #tpu.memory_space<vmem>>, %arg2: memref<1x1xf32, #tpu.memory_space<vmem>>) attributes {dimension_semantics = [], scalar_prefetch = 0 : i64, scratch_operands = 0 : i64, tpu.core_type = #tpu.core_type<tc>} {
    %c0 = arith.constant 0 : index
    %c0_0 = arith.constant 0 : index
    %0 = vector.load %arg1[%c0, %c0_0] : memref<176x256xf32, #tpu.memory_space<vmem>>, vector<16x144xf32>
    %c16 = arith.constant 16 : index
    %c0_1 = arith.constant 0 : index
    %1 = vector.load %arg1[%c16, %c0_1] : memref<176x256xf32, #tpu.memory_space<vmem>>, vector<64x128xf32>
    %c80 = arith.constant 80 : index
    %c0_2 = arith.constant 0 : index
    %2 = vector.load %arg1[%c80, %c0_2] : memref<176x256xf32, #tpu.memory_space<vmem>>, vector<16x128xf32>
    %c96 = arith.constant 96 : index
    %c0_3 = arith.constant 0 : index
    %3 = vector.load %arg1[%c96, %c0_3] : memref<176x256xf32, #tpu.memory_space<vmem>>, vector<32x256xf32>
    %c128 = arith.constant 128 : index
    %c0_4 = arith.constant 0 : index
    %4 = vector.load %arg1[%c128, %c0_4] : memref<176x256xf32, #tpu.memory_space<vmem>>, vector<32x128xf32>
    %c160 = arith.constant 160 : index
    %c0_5 = arith.constant 0 : index
    %5 = vector.load %arg1[%c160, %c0_5] : memref<176x256xf32, #tpu.memory_space<vmem>>, vector<1x128xf32>
    %c168 = arith.constant 168 : index
    %c0_6 = arith.constant 0 : index
    %6 = vector.load %arg1[%c168, %c0_6] : memref<176x256xf32, #tpu.memory_space<vmem>>, vector<1x32xf32>
    %c168_7 = arith.constant 168 : index
    %c32 = arith.constant 32 : index
    %7 = vector.load %arg1[%c168_7, %c32] : memref<176x256xf32, #tpu.memory_space<vmem>>, vector<1x1xf32>
    %c0_8 = arith.constant 0 : index
    %c0_9 = arith.constant 0 : index
    %8 = vector.load %arg0[%c0_8, %c0_9] : memref<144x64xf32, #tpu.memory_space<vmem>>, vector<144x64xf32>
    %cst = arith.constant dense<0.000000e+00> : vector<16x64xf32>
    %9 = tpu.matmul %0, %8, %cst {dimension_numbers = #tpu.dot_dimension_numbers<[1], [0], [0], [1], [0, 0, 1, 1], [], []>} : vector<16x144xf32>, vector<144x64xf32>, vector<16x64xf32> -> vector<16x64xf32>
    %cst_10 = arith.constant dense<0.000000e+00> : vector<16x128xf32>
    %10 = tpu.matmul %9, %1, %cst_10 {dimension_numbers = #tpu.dot_dimension_numbers<[1], [0], [0], [1], [0, 0, 1, 1], [], []>} : vector<16x64xf32>, vector<64x128xf32>, vector<16x128xf32> -> vector<16x128xf32>
    %11 = arith.addf %10, %2 : vector<16x128xf32>
    %cst_11 = arith.constant 0.000000e+00 : f32
    %12 = vector.broadcast %cst_11 : f32 to vector<1x32xf32>
    %cst_12 = arith.constant 0.000000e+00 : f32
    %13 = vector.broadcast %cst_12 : f32 to vector<1x128xf32>
    %14 = vector.extract_strided_slice %11 {offsets = [0, 0], sizes = [1, 128], strides = [1, 1]} : vector<16x128xf32> to vector<1x128xf32>
    %15 = arith.addf %14, %13 : vector<1x128xf32>
    %16 = arith.negf %15 : vector<1x128xf32>
    %17 = math.exp %16 : vector<1x128xf32>
    %cst_13 = arith.constant 1.000000e+00 : f32
    %18 = vector.broadcast %cst_13 : f32 to vector<1x128xf32>
    %19 = arith.addf %18, %17 : vector<1x128xf32>
    %20 = arith.divf %18, %19 : vector<1x128xf32>
    %21 = math.tanh %15 : vector<1x128xf32>
    %22 = vector.extract_strided_slice %20 {offsets = [0, 32], sizes = [1, 32], strides = [1, 1]} : vector<1x128xf32> to vector<1x32xf32>
    %23 = arith.mulf %22, %12 : vector<1x32xf32>
    %24 = vector.extract_strided_slice %20 {offsets = [0, 0], sizes = [1, 32], strides = [1, 1]} : vector<1x128xf32> to vector<1x32xf32>
    %25 = vector.extract_strided_slice %21 {offsets = [0, 64], sizes = [1, 32], strides = [1, 1]} : vector<1x128xf32> to vector<1x32xf32>
    %26 = arith.mulf %24, %25 : vector<1x32xf32>
    %27 = arith.addf %23, %26 : vector<1x32xf32>
    %28 = vector.extract_strided_slice %20 {offsets = [0, 96], sizes = [1, 32], strides = [1, 1]} : vector<1x128xf32> to vector<1x32xf32>
    %29 = math.tanh %27 : vector<1x32xf32>
    %30 = arith.mulf %28, %29 : vector<1x32xf32>
    %cst_14 = arith.constant dense<0.000000e+00> : vector<1x256xf32>
    %31 = tpu.matmul %30, %3, %cst_14 {dimension_numbers = #tpu.dot_dimension_numbers<[1], [0], [0], [1], [0, 0, 1, 1], [], []>} : vector<1x32xf32>, vector<32x256xf32>, vector<1x256xf32> -> vector<1x256xf32>
    %32 = vector.extract_strided_slice %31 {offsets = [0, 0], sizes = [1, 128], strides = [1, 1]} : vector<1x256xf32> to vector<1x128xf32>
    %33 = vector.extract_strided_slice %31 {offsets = [0, 128], sizes = [1, 128], strides = [1, 1]} : vector<1x256xf32> to vector<1x128xf32>
    %34 = arith.addf %33, %13 : vector<1x128xf32>
    %35 = arith.addf %34, %5 : vector<1x128xf32>
    %36 = arith.negf %35 : vector<1x128xf32>
    %37 = math.exp %36 : vector<1x128xf32>
    %cst_15 = arith.constant 1.000000e+00 : f32
    %38 = vector.broadcast %cst_15 : f32 to vector<1x128xf32>
    %39 = arith.addf %38, %37 : vector<1x128xf32>
    %40 = arith.divf %38, %39 : vector<1x128xf32>
    %41 = math.tanh %35 : vector<1x128xf32>
    %42 = vector.extract_strided_slice %40 {offsets = [0, 32], sizes = [1, 32], strides = [1, 1]} : vector<1x128xf32> to vector<1x32xf32>
    %43 = arith.mulf %42, %12 : vector<1x32xf32>
    %44 = vector.extract_strided_slice %40 {offsets = [0, 0], sizes = [1, 32], strides = [1, 1]} : vector<1x128xf32> to vector<1x32xf32>
    %45 = vector.extract_strided_slice %41 {offsets = [0, 64], sizes = [1, 32], strides = [1, 1]} : vector<1x128xf32> to vector<1x32xf32>
    %46 = arith.mulf %44, %45 : vector<1x32xf32>
    %47 = arith.addf %43, %46 : vector<1x32xf32>
    %48 = vector.extract_strided_slice %40 {offsets = [0, 96], sizes = [1, 32], strides = [1, 1]} : vector<1x128xf32> to vector<1x32xf32>
    %49 = math.tanh %47 : vector<1x32xf32>
    %50 = arith.mulf %48, %49 : vector<1x32xf32>
    %cst_16 = arith.constant dense<0.000000e+00> : vector<1x128xf32>
    %51 = tpu.matmul %50, %4, %cst_16 {dimension_numbers = #tpu.dot_dimension_numbers<[1], [0], [0], [1], [0, 0, 1, 1], [], []>} : vector<1x32xf32>, vector<32x128xf32>, vector<1x128xf32> -> vector<1x128xf32>
    %52 = vector.extract_strided_slice %11 {offsets = [1, 0], sizes = [1, 128], strides = [1, 1]} : vector<16x128xf32> to vector<1x128xf32>
    %53 = arith.addf %52, %32 : vector<1x128xf32>
    %54 = arith.negf %53 : vector<1x128xf32>
    %55 = math.exp %54 : vector<1x128xf32>
    %cst_17 = arith.constant 1.000000e+00 : f32
    %56 = vector.broadcast %cst_17 : f32 to vector<1x128xf32>
    %57 = arith.addf %56, %55 : vector<1x128xf32>
    %58 = arith.divf %56, %57 : vector<1x128xf32>
    %59 = math.tanh %53 : vector<1x128xf32>
    %60 = vector.extract_strided_slice %58 {offsets = [0, 32], sizes = [1, 32], strides = [1, 1]} : vector<1x128xf32> to vector<1x32xf32>
    %61 = arith.mulf %60, %27 : vector<1x32xf32>
    %62 = vector.extract_strided_slice %58 {offsets = [0, 0], sizes = [1, 32], strides = [1, 1]} : vector<1x128xf32> to vector<1x32xf32>
    %63 = vector.extract_strided_slice %59 {offsets = [0, 64], sizes = [1, 32], strides = [1, 1]} : vector<1x128xf32> to vector<1x32xf32>
    %64 = arith.mulf %62, %63 : vector<1x32xf32>
    %65 = arith.addf %61, %64 : vector<1x32xf32>
    %66 = vector.extract_strided_slice %58 {offsets = [0, 96], sizes = [1, 32], strides = [1, 1]} : vector<1x128xf32> to vector<1x32xf32>
    %67 = math.tanh %65 : vector<1x32xf32>
    %68 = arith.mulf %66, %67 : vector<1x32xf32>
    %cst_18 = arith.constant dense<0.000000e+00> : vector<1x256xf32>
    %69 = tpu.matmul %68, %3, %cst_18 {dimension_numbers = #tpu.dot_dimension_numbers<[1], [0], [0], [1], [0, 0, 1, 1], [], []>} : vector<1x32xf32>, vector<32x256xf32>, vector<1x256xf32> -> vector<1x256xf32>
    %70 = vector.extract_strided_slice %69 {offsets = [0, 0], sizes = [1, 128], strides = [1, 1]} : vector<1x256xf32> to vector<1x128xf32>
    %71 = vector.extract_strided_slice %69 {offsets = [0, 128], sizes = [1, 128], strides = [1, 1]} : vector<1x256xf32> to vector<1x128xf32>
    %72 = arith.addf %71, %51 : vector<1x128xf32>
    %73 = arith.addf %72, %5 : vector<1x128xf32>
    %74 = arith.negf %73 : vector<1x128xf32>
    %75 = math.exp %74 : vector<1x128xf32>
    %cst_19 = arith.constant 1.000000e+00 : f32
    %76 = vector.broadcast %cst_19 : f32 to vector<1x128xf32>
    %77 = arith.addf %76, %75 : vector<1x128xf32>
    %78 = arith.divf %76, %77 : vector<1x128xf32>
    %79 = math.tanh %73 : vector<1x128xf32>
    %80 = vector.extract_strided_slice %78 {offsets = [0, 32], sizes = [1, 32], strides = [1, 1]} : vector<1x128xf32> to vector<1x32xf32>
    %81 = arith.mulf %80, %47 : vector<1x32xf32>
    %82 = vector.extract_strided_slice %78 {offsets = [0, 0], sizes = [1, 32], strides = [1, 1]} : vector<1x128xf32> to vector<1x32xf32>
    %83 = vector.extract_strided_slice %79 {offsets = [0, 64], sizes = [1, 32], strides = [1, 1]} : vector<1x128xf32> to vector<1x32xf32>
    %84 = arith.mulf %82, %83 : vector<1x32xf32>
    %85 = arith.addf %81, %84 : vector<1x32xf32>
    %86 = vector.extract_strided_slice %78 {offsets = [0, 96], sizes = [1, 32], strides = [1, 1]} : vector<1x128xf32> to vector<1x32xf32>
    %87 = math.tanh %85 : vector<1x32xf32>
    %88 = arith.mulf %86, %87 : vector<1x32xf32>
    %cst_20 = arith.constant dense<0.000000e+00> : vector<1x128xf32>
    %89 = tpu.matmul %88, %4, %cst_20 {dimension_numbers = #tpu.dot_dimension_numbers<[1], [0], [0], [1], [0, 0, 1, 1], [], []>} : vector<1x32xf32>, vector<32x128xf32>, vector<1x128xf32> -> vector<1x128xf32>
    %90 = vector.extract_strided_slice %11 {offsets = [2, 0], sizes = [1, 128], strides = [1, 1]} : vector<16x128xf32> to vector<1x128xf32>
    %91 = arith.addf %90, %70 : vector<1x128xf32>
    %92 = arith.negf %91 : vector<1x128xf32>
    %93 = math.exp %92 : vector<1x128xf32>
    %cst_21 = arith.constant 1.000000e+00 : f32
    %94 = vector.broadcast %cst_21 : f32 to vector<1x128xf32>
    %95 = arith.addf %94, %93 : vector<1x128xf32>
    %96 = arith.divf %94, %95 : vector<1x128xf32>
    %97 = math.tanh %91 : vector<1x128xf32>
    %98 = vector.extract_strided_slice %96 {offsets = [0, 32], sizes = [1, 32], strides = [1, 1]} : vector<1x128xf32> to vector<1x32xf32>
    %99 = arith.mulf %98, %65 : vector<1x32xf32>
    %100 = vector.extract_strided_slice %96 {offsets = [0, 0], sizes = [1, 32], strides = [1, 1]} : vector<1x128xf32> to vector<1x32xf32>
    %101 = vector.extract_strided_slice %97 {offsets = [0, 64], sizes = [1, 32], strides = [1, 1]} : vector<1x128xf32> to vector<1x32xf32>
    %102 = arith.mulf %100, %101 : vector<1x32xf32>
    %103 = arith.addf %99, %102 : vector<1x32xf32>
    %104 = vector.extract_strided_slice %96 {offsets = [0, 96], sizes = [1, 32], strides = [1, 1]} : vector<1x128xf32> to vector<1x32xf32>
    %105 = math.tanh %103 : vector<1x32xf32>
    %106 = arith.mulf %104, %105 : vector<1x32xf32>
    %cst_22 = arith.constant dense<0.000000e+00> : vector<1x256xf32>
    %107 = tpu.matmul %106, %3, %cst_22 {dimension_numbers = #tpu.dot_dimension_numbers<[1], [0], [0], [1], [0, 0, 1, 1], [], []>} : vector<1x32xf32>, vector<32x256xf32>, vector<1x256xf32> -> vector<1x256xf32>
    %108 = vector.extract_strided_slice %107 {offsets = [0, 0], sizes = [1, 128], strides = [1, 1]} : vector<1x256xf32> to vector<1x128xf32>
    %109 = vector.extract_strided_slice %107 {offsets = [0, 128], sizes = [1, 128], strides = [1, 1]} : vector<1x256xf32> to vector<1x128xf32>
    %110 = arith.addf %109, %89 : vector<1x128xf32>
    %111 = arith.addf %110, %5 : vector<1x128xf32>
    %112 = arith.negf %111 : vector<1x128xf32>
    %113 = math.exp %112 : vector<1x128xf32>
    %cst_23 = arith.constant 1.000000e+00 : f32
    %114 = vector.broadcast %cst_23 : f32 to vector<1x128xf32>
    %115 = arith.addf %114, %113 : vector<1x128xf32>
    %116 = arith.divf %114, %115 : vector<1x128xf32>
    %117 = math.tanh %111 : vector<1x128xf32>
    %118 = vector.extract_strided_slice %116 {offsets = [0, 32], sizes = [1, 32], strides = [1, 1]} : vector<1x128xf32> to vector<1x32xf32>
    %119 = arith.mulf %118, %85 : vector<1x32xf32>
    %120 = vector.extract_strided_slice %116 {offsets = [0, 0], sizes = [1, 32], strides = [1, 1]} : vector<1x128xf32> to vector<1x32xf32>
    %121 = vector.extract_strided_slice %117 {offsets = [0, 64], sizes = [1, 32], strides = [1, 1]} : vector<1x128xf32> to vector<1x32xf32>
    %122 = arith.mulf %120, %121 : vector<1x32xf32>
    %123 = arith.addf %119, %122 : vector<1x32xf32>
    %124 = vector.extract_strided_slice %116 {offsets = [0, 96], sizes = [1, 32], strides = [1, 1]} : vector<1x128xf32> to vector<1x32xf32>
    %125 = math.tanh %123 : vector<1x32xf32>
    %126 = arith.mulf %124, %125 : vector<1x32xf32>
    %cst_24 = arith.constant dense<0.000000e+00> : vector<1x128xf32>
    %127 = tpu.matmul %126, %4, %cst_24 {dimension_numbers = #tpu.dot_dimension_numbers<[1], [0], [0], [1], [0, 0, 1, 1], [], []>} : vector<1x32xf32>, vector<32x128xf32>, vector<1x128xf32> -> vector<1x128xf32>
    %128 = vector.extract_strided_slice %11 {offsets = [3, 0], sizes = [1, 128], strides = [1, 1]} : vector<16x128xf32> to vector<1x128xf32>
    %129 = arith.addf %128, %108 : vector<1x128xf32>
    %130 = arith.negf %129 : vector<1x128xf32>
    %131 = math.exp %130 : vector<1x128xf32>
    %cst_25 = arith.constant 1.000000e+00 : f32
    %132 = vector.broadcast %cst_25 : f32 to vector<1x128xf32>
    %133 = arith.addf %132, %131 : vector<1x128xf32>
    %134 = arith.divf %132, %133 : vector<1x128xf32>
    %135 = math.tanh %129 : vector<1x128xf32>
    %136 = vector.extract_strided_slice %134 {offsets = [0, 32], sizes = [1, 32], strides = [1, 1]} : vector<1x128xf32> to vector<1x32xf32>
    %137 = arith.mulf %136, %103 : vector<1x32xf32>
    %138 = vector.extract_strided_slice %134 {offsets = [0, 0], sizes = [1, 32], strides = [1, 1]} : vector<1x128xf32> to vector<1x32xf32>
    %139 = vector.extract_strided_slice %135 {offsets = [0, 64], sizes = [1, 32], strides = [1, 1]} : vector<1x128xf32> to vector<1x32xf32>
    %140 = arith.mulf %138, %139 : vector<1x32xf32>
    %141 = arith.addf %137, %140 : vector<1x32xf32>
    %142 = vector.extract_strided_slice %134 {offsets = [0, 96], sizes = [1, 32], strides = [1, 1]} : vector<1x128xf32> to vector<1x32xf32>
    %143 = math.tanh %141 : vector<1x32xf32>
    %144 = arith.mulf %142, %143 : vector<1x32xf32>
    %cst_26 = arith.constant dense<0.000000e+00> : vector<1x256xf32>
    %145 = tpu.matmul %144, %3, %cst_26 {dimension_numbers = #tpu.dot_dimension_numbers<[1], [0], [0], [1], [0, 0, 1, 1], [], []>} : vector<1x32xf32>, vector<32x256xf32>, vector<1x256xf32> -> vector<1x256xf32>
    %146 = vector.extract_strided_slice %145 {offsets = [0, 0], sizes = [1, 128], strides = [1, 1]} : vector<1x256xf32> to vector<1x128xf32>
    %147 = vector.extract_strided_slice %145 {offsets = [0, 128], sizes = [1, 128], strides = [1, 1]} : vector<1x256xf32> to vector<1x128xf32>
    %148 = arith.addf %147, %127 : vector<1x128xf32>
    %149 = arith.addf %148, %5 : vector<1x128xf32>
    %150 = arith.negf %149 : vector<1x128xf32>
    %151 = math.exp %150 : vector<1x128xf32>
    %cst_27 = arith.constant 1.000000e+00 : f32
    %152 = vector.broadcast %cst_27 : f32 to vector<1x128xf32>
    %153 = arith.addf %152, %151 : vector<1x128xf32>
    %154 = arith.divf %152, %153 : vector<1x128xf32>
    %155 = math.tanh %149 : vector<1x128xf32>
    %156 = vector.extract_strided_slice %154 {offsets = [0, 32], sizes = [1, 32], strides = [1, 1]} : vector<1x128xf32> to vector<1x32xf32>
    %157 = arith.mulf %156, %123 : vector<1x32xf32>
    %158 = vector.extract_strided_slice %154 {offsets = [0, 0], sizes = [1, 32], strides = [1, 1]} : vector<1x128xf32> to vector<1x32xf32>
    %159 = vector.extract_strided_slice %155 {offsets = [0, 64], sizes = [1, 32], strides = [1, 1]} : vector<1x128xf32> to vector<1x32xf32>
    %160 = arith.mulf %158, %159 : vector<1x32xf32>
    %161 = arith.addf %157, %160 : vector<1x32xf32>
    %162 = vector.extract_strided_slice %154 {offsets = [0, 96], sizes = [1, 32], strides = [1, 1]} : vector<1x128xf32> to vector<1x32xf32>
    %163 = math.tanh %161 : vector<1x32xf32>
    %164 = arith.mulf %162, %163 : vector<1x32xf32>
    %cst_28 = arith.constant dense<0.000000e+00> : vector<1x128xf32>
    %165 = tpu.matmul %164, %4, %cst_28 {dimension_numbers = #tpu.dot_dimension_numbers<[1], [0], [0], [1], [0, 0, 1, 1], [], []>} : vector<1x32xf32>, vector<32x128xf32>, vector<1x128xf32> -> vector<1x128xf32>
    %166 = vector.extract_strided_slice %11 {offsets = [4, 0], sizes = [1, 128], strides = [1, 1]} : vector<16x128xf32> to vector<1x128xf32>
    %167 = arith.addf %166, %146 : vector<1x128xf32>
    %168 = arith.negf %167 : vector<1x128xf32>
    %169 = math.exp %168 : vector<1x128xf32>
    %cst_29 = arith.constant 1.000000e+00 : f32
    %170 = vector.broadcast %cst_29 : f32 to vector<1x128xf32>
    %171 = arith.addf %170, %169 : vector<1x128xf32>
    %172 = arith.divf %170, %171 : vector<1x128xf32>
    %173 = math.tanh %167 : vector<1x128xf32>
    %174 = vector.extract_strided_slice %172 {offsets = [0, 32], sizes = [1, 32], strides = [1, 1]} : vector<1x128xf32> to vector<1x32xf32>
    %175 = arith.mulf %174, %141 : vector<1x32xf32>
    %176 = vector.extract_strided_slice %172 {offsets = [0, 0], sizes = [1, 32], strides = [1, 1]} : vector<1x128xf32> to vector<1x32xf32>
    %177 = vector.extract_strided_slice %173 {offsets = [0, 64], sizes = [1, 32], strides = [1, 1]} : vector<1x128xf32> to vector<1x32xf32>
    %178 = arith.mulf %176, %177 : vector<1x32xf32>
    %179 = arith.addf %175, %178 : vector<1x32xf32>
    %180 = vector.extract_strided_slice %172 {offsets = [0, 96], sizes = [1, 32], strides = [1, 1]} : vector<1x128xf32> to vector<1x32xf32>
    %181 = math.tanh %179 : vector<1x32xf32>
    %182 = arith.mulf %180, %181 : vector<1x32xf32>
    %cst_30 = arith.constant dense<0.000000e+00> : vector<1x256xf32>
    %183 = tpu.matmul %182, %3, %cst_30 {dimension_numbers = #tpu.dot_dimension_numbers<[1], [0], [0], [1], [0, 0, 1, 1], [], []>} : vector<1x32xf32>, vector<32x256xf32>, vector<1x256xf32> -> vector<1x256xf32>
    %184 = vector.extract_strided_slice %183 {offsets = [0, 0], sizes = [1, 128], strides = [1, 1]} : vector<1x256xf32> to vector<1x128xf32>
    %185 = vector.extract_strided_slice %183 {offsets = [0, 128], sizes = [1, 128], strides = [1, 1]} : vector<1x256xf32> to vector<1x128xf32>
    %186 = arith.addf %185, %165 : vector<1x128xf32>
    %187 = arith.addf %186, %5 : vector<1x128xf32>
    %188 = arith.negf %187 : vector<1x128xf32>
    %189 = math.exp %188 : vector<1x128xf32>
    %cst_31 = arith.constant 1.000000e+00 : f32
    %190 = vector.broadcast %cst_31 : f32 to vector<1x128xf32>
    %191 = arith.addf %190, %189 : vector<1x128xf32>
    %192 = arith.divf %190, %191 : vector<1x128xf32>
    %193 = math.tanh %187 : vector<1x128xf32>
    %194 = vector.extract_strided_slice %192 {offsets = [0, 32], sizes = [1, 32], strides = [1, 1]} : vector<1x128xf32> to vector<1x32xf32>
    %195 = arith.mulf %194, %161 : vector<1x32xf32>
    %196 = vector.extract_strided_slice %192 {offsets = [0, 0], sizes = [1, 32], strides = [1, 1]} : vector<1x128xf32> to vector<1x32xf32>
    %197 = vector.extract_strided_slice %193 {offsets = [0, 64], sizes = [1, 32], strides = [1, 1]} : vector<1x128xf32> to vector<1x32xf32>
    %198 = arith.mulf %196, %197 : vector<1x32xf32>
    %199 = arith.addf %195, %198 : vector<1x32xf32>
    %200 = vector.extract_strided_slice %192 {offsets = [0, 96], sizes = [1, 32], strides = [1, 1]} : vector<1x128xf32> to vector<1x32xf32>
    %201 = math.tanh %199 : vector<1x32xf32>
    %202 = arith.mulf %200, %201 : vector<1x32xf32>
    %cst_32 = arith.constant dense<0.000000e+00> : vector<1x128xf32>
    %203 = tpu.matmul %202, %4, %cst_32 {dimension_numbers = #tpu.dot_dimension_numbers<[1], [0], [0], [1], [0, 0, 1, 1], [], []>} : vector<1x32xf32>, vector<32x128xf32>, vector<1x128xf32> -> vector<1x128xf32>
    %204 = vector.extract_strided_slice %11 {offsets = [5, 0], sizes = [1, 128], strides = [1, 1]} : vector<16x128xf32> to vector<1x128xf32>
    %205 = arith.addf %204, %184 : vector<1x128xf32>
    %206 = arith.negf %205 : vector<1x128xf32>
    %207 = math.exp %206 : vector<1x128xf32>
    %cst_33 = arith.constant 1.000000e+00 : f32
    %208 = vector.broadcast %cst_33 : f32 to vector<1x128xf32>
    %209 = arith.addf %208, %207 : vector<1x128xf32>
    %210 = arith.divf %208, %209 : vector<1x128xf32>
    %211 = math.tanh %205 : vector<1x128xf32>
    %212 = vector.extract_strided_slice %210 {offsets = [0, 32], sizes = [1, 32], strides = [1, 1]} : vector<1x128xf32> to vector<1x32xf32>
    %213 = arith.mulf %212, %179 : vector<1x32xf32>
    %214 = vector.extract_strided_slice %210 {offsets = [0, 0], sizes = [1, 32], strides = [1, 1]} : vector<1x128xf32> to vector<1x32xf32>
    %215 = vector.extract_strided_slice %211 {offsets = [0, 64], sizes = [1, 32], strides = [1, 1]} : vector<1x128xf32> to vector<1x32xf32>
    %216 = arith.mulf %214, %215 : vector<1x32xf32>
    %217 = arith.addf %213, %216 : vector<1x32xf32>
    %218 = vector.extract_strided_slice %210 {offsets = [0, 96], sizes = [1, 32], strides = [1, 1]} : vector<1x128xf32> to vector<1x32xf32>
    %219 = math.tanh %217 : vector<1x32xf32>
    %220 = arith.mulf %218, %219 : vector<1x32xf32>
    %cst_34 = arith.constant dense<0.000000e+00> : vector<1x256xf32>
    %221 = tpu.matmul %220, %3, %cst_34 {dimension_numbers = #tpu.dot_dimension_numbers<[1], [0], [0], [1], [0, 0, 1, 1], [], []>} : vector<1x32xf32>, vector<32x256xf32>, vector<1x256xf32> -> vector<1x256xf32>
    %222 = vector.extract_strided_slice %221 {offsets = [0, 0], sizes = [1, 128], strides = [1, 1]} : vector<1x256xf32> to vector<1x128xf32>
    %223 = vector.extract_strided_slice %221 {offsets = [0, 128], sizes = [1, 128], strides = [1, 1]} : vector<1x256xf32> to vector<1x128xf32>
    %224 = arith.addf %223, %203 : vector<1x128xf32>
    %225 = arith.addf %224, %5 : vector<1x128xf32>
    %226 = arith.negf %225 : vector<1x128xf32>
    %227 = math.exp %226 : vector<1x128xf32>
    %cst_35 = arith.constant 1.000000e+00 : f32
    %228 = vector.broadcast %cst_35 : f32 to vector<1x128xf32>
    %229 = arith.addf %228, %227 : vector<1x128xf32>
    %230 = arith.divf %228, %229 : vector<1x128xf32>
    %231 = math.tanh %225 : vector<1x128xf32>
    %232 = vector.extract_strided_slice %230 {offsets = [0, 32], sizes = [1, 32], strides = [1, 1]} : vector<1x128xf32> to vector<1x32xf32>
    %233 = arith.mulf %232, %199 : vector<1x32xf32>
    %234 = vector.extract_strided_slice %230 {offsets = [0, 0], sizes = [1, 32], strides = [1, 1]} : vector<1x128xf32> to vector<1x32xf32>
    %235 = vector.extract_strided_slice %231 {offsets = [0, 64], sizes = [1, 32], strides = [1, 1]} : vector<1x128xf32> to vector<1x32xf32>
    %236 = arith.mulf %234, %235 : vector<1x32xf32>
    %237 = arith.addf %233, %236 : vector<1x32xf32>
    %238 = vector.extract_strided_slice %230 {offsets = [0, 96], sizes = [1, 32], strides = [1, 1]} : vector<1x128xf32> to vector<1x32xf32>
    %239 = math.tanh %237 : vector<1x32xf32>
    %240 = arith.mulf %238, %239 : vector<1x32xf32>
    %cst_36 = arith.constant dense<0.000000e+00> : vector<1x128xf32>
    %241 = tpu.matmul %240, %4, %cst_36 {dimension_numbers = #tpu.dot_dimension_numbers<[1], [0], [0], [1], [0, 0, 1, 1], [], []>} : vector<1x32xf32>, vector<32x128xf32>, vector<1x128xf32> -> vector<1x128xf32>
    %242 = vector.extract_strided_slice %11 {offsets = [6, 0], sizes = [1, 128], strides = [1, 1]} : vector<16x128xf32> to vector<1x128xf32>
    %243 = arith.addf %242, %222 : vector<1x128xf32>
    %244 = arith.negf %243 : vector<1x128xf32>
    %245 = math.exp %244 : vector<1x128xf32>
    %cst_37 = arith.constant 1.000000e+00 : f32
    %246 = vector.broadcast %cst_37 : f32 to vector<1x128xf32>
    %247 = arith.addf %246, %245 : vector<1x128xf32>
    %248 = arith.divf %246, %247 : vector<1x128xf32>
    %249 = math.tanh %243 : vector<1x128xf32>
    %250 = vector.extract_strided_slice %248 {offsets = [0, 32], sizes = [1, 32], strides = [1, 1]} : vector<1x128xf32> to vector<1x32xf32>
    %251 = arith.mulf %250, %217 : vector<1x32xf32>
    %252 = vector.extract_strided_slice %248 {offsets = [0, 0], sizes = [1, 32], strides = [1, 1]} : vector<1x128xf32> to vector<1x32xf32>
    %253 = vector.extract_strided_slice %249 {offsets = [0, 64], sizes = [1, 32], strides = [1, 1]} : vector<1x128xf32> to vector<1x32xf32>
    %254 = arith.mulf %252, %253 : vector<1x32xf32>
    %255 = arith.addf %251, %254 : vector<1x32xf32>
    %256 = vector.extract_strided_slice %248 {offsets = [0, 96], sizes = [1, 32], strides = [1, 1]} : vector<1x128xf32> to vector<1x32xf32>
    %257 = math.tanh %255 : vector<1x32xf32>
    %258 = arith.mulf %256, %257 : vector<1x32xf32>
    %cst_38 = arith.constant dense<0.000000e+00> : vector<1x256xf32>
    %259 = tpu.matmul %258, %3, %cst_38 {dimension_numbers = #tpu.dot_dimension_numbers<[1], [0], [0], [1], [0, 0, 1, 1], [], []>} : vector<1x32xf32>, vector<32x256xf32>, vector<1x256xf32> -> vector<1x256xf32>
    %260 = vector.extract_strided_slice %259 {offsets = [0, 0], sizes = [1, 128], strides = [1, 1]} : vector<1x256xf32> to vector<1x128xf32>
    %261 = vector.extract_strided_slice %259 {offsets = [0, 128], sizes = [1, 128], strides = [1, 1]} : vector<1x256xf32> to vector<1x128xf32>
    %262 = arith.addf %261, %241 : vector<1x128xf32>
    %263 = arith.addf %262, %5 : vector<1x128xf32>
    %264 = arith.negf %263 : vector<1x128xf32>
    %265 = math.exp %264 : vector<1x128xf32>
    %cst_39 = arith.constant 1.000000e+00 : f32
    %266 = vector.broadcast %cst_39 : f32 to vector<1x128xf32>
    %267 = arith.addf %266, %265 : vector<1x128xf32>
    %268 = arith.divf %266, %267 : vector<1x128xf32>
    %269 = math.tanh %263 : vector<1x128xf32>
    %270 = vector.extract_strided_slice %268 {offsets = [0, 32], sizes = [1, 32], strides = [1, 1]} : vector<1x128xf32> to vector<1x32xf32>
    %271 = arith.mulf %270, %237 : vector<1x32xf32>
    %272 = vector.extract_strided_slice %268 {offsets = [0, 0], sizes = [1, 32], strides = [1, 1]} : vector<1x128xf32> to vector<1x32xf32>
    %273 = vector.extract_strided_slice %269 {offsets = [0, 64], sizes = [1, 32], strides = [1, 1]} : vector<1x128xf32> to vector<1x32xf32>
    %274 = arith.mulf %272, %273 : vector<1x32xf32>
    %275 = arith.addf %271, %274 : vector<1x32xf32>
    %276 = vector.extract_strided_slice %268 {offsets = [0, 96], sizes = [1, 32], strides = [1, 1]} : vector<1x128xf32> to vector<1x32xf32>
    %277 = math.tanh %275 : vector<1x32xf32>
    %278 = arith.mulf %276, %277 : vector<1x32xf32>
    %cst_40 = arith.constant dense<0.000000e+00> : vector<1x128xf32>
    %279 = tpu.matmul %278, %4, %cst_40 {dimension_numbers = #tpu.dot_dimension_numbers<[1], [0], [0], [1], [0, 0, 1, 1], [], []>} : vector<1x32xf32>, vector<32x128xf32>, vector<1x128xf32> -> vector<1x128xf32>
    %280 = vector.extract_strided_slice %11 {offsets = [7, 0], sizes = [1, 128], strides = [1, 1]} : vector<16x128xf32> to vector<1x128xf32>
    %281 = arith.addf %280, %260 : vector<1x128xf32>
    %282 = arith.negf %281 : vector<1x128xf32>
    %283 = math.exp %282 : vector<1x128xf32>
    %cst_41 = arith.constant 1.000000e+00 : f32
    %284 = vector.broadcast %cst_41 : f32 to vector<1x128xf32>
    %285 = arith.addf %284, %283 : vector<1x128xf32>
    %286 = arith.divf %284, %285 : vector<1x128xf32>
    %287 = math.tanh %281 : vector<1x128xf32>
    %288 = vector.extract_strided_slice %286 {offsets = [0, 32], sizes = [1, 32], strides = [1, 1]} : vector<1x128xf32> to vector<1x32xf32>
    %289 = arith.mulf %288, %255 : vector<1x32xf32>
    %290 = vector.extract_strided_slice %286 {offsets = [0, 0], sizes = [1, 32], strides = [1, 1]} : vector<1x128xf32> to vector<1x32xf32>
    %291 = vector.extract_strided_slice %287 {offsets = [0, 64], sizes = [1, 32], strides = [1, 1]} : vector<1x128xf32> to vector<1x32xf32>
    %292 = arith.mulf %290, %291 : vector<1x32xf32>
    %293 = arith.addf %289, %292 : vector<1x32xf32>
    %294 = vector.extract_strided_slice %286 {offsets = [0, 96], sizes = [1, 32], strides = [1, 1]} : vector<1x128xf32> to vector<1x32xf32>
    %295 = math.tanh %293 : vector<1x32xf32>
    %296 = arith.mulf %294, %295 : vector<1x32xf32>
    %cst_42 = arith.constant dense<0.000000e+00> : vector<1x256xf32>
    %297 = tpu.matmul %296, %3, %cst_42 {dimension_numbers = #tpu.dot_dimension_numbers<[1], [0], [0], [1], [0, 0, 1, 1], [], []>} : vector<1x32xf32>, vector<32x256xf32>, vector<1x256xf32> -> vector<1x256xf32>
    %298 = vector.extract_strided_slice %297 {offsets = [0, 0], sizes = [1, 128], strides = [1, 1]} : vector<1x256xf32> to vector<1x128xf32>
    %299 = vector.extract_strided_slice %297 {offsets = [0, 128], sizes = [1, 128], strides = [1, 1]} : vector<1x256xf32> to vector<1x128xf32>
    %300 = arith.addf %299, %279 : vector<1x128xf32>
    %301 = arith.addf %300, %5 : vector<1x128xf32>
    %302 = arith.negf %301 : vector<1x128xf32>
    %303 = math.exp %302 : vector<1x128xf32>
    %cst_43 = arith.constant 1.000000e+00 : f32
    %304 = vector.broadcast %cst_43 : f32 to vector<1x128xf32>
    %305 = arith.addf %304, %303 : vector<1x128xf32>
    %306 = arith.divf %304, %305 : vector<1x128xf32>
    %307 = math.tanh %301 : vector<1x128xf32>
    %308 = vector.extract_strided_slice %306 {offsets = [0, 32], sizes = [1, 32], strides = [1, 1]} : vector<1x128xf32> to vector<1x32xf32>
    %309 = arith.mulf %308, %275 : vector<1x32xf32>
    %310 = vector.extract_strided_slice %306 {offsets = [0, 0], sizes = [1, 32], strides = [1, 1]} : vector<1x128xf32> to vector<1x32xf32>
    %311 = vector.extract_strided_slice %307 {offsets = [0, 64], sizes = [1, 32], strides = [1, 1]} : vector<1x128xf32> to vector<1x32xf32>
    %312 = arith.mulf %310, %311 : vector<1x32xf32>
    %313 = arith.addf %309, %312 : vector<1x32xf32>
    %314 = vector.extract_strided_slice %306 {offsets = [0, 96], sizes = [1, 32], strides = [1, 1]} : vector<1x128xf32> to vector<1x32xf32>
    %315 = math.tanh %313 : vector<1x32xf32>
    %316 = arith.mulf %314, %315 : vector<1x32xf32>
    %cst_44 = arith.constant dense<0.000000e+00> : vector<1x128xf32>
    %317 = tpu.matmul %316, %4, %cst_44 {dimension_numbers = #tpu.dot_dimension_numbers<[1], [0], [0], [1], [0, 0, 1, 1], [], []>} : vector<1x32xf32>, vector<32x128xf32>, vector<1x128xf32> -> vector<1x128xf32>
    %318 = vector.extract_strided_slice %11 {offsets = [8, 0], sizes = [1, 128], strides = [1, 1]} : vector<16x128xf32> to vector<1x128xf32>
    %319 = arith.addf %318, %298 : vector<1x128xf32>
    %320 = arith.negf %319 : vector<1x128xf32>
    %321 = math.exp %320 : vector<1x128xf32>
    %cst_45 = arith.constant 1.000000e+00 : f32
    %322 = vector.broadcast %cst_45 : f32 to vector<1x128xf32>
    %323 = arith.addf %322, %321 : vector<1x128xf32>
    %324 = arith.divf %322, %323 : vector<1x128xf32>
    %325 = math.tanh %319 : vector<1x128xf32>
    %326 = vector.extract_strided_slice %324 {offsets = [0, 32], sizes = [1, 32], strides = [1, 1]} : vector<1x128xf32> to vector<1x32xf32>
    %327 = arith.mulf %326, %293 : vector<1x32xf32>
    %328 = vector.extract_strided_slice %324 {offsets = [0, 0], sizes = [1, 32], strides = [1, 1]} : vector<1x128xf32> to vector<1x32xf32>
    %329 = vector.extract_strided_slice %325 {offsets = [0, 64], sizes = [1, 32], strides = [1, 1]} : vector<1x128xf32> to vector<1x32xf32>
    %330 = arith.mulf %328, %329 : vector<1x32xf32>
    %331 = arith.addf %327, %330 : vector<1x32xf32>
    %332 = vector.extract_strided_slice %324 {offsets = [0, 96], sizes = [1, 32], strides = [1, 1]} : vector<1x128xf32> to vector<1x32xf32>
    %333 = math.tanh %331 : vector<1x32xf32>
    %334 = arith.mulf %332, %333 : vector<1x32xf32>
    %cst_46 = arith.constant dense<0.000000e+00> : vector<1x256xf32>
    %335 = tpu.matmul %334, %3, %cst_46 {dimension_numbers = #tpu.dot_dimension_numbers<[1], [0], [0], [1], [0, 0, 1, 1], [], []>} : vector<1x32xf32>, vector<32x256xf32>, vector<1x256xf32> -> vector<1x256xf32>
    %336 = vector.extract_strided_slice %335 {offsets = [0, 0], sizes = [1, 128], strides = [1, 1]} : vector<1x256xf32> to vector<1x128xf32>
    %337 = vector.extract_strided_slice %335 {offsets = [0, 128], sizes = [1, 128], strides = [1, 1]} : vector<1x256xf32> to vector<1x128xf32>
    %338 = arith.addf %337, %317 : vector<1x128xf32>
    %339 = arith.addf %338, %5 : vector<1x128xf32>
    %340 = arith.negf %339 : vector<1x128xf32>
    %341 = math.exp %340 : vector<1x128xf32>
    %cst_47 = arith.constant 1.000000e+00 : f32
    %342 = vector.broadcast %cst_47 : f32 to vector<1x128xf32>
    %343 = arith.addf %342, %341 : vector<1x128xf32>
    %344 = arith.divf %342, %343 : vector<1x128xf32>
    %345 = math.tanh %339 : vector<1x128xf32>
    %346 = vector.extract_strided_slice %344 {offsets = [0, 32], sizes = [1, 32], strides = [1, 1]} : vector<1x128xf32> to vector<1x32xf32>
    %347 = arith.mulf %346, %313 : vector<1x32xf32>
    %348 = vector.extract_strided_slice %344 {offsets = [0, 0], sizes = [1, 32], strides = [1, 1]} : vector<1x128xf32> to vector<1x32xf32>
    %349 = vector.extract_strided_slice %345 {offsets = [0, 64], sizes = [1, 32], strides = [1, 1]} : vector<1x128xf32> to vector<1x32xf32>
    %350 = arith.mulf %348, %349 : vector<1x32xf32>
    %351 = arith.addf %347, %350 : vector<1x32xf32>
    %352 = vector.extract_strided_slice %344 {offsets = [0, 96], sizes = [1, 32], strides = [1, 1]} : vector<1x128xf32> to vector<1x32xf32>
    %353 = math.tanh %351 : vector<1x32xf32>
    %354 = arith.mulf %352, %353 : vector<1x32xf32>
    %cst_48 = arith.constant dense<0.000000e+00> : vector<1x128xf32>
    %355 = tpu.matmul %354, %4, %cst_48 {dimension_numbers = #tpu.dot_dimension_numbers<[1], [0], [0], [1], [0, 0, 1, 1], [], []>} : vector<1x32xf32>, vector<32x128xf32>, vector<1x128xf32> -> vector<1x128xf32>
    %356 = vector.extract_strided_slice %11 {offsets = [9, 0], sizes = [1, 128], strides = [1, 1]} : vector<16x128xf32> to vector<1x128xf32>
    %357 = arith.addf %356, %336 : vector<1x128xf32>
    %358 = arith.negf %357 : vector<1x128xf32>
    %359 = math.exp %358 : vector<1x128xf32>
    %cst_49 = arith.constant 1.000000e+00 : f32
    %360 = vector.broadcast %cst_49 : f32 to vector<1x128xf32>
    %361 = arith.addf %360, %359 : vector<1x128xf32>
    %362 = arith.divf %360, %361 : vector<1x128xf32>
    %363 = math.tanh %357 : vector<1x128xf32>
    %364 = vector.extract_strided_slice %362 {offsets = [0, 32], sizes = [1, 32], strides = [1, 1]} : vector<1x128xf32> to vector<1x32xf32>
    %365 = arith.mulf %364, %331 : vector<1x32xf32>
    %366 = vector.extract_strided_slice %362 {offsets = [0, 0], sizes = [1, 32], strides = [1, 1]} : vector<1x128xf32> to vector<1x32xf32>
    %367 = vector.extract_strided_slice %363 {offsets = [0, 64], sizes = [1, 32], strides = [1, 1]} : vector<1x128xf32> to vector<1x32xf32>
    %368 = arith.mulf %366, %367 : vector<1x32xf32>
    %369 = arith.addf %365, %368 : vector<1x32xf32>
    %370 = vector.extract_strided_slice %362 {offsets = [0, 96], sizes = [1, 32], strides = [1, 1]} : vector<1x128xf32> to vector<1x32xf32>
    %371 = math.tanh %369 : vector<1x32xf32>
    %372 = arith.mulf %370, %371 : vector<1x32xf32>
    %cst_50 = arith.constant dense<0.000000e+00> : vector<1x256xf32>
    %373 = tpu.matmul %372, %3, %cst_50 {dimension_numbers = #tpu.dot_dimension_numbers<[1], [0], [0], [1], [0, 0, 1, 1], [], []>} : vector<1x32xf32>, vector<32x256xf32>, vector<1x256xf32> -> vector<1x256xf32>
    %374 = vector.extract_strided_slice %373 {offsets = [0, 0], sizes = [1, 128], strides = [1, 1]} : vector<1x256xf32> to vector<1x128xf32>
    %375 = vector.extract_strided_slice %373 {offsets = [0, 128], sizes = [1, 128], strides = [1, 1]} : vector<1x256xf32> to vector<1x128xf32>
    %376 = arith.addf %375, %355 : vector<1x128xf32>
    %377 = arith.addf %376, %5 : vector<1x128xf32>
    %378 = arith.negf %377 : vector<1x128xf32>
    %379 = math.exp %378 : vector<1x128xf32>
    %cst_51 = arith.constant 1.000000e+00 : f32
    %380 = vector.broadcast %cst_51 : f32 to vector<1x128xf32>
    %381 = arith.addf %380, %379 : vector<1x128xf32>
    %382 = arith.divf %380, %381 : vector<1x128xf32>
    %383 = math.tanh %377 : vector<1x128xf32>
    %384 = vector.extract_strided_slice %382 {offsets = [0, 32], sizes = [1, 32], strides = [1, 1]} : vector<1x128xf32> to vector<1x32xf32>
    %385 = arith.mulf %384, %351 : vector<1x32xf32>
    %386 = vector.extract_strided_slice %382 {offsets = [0, 0], sizes = [1, 32], strides = [1, 1]} : vector<1x128xf32> to vector<1x32xf32>
    %387 = vector.extract_strided_slice %383 {offsets = [0, 64], sizes = [1, 32], strides = [1, 1]} : vector<1x128xf32> to vector<1x32xf32>
    %388 = arith.mulf %386, %387 : vector<1x32xf32>
    %389 = arith.addf %385, %388 : vector<1x32xf32>
    %390 = vector.extract_strided_slice %382 {offsets = [0, 96], sizes = [1, 32], strides = [1, 1]} : vector<1x128xf32> to vector<1x32xf32>
    %391 = math.tanh %389 : vector<1x32xf32>
    %392 = arith.mulf %390, %391 : vector<1x32xf32>
    %cst_52 = arith.constant dense<0.000000e+00> : vector<1x128xf32>
    %393 = tpu.matmul %392, %4, %cst_52 {dimension_numbers = #tpu.dot_dimension_numbers<[1], [0], [0], [1], [0, 0, 1, 1], [], []>} : vector<1x32xf32>, vector<32x128xf32>, vector<1x128xf32> -> vector<1x128xf32>
    %394 = vector.extract_strided_slice %11 {offsets = [10, 0], sizes = [1, 128], strides = [1, 1]} : vector<16x128xf32> to vector<1x128xf32>
    %395 = arith.addf %394, %374 : vector<1x128xf32>
    %396 = arith.negf %395 : vector<1x128xf32>
    %397 = math.exp %396 : vector<1x128xf32>
    %cst_53 = arith.constant 1.000000e+00 : f32
    %398 = vector.broadcast %cst_53 : f32 to vector<1x128xf32>
    %399 = arith.addf %398, %397 : vector<1x128xf32>
    %400 = arith.divf %398, %399 : vector<1x128xf32>
    %401 = math.tanh %395 : vector<1x128xf32>
    %402 = vector.extract_strided_slice %400 {offsets = [0, 32], sizes = [1, 32], strides = [1, 1]} : vector<1x128xf32> to vector<1x32xf32>
    %403 = arith.mulf %402, %369 : vector<1x32xf32>
    %404 = vector.extract_strided_slice %400 {offsets = [0, 0], sizes = [1, 32], strides = [1, 1]} : vector<1x128xf32> to vector<1x32xf32>
    %405 = vector.extract_strided_slice %401 {offsets = [0, 64], sizes = [1, 32], strides = [1, 1]} : vector<1x128xf32> to vector<1x32xf32>
    %406 = arith.mulf %404, %405 : vector<1x32xf32>
    %407 = arith.addf %403, %406 : vector<1x32xf32>
    %408 = vector.extract_strided_slice %400 {offsets = [0, 96], sizes = [1, 32], strides = [1, 1]} : vector<1x128xf32> to vector<1x32xf32>
    %409 = math.tanh %407 : vector<1x32xf32>
    %410 = arith.mulf %408, %409 : vector<1x32xf32>
    %cst_54 = arith.constant dense<0.000000e+00> : vector<1x256xf32>
    %411 = tpu.matmul %410, %3, %cst_54 {dimension_numbers = #tpu.dot_dimension_numbers<[1], [0], [0], [1], [0, 0, 1, 1], [], []>} : vector<1x32xf32>, vector<32x256xf32>, vector<1x256xf32> -> vector<1x256xf32>
    %412 = vector.extract_strided_slice %411 {offsets = [0, 0], sizes = [1, 128], strides = [1, 1]} : vector<1x256xf32> to vector<1x128xf32>
    %413 = vector.extract_strided_slice %411 {offsets = [0, 128], sizes = [1, 128], strides = [1, 1]} : vector<1x256xf32> to vector<1x128xf32>
    %414 = arith.addf %413, %393 : vector<1x128xf32>
    %415 = arith.addf %414, %5 : vector<1x128xf32>
    %416 = arith.negf %415 : vector<1x128xf32>
    %417 = math.exp %416 : vector<1x128xf32>
    %cst_55 = arith.constant 1.000000e+00 : f32
    %418 = vector.broadcast %cst_55 : f32 to vector<1x128xf32>
    %419 = arith.addf %418, %417 : vector<1x128xf32>
    %420 = arith.divf %418, %419 : vector<1x128xf32>
    %421 = math.tanh %415 : vector<1x128xf32>
    %422 = vector.extract_strided_slice %420 {offsets = [0, 32], sizes = [1, 32], strides = [1, 1]} : vector<1x128xf32> to vector<1x32xf32>
    %423 = arith.mulf %422, %389 : vector<1x32xf32>
    %424 = vector.extract_strided_slice %420 {offsets = [0, 0], sizes = [1, 32], strides = [1, 1]} : vector<1x128xf32> to vector<1x32xf32>
    %425 = vector.extract_strided_slice %421 {offsets = [0, 64], sizes = [1, 32], strides = [1, 1]} : vector<1x128xf32> to vector<1x32xf32>
    %426 = arith.mulf %424, %425 : vector<1x32xf32>
    %427 = arith.addf %423, %426 : vector<1x32xf32>
    %428 = vector.extract_strided_slice %420 {offsets = [0, 96], sizes = [1, 32], strides = [1, 1]} : vector<1x128xf32> to vector<1x32xf32>
    %429 = math.tanh %427 : vector<1x32xf32>
    %430 = arith.mulf %428, %429 : vector<1x32xf32>
    %cst_56 = arith.constant dense<0.000000e+00> : vector<1x128xf32>
    %431 = tpu.matmul %430, %4, %cst_56 {dimension_numbers = #tpu.dot_dimension_numbers<[1], [0], [0], [1], [0, 0, 1, 1], [], []>} : vector<1x32xf32>, vector<32x128xf32>, vector<1x128xf32> -> vector<1x128xf32>
    %432 = vector.extract_strided_slice %11 {offsets = [11, 0], sizes = [1, 128], strides = [1, 1]} : vector<16x128xf32> to vector<1x128xf32>
    %433 = arith.addf %432, %412 : vector<1x128xf32>
    %434 = arith.negf %433 : vector<1x128xf32>
    %435 = math.exp %434 : vector<1x128xf32>
    %cst_57 = arith.constant 1.000000e+00 : f32
    %436 = vector.broadcast %cst_57 : f32 to vector<1x128xf32>
    %437 = arith.addf %436, %435 : vector<1x128xf32>
    %438 = arith.divf %436, %437 : vector<1x128xf32>
    %439 = math.tanh %433 : vector<1x128xf32>
    %440 = vector.extract_strided_slice %438 {offsets = [0, 32], sizes = [1, 32], strides = [1, 1]} : vector<1x128xf32> to vector<1x32xf32>
    %441 = arith.mulf %440, %407 : vector<1x32xf32>
    %442 = vector.extract_strided_slice %438 {offsets = [0, 0], sizes = [1, 32], strides = [1, 1]} : vector<1x128xf32> to vector<1x32xf32>
    %443 = vector.extract_strided_slice %439 {offsets = [0, 64], sizes = [1, 32], strides = [1, 1]} : vector<1x128xf32> to vector<1x32xf32>
    %444 = arith.mulf %442, %443 : vector<1x32xf32>
    %445 = arith.addf %441, %444 : vector<1x32xf32>
    %446 = vector.extract_strided_slice %438 {offsets = [0, 96], sizes = [1, 32], strides = [1, 1]} : vector<1x128xf32> to vector<1x32xf32>
    %447 = math.tanh %445 : vector<1x32xf32>
    %448 = arith.mulf %446, %447 : vector<1x32xf32>
    %cst_58 = arith.constant dense<0.000000e+00> : vector<1x256xf32>
    %449 = tpu.matmul %448, %3, %cst_58 {dimension_numbers = #tpu.dot_dimension_numbers<[1], [0], [0], [1], [0, 0, 1, 1], [], []>} : vector<1x32xf32>, vector<32x256xf32>, vector<1x256xf32> -> vector<1x256xf32>
    %450 = vector.extract_strided_slice %449 {offsets = [0, 0], sizes = [1, 128], strides = [1, 1]} : vector<1x256xf32> to vector<1x128xf32>
    %451 = vector.extract_strided_slice %449 {offsets = [0, 128], sizes = [1, 128], strides = [1, 1]} : vector<1x256xf32> to vector<1x128xf32>
    %452 = arith.addf %451, %431 : vector<1x128xf32>
    %453 = arith.addf %452, %5 : vector<1x128xf32>
    %454 = arith.negf %453 : vector<1x128xf32>
    %455 = math.exp %454 : vector<1x128xf32>
    %cst_59 = arith.constant 1.000000e+00 : f32
    %456 = vector.broadcast %cst_59 : f32 to vector<1x128xf32>
    %457 = arith.addf %456, %455 : vector<1x128xf32>
    %458 = arith.divf %456, %457 : vector<1x128xf32>
    %459 = math.tanh %453 : vector<1x128xf32>
    %460 = vector.extract_strided_slice %458 {offsets = [0, 32], sizes = [1, 32], strides = [1, 1]} : vector<1x128xf32> to vector<1x32xf32>
    %461 = arith.mulf %460, %427 : vector<1x32xf32>
    %462 = vector.extract_strided_slice %458 {offsets = [0, 0], sizes = [1, 32], strides = [1, 1]} : vector<1x128xf32> to vector<1x32xf32>
    %463 = vector.extract_strided_slice %459 {offsets = [0, 64], sizes = [1, 32], strides = [1, 1]} : vector<1x128xf32> to vector<1x32xf32>
    %464 = arith.mulf %462, %463 : vector<1x32xf32>
    %465 = arith.addf %461, %464 : vector<1x32xf32>
    %466 = vector.extract_strided_slice %458 {offsets = [0, 96], sizes = [1, 32], strides = [1, 1]} : vector<1x128xf32> to vector<1x32xf32>
    %467 = math.tanh %465 : vector<1x32xf32>
    %468 = arith.mulf %466, %467 : vector<1x32xf32>
    %cst_60 = arith.constant dense<0.000000e+00> : vector<1x128xf32>
    %469 = tpu.matmul %468, %4, %cst_60 {dimension_numbers = #tpu.dot_dimension_numbers<[1], [0], [0], [1], [0, 0, 1, 1], [], []>} : vector<1x32xf32>, vector<32x128xf32>, vector<1x128xf32> -> vector<1x128xf32>
    %470 = vector.extract_strided_slice %11 {offsets = [12, 0], sizes = [1, 128], strides = [1, 1]} : vector<16x128xf32> to vector<1x128xf32>
    %471 = arith.addf %470, %450 : vector<1x128xf32>
    %472 = arith.negf %471 : vector<1x128xf32>
    %473 = math.exp %472 : vector<1x128xf32>
    %cst_61 = arith.constant 1.000000e+00 : f32
    %474 = vector.broadcast %cst_61 : f32 to vector<1x128xf32>
    %475 = arith.addf %474, %473 : vector<1x128xf32>
    %476 = arith.divf %474, %475 : vector<1x128xf32>
    %477 = math.tanh %471 : vector<1x128xf32>
    %478 = vector.extract_strided_slice %476 {offsets = [0, 32], sizes = [1, 32], strides = [1, 1]} : vector<1x128xf32> to vector<1x32xf32>
    %479 = arith.mulf %478, %445 : vector<1x32xf32>
    %480 = vector.extract_strided_slice %476 {offsets = [0, 0], sizes = [1, 32], strides = [1, 1]} : vector<1x128xf32> to vector<1x32xf32>
    %481 = vector.extract_strided_slice %477 {offsets = [0, 64], sizes = [1, 32], strides = [1, 1]} : vector<1x128xf32> to vector<1x32xf32>
    %482 = arith.mulf %480, %481 : vector<1x32xf32>
    %483 = arith.addf %479, %482 : vector<1x32xf32>
    %484 = vector.extract_strided_slice %476 {offsets = [0, 96], sizes = [1, 32], strides = [1, 1]} : vector<1x128xf32> to vector<1x32xf32>
    %485 = math.tanh %483 : vector<1x32xf32>
    %486 = arith.mulf %484, %485 : vector<1x32xf32>
    %cst_62 = arith.constant dense<0.000000e+00> : vector<1x256xf32>
    %487 = tpu.matmul %486, %3, %cst_62 {dimension_numbers = #tpu.dot_dimension_numbers<[1], [0], [0], [1], [0, 0, 1, 1], [], []>} : vector<1x32xf32>, vector<32x256xf32>, vector<1x256xf32> -> vector<1x256xf32>
    %488 = vector.extract_strided_slice %487 {offsets = [0, 0], sizes = [1, 128], strides = [1, 1]} : vector<1x256xf32> to vector<1x128xf32>
    %489 = vector.extract_strided_slice %487 {offsets = [0, 128], sizes = [1, 128], strides = [1, 1]} : vector<1x256xf32> to vector<1x128xf32>
    %490 = arith.addf %489, %469 : vector<1x128xf32>
    %491 = arith.addf %490, %5 : vector<1x128xf32>
    %492 = arith.negf %491 : vector<1x128xf32>
    %493 = math.exp %492 : vector<1x128xf32>
    %cst_63 = arith.constant 1.000000e+00 : f32
    %494 = vector.broadcast %cst_63 : f32 to vector<1x128xf32>
    %495 = arith.addf %494, %493 : vector<1x128xf32>
    %496 = arith.divf %494, %495 : vector<1x128xf32>
    %497 = math.tanh %491 : vector<1x128xf32>
    %498 = vector.extract_strided_slice %496 {offsets = [0, 32], sizes = [1, 32], strides = [1, 1]} : vector<1x128xf32> to vector<1x32xf32>
    %499 = arith.mulf %498, %465 : vector<1x32xf32>
    %500 = vector.extract_strided_slice %496 {offsets = [0, 0], sizes = [1, 32], strides = [1, 1]} : vector<1x128xf32> to vector<1x32xf32>
    %501 = vector.extract_strided_slice %497 {offsets = [0, 64], sizes = [1, 32], strides = [1, 1]} : vector<1x128xf32> to vector<1x32xf32>
    %502 = arith.mulf %500, %501 : vector<1x32xf32>
    %503 = arith.addf %499, %502 : vector<1x32xf32>
    %504 = vector.extract_strided_slice %496 {offsets = [0, 96], sizes = [1, 32], strides = [1, 1]} : vector<1x128xf32> to vector<1x32xf32>
    %505 = math.tanh %503 : vector<1x32xf32>
    %506 = arith.mulf %504, %505 : vector<1x32xf32>
    %cst_64 = arith.constant dense<0.000000e+00> : vector<1x128xf32>
    %507 = tpu.matmul %506, %4, %cst_64 {dimension_numbers = #tpu.dot_dimension_numbers<[1], [0], [0], [1], [0, 0, 1, 1], [], []>} : vector<1x32xf32>, vector<32x128xf32>, vector<1x128xf32> -> vector<1x128xf32>
    %508 = vector.extract_strided_slice %11 {offsets = [13, 0], sizes = [1, 128], strides = [1, 1]} : vector<16x128xf32> to vector<1x128xf32>
    %509 = arith.addf %508, %488 : vector<1x128xf32>
    %510 = arith.negf %509 : vector<1x128xf32>
    %511 = math.exp %510 : vector<1x128xf32>
    %cst_65 = arith.constant 1.000000e+00 : f32
    %512 = vector.broadcast %cst_65 : f32 to vector<1x128xf32>
    %513 = arith.addf %512, %511 : vector<1x128xf32>
    %514 = arith.divf %512, %513 : vector<1x128xf32>
    %515 = math.tanh %509 : vector<1x128xf32>
    %516 = vector.extract_strided_slice %514 {offsets = [0, 32], sizes = [1, 32], strides = [1, 1]} : vector<1x128xf32> to vector<1x32xf32>
    %517 = arith.mulf %516, %483 : vector<1x32xf32>
    %518 = vector.extract_strided_slice %514 {offsets = [0, 0], sizes = [1, 32], strides = [1, 1]} : vector<1x128xf32> to vector<1x32xf32>
    %519 = vector.extract_strided_slice %515 {offsets = [0, 64], sizes = [1, 32], strides = [1, 1]} : vector<1x128xf32> to vector<1x32xf32>
    %520 = arith.mulf %518, %519 : vector<1x32xf32>
    %521 = arith.addf %517, %520 : vector<1x32xf32>
    %522 = vector.extract_strided_slice %514 {offsets = [0, 96], sizes = [1, 32], strides = [1, 1]} : vector<1x128xf32> to vector<1x32xf32>
    %523 = math.tanh %521 : vector<1x32xf32>
    %524 = arith.mulf %522, %523 : vector<1x32xf32>
    %cst_66 = arith.constant dense<0.000000e+00> : vector<1x256xf32>
    %525 = tpu.matmul %524, %3, %cst_66 {dimension_numbers = #tpu.dot_dimension_numbers<[1], [0], [0], [1], [0, 0, 1, 1], [], []>} : vector<1x32xf32>, vector<32x256xf32>, vector<1x256xf32> -> vector<1x256xf32>
    %526 = vector.extract_strided_slice %525 {offsets = [0, 0], sizes = [1, 128], strides = [1, 1]} : vector<1x256xf32> to vector<1x128xf32>
    %527 = vector.extract_strided_slice %525 {offsets = [0, 128], sizes = [1, 128], strides = [1, 1]} : vector<1x256xf32> to vector<1x128xf32>
    %528 = arith.addf %527, %507 : vector<1x128xf32>
    %529 = arith.addf %528, %5 : vector<1x128xf32>
    %530 = arith.negf %529 : vector<1x128xf32>
    %531 = math.exp %530 : vector<1x128xf32>
    %cst_67 = arith.constant 1.000000e+00 : f32
    %532 = vector.broadcast %cst_67 : f32 to vector<1x128xf32>
    %533 = arith.addf %532, %531 : vector<1x128xf32>
    %534 = arith.divf %532, %533 : vector<1x128xf32>
    %535 = math.tanh %529 : vector<1x128xf32>
    %536 = vector.extract_strided_slice %534 {offsets = [0, 32], sizes = [1, 32], strides = [1, 1]} : vector<1x128xf32> to vector<1x32xf32>
    %537 = arith.mulf %536, %503 : vector<1x32xf32>
    %538 = vector.extract_strided_slice %534 {offsets = [0, 0], sizes = [1, 32], strides = [1, 1]} : vector<1x128xf32> to vector<1x32xf32>
    %539 = vector.extract_strided_slice %535 {offsets = [0, 64], sizes = [1, 32], strides = [1, 1]} : vector<1x128xf32> to vector<1x32xf32>
    %540 = arith.mulf %538, %539 : vector<1x32xf32>
    %541 = arith.addf %537, %540 : vector<1x32xf32>
    %542 = vector.extract_strided_slice %534 {offsets = [0, 96], sizes = [1, 32], strides = [1, 1]} : vector<1x128xf32> to vector<1x32xf32>
    %543 = math.tanh %541 : vector<1x32xf32>
    %544 = arith.mulf %542, %543 : vector<1x32xf32>
    %cst_68 = arith.constant dense<0.000000e+00> : vector<1x128xf32>
    %545 = tpu.matmul %544, %4, %cst_68 {dimension_numbers = #tpu.dot_dimension_numbers<[1], [0], [0], [1], [0, 0, 1, 1], [], []>} : vector<1x32xf32>, vector<32x128xf32>, vector<1x128xf32> -> vector<1x128xf32>
    %546 = vector.extract_strided_slice %11 {offsets = [14, 0], sizes = [1, 128], strides = [1, 1]} : vector<16x128xf32> to vector<1x128xf32>
    %547 = arith.addf %546, %526 : vector<1x128xf32>
    %548 = arith.negf %547 : vector<1x128xf32>
    %549 = math.exp %548 : vector<1x128xf32>
    %cst_69 = arith.constant 1.000000e+00 : f32
    %550 = vector.broadcast %cst_69 : f32 to vector<1x128xf32>
    %551 = arith.addf %550, %549 : vector<1x128xf32>
    %552 = arith.divf %550, %551 : vector<1x128xf32>
    %553 = math.tanh %547 : vector<1x128xf32>
    %554 = vector.extract_strided_slice %552 {offsets = [0, 32], sizes = [1, 32], strides = [1, 1]} : vector<1x128xf32> to vector<1x32xf32>
    %555 = arith.mulf %554, %521 : vector<1x32xf32>
    %556 = vector.extract_strided_slice %552 {offsets = [0, 0], sizes = [1, 32], strides = [1, 1]} : vector<1x128xf32> to vector<1x32xf32>
    %557 = vector.extract_strided_slice %553 {offsets = [0, 64], sizes = [1, 32], strides = [1, 1]} : vector<1x128xf32> to vector<1x32xf32>
    %558 = arith.mulf %556, %557 : vector<1x32xf32>
    %559 = arith.addf %555, %558 : vector<1x32xf32>
    %560 = vector.extract_strided_slice %552 {offsets = [0, 96], sizes = [1, 32], strides = [1, 1]} : vector<1x128xf32> to vector<1x32xf32>
    %561 = math.tanh %559 : vector<1x32xf32>
    %562 = arith.mulf %560, %561 : vector<1x32xf32>
    %cst_70 = arith.constant dense<0.000000e+00> : vector<1x256xf32>
    %563 = tpu.matmul %562, %3, %cst_70 {dimension_numbers = #tpu.dot_dimension_numbers<[1], [0], [0], [1], [0, 0, 1, 1], [], []>} : vector<1x32xf32>, vector<32x256xf32>, vector<1x256xf32> -> vector<1x256xf32>
    %564 = vector.extract_strided_slice %563 {offsets = [0, 0], sizes = [1, 128], strides = [1, 1]} : vector<1x256xf32> to vector<1x128xf32>
    %565 = vector.extract_strided_slice %563 {offsets = [0, 128], sizes = [1, 128], strides = [1, 1]} : vector<1x256xf32> to vector<1x128xf32>
    %566 = arith.addf %565, %545 : vector<1x128xf32>
    %567 = arith.addf %566, %5 : vector<1x128xf32>
    %568 = arith.negf %567 : vector<1x128xf32>
    %569 = math.exp %568 : vector<1x128xf32>
    %cst_71 = arith.constant 1.000000e+00 : f32
    %570 = vector.broadcast %cst_71 : f32 to vector<1x128xf32>
    %571 = arith.addf %570, %569 : vector<1x128xf32>
    %572 = arith.divf %570, %571 : vector<1x128xf32>
    %573 = math.tanh %567 : vector<1x128xf32>
    %574 = vector.extract_strided_slice %572 {offsets = [0, 32], sizes = [1, 32], strides = [1, 1]} : vector<1x128xf32> to vector<1x32xf32>
    %575 = arith.mulf %574, %541 : vector<1x32xf32>
    %576 = vector.extract_strided_slice %572 {offsets = [0, 0], sizes = [1, 32], strides = [1, 1]} : vector<1x128xf32> to vector<1x32xf32>
    %577 = vector.extract_strided_slice %573 {offsets = [0, 64], sizes = [1, 32], strides = [1, 1]} : vector<1x128xf32> to vector<1x32xf32>
    %578 = arith.mulf %576, %577 : vector<1x32xf32>
    %579 = arith.addf %575, %578 : vector<1x32xf32>
    %580 = vector.extract_strided_slice %572 {offsets = [0, 96], sizes = [1, 32], strides = [1, 1]} : vector<1x128xf32> to vector<1x32xf32>
    %581 = math.tanh %579 : vector<1x32xf32>
    %582 = arith.mulf %580, %581 : vector<1x32xf32>
    %cst_72 = arith.constant dense<0.000000e+00> : vector<1x128xf32>
    %583 = tpu.matmul %582, %4, %cst_72 {dimension_numbers = #tpu.dot_dimension_numbers<[1], [0], [0], [1], [0, 0, 1, 1], [], []>} : vector<1x32xf32>, vector<32x128xf32>, vector<1x128xf32> -> vector<1x128xf32>
    %584 = vector.extract_strided_slice %11 {offsets = [15, 0], sizes = [1, 128], strides = [1, 1]} : vector<16x128xf32> to vector<1x128xf32>
    %585 = arith.addf %584, %564 : vector<1x128xf32>
    %586 = arith.negf %585 : vector<1x128xf32>
    %587 = math.exp %586 : vector<1x128xf32>
    %cst_73 = arith.constant 1.000000e+00 : f32
    %588 = vector.broadcast %cst_73 : f32 to vector<1x128xf32>
    %589 = arith.addf %588, %587 : vector<1x128xf32>
    %590 = arith.divf %588, %589 : vector<1x128xf32>
    %591 = math.tanh %585 : vector<1x128xf32>
    %592 = vector.extract_strided_slice %590 {offsets = [0, 32], sizes = [1, 32], strides = [1, 1]} : vector<1x128xf32> to vector<1x32xf32>
    %593 = arith.mulf %592, %559 : vector<1x32xf32>
    %594 = vector.extract_strided_slice %590 {offsets = [0, 0], sizes = [1, 32], strides = [1, 1]} : vector<1x128xf32> to vector<1x32xf32>
    %595 = vector.extract_strided_slice %591 {offsets = [0, 64], sizes = [1, 32], strides = [1, 1]} : vector<1x128xf32> to vector<1x32xf32>
    %596 = arith.mulf %594, %595 : vector<1x32xf32>
    %597 = arith.addf %593, %596 : vector<1x32xf32>
    %598 = vector.extract_strided_slice %590 {offsets = [0, 96], sizes = [1, 32], strides = [1, 1]} : vector<1x128xf32> to vector<1x32xf32>
    %599 = math.tanh %597 : vector<1x32xf32>
    %600 = arith.mulf %598, %599 : vector<1x32xf32>
    %cst_74 = arith.constant dense<0.000000e+00> : vector<1x256xf32>
    %601 = tpu.matmul %600, %3, %cst_74 {dimension_numbers = #tpu.dot_dimension_numbers<[1], [0], [0], [1], [0, 0, 1, 1], [], []>} : vector<1x32xf32>, vector<32x256xf32>, vector<1x256xf32> -> vector<1x256xf32>
    %602 = vector.extract_strided_slice %601 {offsets = [0, 128], sizes = [1, 128], strides = [1, 1]} : vector<1x256xf32> to vector<1x128xf32>
    %603 = arith.addf %602, %583 : vector<1x128xf32>
    %604 = arith.addf %603, %5 : vector<1x128xf32>
    %605 = arith.negf %604 : vector<1x128xf32>
    %606 = math.exp %605 : vector<1x128xf32>
    %cst_75 = arith.constant 1.000000e+00 : f32
    %607 = vector.broadcast %cst_75 : f32 to vector<1x128xf32>
    %608 = arith.addf %607, %606 : vector<1x128xf32>
    %609 = arith.divf %607, %608 : vector<1x128xf32>
    %610 = math.tanh %604 : vector<1x128xf32>
    %611 = vector.extract_strided_slice %609 {offsets = [0, 32], sizes = [1, 32], strides = [1, 1]} : vector<1x128xf32> to vector<1x32xf32>
    %612 = arith.mulf %611, %579 : vector<1x32xf32>
    %613 = vector.extract_strided_slice %609 {offsets = [0, 0], sizes = [1, 32], strides = [1, 1]} : vector<1x128xf32> to vector<1x32xf32>
    %614 = vector.extract_strided_slice %610 {offsets = [0, 64], sizes = [1, 32], strides = [1, 1]} : vector<1x128xf32> to vector<1x32xf32>
    %615 = arith.mulf %613, %614 : vector<1x32xf32>
    %616 = arith.addf %612, %615 : vector<1x32xf32>
    %617 = vector.extract_strided_slice %609 {offsets = [0, 96], sizes = [1, 32], strides = [1, 1]} : vector<1x128xf32> to vector<1x32xf32>
    %618 = math.tanh %616 : vector<1x32xf32>
    %619 = arith.mulf %617, %618 : vector<1x32xf32>
    %620 = arith.mulf %619, %6 : vector<1x32xf32>
    %cst_76 = arith.constant dense<0.000000e+00> : vector<1xf32>
    %621 = vector.multi_reduction <add>, %620, %cst_76 [1] : vector<1x32xf32> to vector<1xf32>
    %622 = vector.shape_cast %621 : vector<1xf32> to vector<1x1xf32>
    %623 = arith.addf %622, %7 : vector<1x1xf32>
    %c0_77 = arith.constant 0 : index
    %c0_78 = arith.constant 0 : index
    %624 = vector.load %arg2[%c0_77, %c0_78] : memref<1x1xf32, #tpu.memory_space<vmem>>, vector<1x1xf32>
    tpu.vector_store %arg2[%c0_77, %c0_78], %623 {strides = array<i32>} : memref<1x1xf32, #tpu.memory_space<vmem>>, vector<1x1xf32>,
    return
  }
}

</mosaic_0001>

<llo_original>
// kernel: cnn_lstm_forward.1
$region0: #{cnn_lstm_forward.1}
  #allocation0 [shape = 'u32[]', space=smem, size = 0x4, offset = 0x4, fixed_abs, tag = 'smem constant byte address 0x4 - core index']
  #allocation1 [shape = 'u32[144,128]{1,0:T(1,128)}', space=vmem, size = 0x12000, scoped, tag = 'internal scratch']
  %s0 = inlined_call_operand.vmem [shape: f32[144,64], index: 0, kind: input, shape index: {}]
  %s1 = inlined_call_operand.vmem [shape: f32[176,256], index: 1, kind: input, shape index: {}]
  %s2 = inlined_call_operand.hbm [shape: f32[1,1], index: 2, kind: output, shape index: {}]
  %s3 = sld [smem:[#allocation0]]
  $region18: #{cnn_lstm_forward.1} parent=0
    _
  %s5 = ssub.s32 1, %s3
  %s6 = scalar_select 0, %s5, %s3
  $region1: #{cnn_lstm_forward.1} parent=0
    #allocation2 [shape = 'u8[512]{0}', space=vmem, size = 0x400, scoped, tag = 'output window, operand 0, single buffered']
    #allocation3 [shape = 's32[1]{0}', space=sflag, size = 0x4, scoped, tag = 'scoped memory for cnn_lstm_forward.1']
    %7 = vsyncpa [#allocation3], 0
    // Predicated region
    $region2: #{cnn_lstm_forward.1} parent=1 // pred_check
      _
    $region3: #{cnn_lstm_forward.1} parent=1 // pred_check_branch
      %9 = sbr.rel (0) target = $region5
    $region4: #{cnn_lstm_forward.1} parent=1 // pred_region
      _
    $region5: #{cnn_lstm_forward.1} parent=1 // pred_fallthru
      _
    // Predicated region
    $region6: #{cnn_lstm_forward.1} parent=1 // pred_check
      _
    $region7: #{cnn_lstm_forward.1} parent=1 // pred_check_branch
      %11 = sbr.rel (0) target = $region9
    $region8: #{cnn_lstm_forward.1} parent=1 // pred_region
      _
    $region9: #{cnn_lstm_forward.1} parent=1 // pred_fallthru
      _
    %v12 = vld [vmem:[%s1] sm:$0xff]
    %v13 = vld [vmem:[%s1 + $0x8] sm:$0xff]
    %v14 = vld [vmem:[%s1 + $0x10] sm:$0xff]
    %v15 = vld [vmem:[%s1 + $0x18] sm:$0xff]
    %v16 = vld [vmem:[%s1 + $0x20] sm:$0xff]
    %v17 = vld [vmem:[%s1 + $0x30] sm:$0xff]
    %v18 = vld [vmem:[%s1 + $0x40] sm:$0xff]
    %v19 = vld [vmem:[%s1 + $0x50] sm:$0xff]
    %v20 = vld [vmem:[%s1 + $0x60] sm:$0xff]
    %v21 = vld [vmem:[%s1 + $0x70] sm:$0xff]
    %v22 = vld [vmem:[%s1 + $0x80] sm:$0xff]
    %v23 = vld [vmem:[%s1 + $0x90] sm:$0xff]
    %v24 = vld [vmem:[%s1 + $0xa0] sm:$0xff]
    %v25 = vld [vmem:[%s1 + $0xb0] sm:$0xff]
    %v26 = vld [vmem:[%s1 + $0xc0] sm:$0xff]
    %v27 = vld [vmem:[%s1 + $0xc8] sm:$0xff]
    %v28 = vld [vmem:[%s1 + $0xd0] sm:$0xff]
    %v29 = vld [vmem:[%s1 + $0xd8] sm:$0xff]
    %v30 = vld [vmem:[%s1 + $0xe0] sm:$0xff]
    %v31 = vld [vmem:[%s1 + $0xe8] sm:$0xff]
    %v32 = vld [vmem:[%s1 + $0xf0] sm:$0xff]
    %v33 = vld [vmem:[%s1 + $0xf8] sm:$0xff]
    %v34 = vld [vmem:[%s1 + $0x100] sm:$0xff]
    %v35 = vld [vmem:[%s1 + $0x110] sm:$0xff]
    %v36 = vld [vmem:[%s1 + $0x120] sm:$0xff]
    %v37 = vld [vmem:[%s1 + $0x130] sm:$0xff]
    %v38 = vld [vmem:[%s1 + $0x140] ss:$0 sm:$0xff]
    %v39 = vld [vmem:[%s1 + $0x150] ss:$0 sm:$0xff]
    %v40 = vld [vmem:[%s0] sm:$0xff]
    %v41 = vld [vmem:[%s0 + $0x8] sm:$0xff]
    %v42 = vld [vmem:[%s0 + $0x10] sm:$0xff]
    %v43 = vld [vmem:[%s0 + $0x18] sm:$0xff]
    %v44 = vld [vmem:[%s0 + $0x20] sm:$0xff]
    %v45 = vld [vmem:[%s0 + $0x28] sm:$0xff]
    %v46 = vld [vmem:[%s0 + $0x30] sm:$0xff]
    %v47 = vld [vmem:[%s0 + $0x38] sm:$0xff]
    %v48 = vld [vmem:[%s0 + $0x40] sm:$0xff]
    %v49 = vld [vmem:[%s0 + $0x48] sm:$0xff]
    %v50 = vld [vmem:[%s0 + $0x50] sm:$0xff]
    %v51 = vld [vmem:[%s0 + $0x58] sm:$0xff]
    %v52 = vld [vmem:[%s0 + $0x60] sm:$0xff]
    %v53 = vld [vmem:[%s0 + $0x68] sm:$0xff]
    %v54 = vld [vmem:[%s0 + $0x70] sm:$0xff]
    %v55 = vld [vmem:[%s0 + $0x78] sm:$0xff]
    %v56 = vld [vmem:[%s0 + $0x80] sm:$0xff]
    %v57 = vld [vmem:[%s0 + $0x88] sm:$0xff]
    %vm58 = vcmask 130048
    %v60 = vsel %vm58, %v13, 0
    %v63 = vsel %vm58, %v15, 0
    %65 = vmatprep.subr.mxu0 0.0
    %66 = vmatpush1.msra.mxu0 %v40
    %67 = vmatprep.subr.mxu0 0.0
    %68 = vmatpush1.msra.mxu0 %v41
    %69 = vmatprep.subr.mxu0 0.0
    %70 = vmatpush1.msra.mxu0 %v42
    %71 = vmatprep.subr.mxu0 0.0
    %72 = vmatpush1.msra.mxu0 %v43
    %73 = vmatprep.subr.mxu0 0.0
    %74 = vmatpush1.msra.mxu0 %v44
    %75 = vmatprep.subr.mxu0 0.0
    %76 = vmatpush1.msra.mxu0 %v45
    %77 = vmatprep.subr.mxu0 0.0
    %78 = vmatpush1.msra.mxu0 %v46
    %79 = vmatprep.subr.mxu0 0.0
    %80 = vmatpush1.msra.mxu0 %v47
    %81 = vmatprep.subr.mxu0 0.0
    %82 = vmatpush1.msra.mxu0 %v48
    %83 = vmatprep.subr.mxu0 0.0
    %84 = vmatpush1.msra.mxu0 %v49
    %85 = vmatprep.subr.mxu0 0.0
    %86 = vmatpush1.msra.mxu0 %v50
    %87 = vmatprep.subr.mxu0 0.0
    %88 = vmatpush1.msra.mxu0 %v51
    %89 = vmatprep.subr.mxu0 0.0
    %90 = vmatpush1.msra.mxu0 %v52
    %91 = vmatprep.subr.mxu0 0.0
    %92 = vmatpush1.msra.mxu0 %v53
    %93 = vmatprep.subr.mxu0 0.0
    %94 = vmatpush1.msra.mxu0 %v54
    %95 = vmatprep.subr.mxu0 0.0
    %96 = vmatpush1.msra.mxu0 %v55
    %97 = vmatprep.subr.mxu0 0.0
    %98 = vmatpush1.msra.mxu0 %v56
    %99 = vmatprep.subr.mxu0 0.0
    %100 = vmatpush1.msra.mxu0 %v57
    %101 = vmatprep.subr.mxu0 0.0
    %102 = vmatpush1.msra.mxu0 0.0
    %103 = vmatprep.subr.mxu0 0.0
    %104 = vmatpush1.msra.mxu0 0.0
    %105 = vmatprep.subr.mxu0 0.0
    %106 = vmatpush1.msra.mxu0 0.0
    %107 = vmatprep.subr.mxu0 0.0
    %108 = vmatpush1.msra.mxu0 0.0
    %109 = vmatprep.subr.mxu0 0.0
    %110 = vmatpush1.msra.mxu0 0.0
    %111 = vmatprep.subr.mxu0 0.0
    %112 = vmatpush1.msra.mxu0 0.0
    %113 = vmatprep.subr.mxu0 0.0
    %114 = vmatpush1.msra.mxu0 0.0
    %115 = vmatprep.subr.mxu0 0.0
    %116 = vmatpush1.msra.mxu0 0.0
    %117 = vmatprep.subr.mxu0 0.0
    %118 = vmatpush1.msra.mxu0 0.0
    %119 = vmatprep.subr.mxu0 0.0
    %120 = vmatpush1.msra.mxu0 0.0
    %121 = vmatprep.subr.mxu0 0.0
    %122 = vmatpush1.msra.mxu0 0.0
    %123 = vmatprep.subr.mxu0 0.0
    %124 = vmatpush1.msra.mxu0 0.0
    %125 = vmatprep.subr.mxu0 0.0
    %126 = vmatpush1.msra.mxu0 0.0
    %127 = vmatprep.subr.mxu0 0.0
    %128 = vmatpush1.msra.mxu0 0.0
    %129 = vmatprep.mubr.f32.mxu0 %v60
    %130 = vmatmul.mubr.f32.gmra.mrb[0].mxu0 %v12
    %v131 = vpop.f32.mrb[0].mxu0
    %v132 = vadd.f32 0.0, %v131
    %v133 = vpop.f32.mrb[0].mxu0
    %134 = vmatprep.mubr.f32.mxu0 %v63
    %135 = vmatmul.mubr.f32.gmra.mrb[0].mxu0 %v14
    %v136 = vpop.f32.mrb[0].mxu0
    %v137 = vadd.f32 0.0, %v136
    %v138 = vpop.f32.mrb[0].mxu0
    %139 = vdwg.mxu0
    %vm140 = vcmask 523264
    %v142 = vsel %vm140, %v132, 0
    %v145 = vsel %vm140, %v137, 0
    %147 = vmatprep.subr.mxu0 0.0
    %148 = vmatpush1.msra.mxu0 %v16
    %149 = vmatprep.subr.mxu0 0.0
    %150 = vmatpush1.msra.mxu0 %v17
    %151 = vmatprep.subr.mxu0 0.0
    %152 = vmatpush1.msra.mxu0 %v18
    %153 = vmatprep.subr.mxu0 0.0
    %154 = vmatpush1.msra.mxu0 %v19
    %155 = vmatprep.subr.mxu0 0.0
    %156 = vmatpush1.msra.mxu0 %v20
    %157 = vmatprep.subr.mxu0 0.0
    %158 = vmatpush1.msra.mxu0 %v21
    %159 = vmatprep.subr.mxu0 0.0
    %160 = vmatpush1.msra.mxu0 %v22
    %161 = vmatprep.subr.mxu0 0.0
    %162 = vmatpush1.msra.mxu0 %v23
    %163 = vmatprep.subr.mxu0 0.0
    %164 = vmatpush1.msra.mxu0 0.0
    %165 = vmatprep.subr.mxu0 0.0
    %166 = vmatpush1.msra.mxu0 0.0
    %167 = vmatprep.subr.mxu0 0.0
    %168 = vmatpush1.msra.mxu0 0.0
    %169 = vmatprep.subr.mxu0 0.0
    %170 = vmatpush1.msra.mxu0 0.0
    %171 = vmatprep.subr.mxu0 0.0
    %172 = vmatpush1.msra.mxu0 0.0
    %173 = vmatprep.subr.mxu0 0.0
    %174 = vmatpush1.msra.mxu0 0.0
    %175 = vmatprep.subr.mxu0 0.0
    %176 = vmatpush1.msra.mxu0 0.0
    %177 = vmatprep.subr.mxu0 0.0
    %178 = vmatpush1.msra.mxu0 0.0
    %179 = vmatprep.subr.mxu0 0.0
    %180 = vmatpush1.msra.mxu0 0.0
    %181 = vmatprep.subr.mxu0 0.0
    %182 = vmatpush1.msra.mxu0 0.0
    %183 = vmatprep.subr.mxu0 0.0
    %184 = vmatpush1.msra.mxu0 0.0
    %185 = vmatprep.subr.mxu0 0.0
    %186 = vmatpush1.msra.mxu0 0.0
    %187 = vmatprep.subr.mxu0 0.0
    %188 = vmatpush1.msra.mxu0 0.0
    %189 = vmatprep.subr.mxu0 0.0
    %190 = vmatpush1.msra.mxu0 0.0
    %191 = vmatprep.subr.mxu0 0.0
    %192 = vmatpush1.msra.mxu0 0.0
    %193 = vmatprep.subr.mxu0 0.0
    %194 = vmatpush1.msra.mxu0 0.0
    %195 = vmatprep.subr.mxu0 0.0
    %196 = vmatpush1.msra.mxu0 0.0
    %197 = vmatprep.subr.mxu0 0.0
    %198 = vmatpush1.msra.mxu0 0.0
    %199 = vmatprep.subr.mxu0 0.0
    %200 = vmatpush1.msra.mxu0 0.0
    %201 = vmatprep.subr.mxu0 0.0
    %202 = vmatpush1.msra.mxu0 0.0
    %203 = vmatprep.subr.mxu0 0.0
    %204 = vmatpush1.msra.mxu0 0.0
    %205 = vmatprep.subr.mxu0 0.0
    %206 = vmatpush1.msra.mxu0 0.0
    %207 = vmatprep.subr.mxu0 0.0
    %208 = vmatpush1.msra.mxu0 0.0
    %209 = vmatprep.subr.mxu0 0.0
    %210 = vmatpush1.msra.mxu0 0.0
    %211 = vmatprep.mubr.f32.mxu0 0.0
    %212 = vmatmul.mubr.f32.gmra.mrb[0].mxu0 %v142
    %v213 = vpop.f32.mrb[0].mxu0
    %v214 = vadd.f32 %v24, %v213
    %v215 = vpop.f32.mrb[0].mxu0
    %216 = vmatprep.mubr.f32.mxu0 0.0
    %217 = vmatmul.mubr.f32.gmra.mrb[0].mxu0 %v145
    %v218 = vpop.f32.mrb[0].mxu0
    %v219 = vadd.f32 %v25, %v218
    %v220 = vpop.f32.mrb[0].mxu0
    %221 = vdwg.mxu0
    %v222 = vadd.f32 %v214, 0.0
    %v223 = vxor.u32 %v222, 2147483648
    %v224 = vmul.f32 %v223, 1.442695
    %v225 = vpow.pop %v224
    %v226 = vadd.f32 %v225, 1.0
    %v227 = vrcp.pop %v226
    %v228 = vmul.f32 1.0, %v227
    %v229 = vtanh.pop %v222
    %v230 = vmul.f32 %v228, 0.0
    %232 = vrot.lane.b32.xlu0 %v229, 64
    %v233 = vpop.permute.xlu0 %232
    %v235 = vmul.f32 %v228, %v233
    %237 = vrot.lane.b32.xlu0 %v235, 32
    %v238 = vpop.permute.xlu0 %237
    %v240 = vadd.f32 %v230, %v238
    %v241 = vtanh.pop %v240
    %243 = vrot.lane.b32.xlu0 %v241, 64
    %v244 = vpop.permute.xlu0 %243
    %v246 = vmul.f32 %v228, %v244
    %248 = vrot.lane.b32.xlu0 %v246, 32
    %v249 = vpop.permute.xlu0 %248
    %vm250 = vcmask 261120
    %v251 = vsel %vm250, %v249, 0
    %253 = vmatprep.subr.mxu0 %v27
    %254 = vmatpush1.msra.mxu0 %v26
    %255 = vmatprep.subr.mxu0 %v29
    %256 = vmatpush1.msra.mxu0 %v28
    %257 = vmatprep.subr.mxu0 %v31
    %258 = vmatpush1.msra.mxu0 %v30
    %259 = vmatprep.subr.mxu0 %v33
    %260 = vmatpush1.msra.mxu0 %v32
    %261 = vmatprep.subr.mxu0 0.0
    %262 = vmatpush1.msra.mxu0 0.0
    %263 = vmatprep.subr.mxu0 0.0
    %264 = vmatpush1.msra.mxu0 0.0
    %265 = vmatprep.subr.mxu0 0.0
    %266 = vmatpush1.msra.mxu0 0.0
    %267 = vmatprep.subr.mxu0 0.0
    %268 = vmatpush1.msra.mxu0 0.0
    %269 = vmatprep.subr.mxu0 0.0
    %270 = vmatpush1.msra.mxu0 0.0
    %271 = vmatprep.subr.mxu0 0.0
    %272 = vmatpush1.msra.mxu0 0.0
    %273 = vmatprep.subr.mxu0 0.0
    %274 = vmatpush1.msra.mxu0 0.0
    %275 = vmatprep.subr.mxu0 0.0
    %276 = vmatpush1.msra.mxu0 0.0
    %277 = vmatprep.subr.mxu0 0.0
    %278 = vmatpush1.msra.mxu0 0.0
    %279 = vmatprep.subr.mxu0 0.0
    %280 = vmatpush1.msra.mxu0 0.0
    %281 = vmatprep.subr.mxu0 0.0
    %282 = vmatpush1.msra.mxu0 0.0
    %283 = vmatprep.subr.mxu0 0.0
    %284 = vmatpush1.msra.mxu0 0.0
    %285 = vmatprep.subr.mxu0 0.0
    %286 = vmatpush1.msra.mxu0 0.0
    %287 = vmatprep.subr.mxu0 0.0
    %288 = vmatpush1.msra.mxu0 0.0
    %289 = vmatprep.subr.mxu0 0.0
    %290 = vmatpush1.msra.mxu0 0.0
    %291 = vmatprep.subr.mxu0 0.0
    %292 = vmatpush1.msra.mxu0 0.0
    %293 = vmatprep.subr.mxu0 0.0
    %294 = vmatpush1.msra.mxu0 0.0
    %295 = vmatprep.subr.mxu0 0.0
    %296 = vmatpush1.msra.mxu0 0.0
    %297 = vmatprep.subr.mxu0 0.0
    %298 = vmatpush1.msra.mxu0 0.0
    %299 = vmatprep.subr.mxu0 0.0
    %300 = vmatpush1.msra.mxu0 0.0
    %301 = vmatprep.subr.mxu0 0.0
    %302 = vmatpush1.msra.mxu0 0.0
    %303 = vmatprep.subr.mxu0 0.0
    %304 = vmatpush1.msra.mxu0 0.0
    %305 = vmatprep.subr.mxu0 0.0
    %306 = vmatpush1.msra.mxu0 0.0
    %307 = vmatprep.subr.mxu0 0.0
    %308 = vmatpush1.msra.mxu0 0.0
    %309 = vmatprep.subr.mxu0 0.0
    %310 = vmatpush1.msra.mxu0 0.0
    %311 = vmatprep.subr.mxu0 0.0
    %312 = vmatpush1.msra.mxu0 0.0
    %313 = vmatprep.subr.mxu0 0.0
    %314 = vmatpush1.msra.mxu0 0.0
    %315 = vmatprep.subr.mxu0 0.0
    %316 = vmatpush1.msra.mxu0 0.0
    %317 = vmatprep.mubr.f32.mxu0 0.0
    %318 = vmatmul.mubr.f32.gmra.mrb[0].mxu0 %v251
    %v319 = vpop.f32.mrb[0].mxu0
    %v320 = vadd.f32 0.0, %v319
    %v321 = vpop.f32.mrb[0].mxu0
    %v322 = vadd.f32 0.0, %v321
    %323 = vdwg.mxu0
    %v324 = vadd.f32 %v322, 0.0
    %v325 = vadd.f32 %v324, %v38
    %v326 = vxor.u32 %v325, 2147483648
    %v327 = vmul.f32 %v326, 1.442695
    %v328 = vpow.pop %v327
    %v329 = vadd.f32 %v328, 1.0
    %v330 = vrcp.pop %v329
    %v331 = vmul.f32 1.0, %v330
    %v332 = vtanh.pop %v325
    %v333 = vmul.f32 %v331, 0.0
    %335 = vrot.lane.b32.xlu0 %v332, 64
    %v336 = vpop.permute.xlu0 %335
    %v338 = vmul.f32 %v331, %v336
    %340 = vrot.lane.b32.xlu0 %v338, 32
    %v341 = vpop.permute.xlu0 %340
    %v343 = vadd.f32 %v333, %v341
    %v344 = vtanh.pop %v343
    %346 = vrot.lane.b32.xlu0 %v344, 64
    %v347 = vpop.permute.xlu0 %346
    %v349 = vmul.f32 %v331, %v347
    %351 = vrot.lane.b32.xlu0 %v349, 32
    %v352 = vpop.permute.xlu0 %351
    %v353 = vsel %vm250, %v352, 0
    %355 = vmatprep.subr.mxu0 0.0
    %356 = vmatpush1.msra.mxu0 %v34
    %357 = vmatprep.subr.mxu0 0.0
    %358 = vmatpush1.msra.mxu0 %v35
    %359 = vmatprep.subr.mxu0 0.0
    %360 = vmatpush1.msra.mxu0 %v36
    %361 = vmatprep.subr.mxu0 0.0
    %362 = vmatpush1.msra.mxu0 %v37
    %363 = vmatprep.subr.mxu0 0.0
    %364 = vmatpush1.msra.mxu0 0.0
    %365 = vmatprep.subr.mxu0 0.0
    %366 = vmatpush1.msra.mxu0 0.0
    %367 = vmatprep.subr.mxu0 0.0
    %368 = vmatpush1.msra.mxu0 0.0
    %369 = vmatprep.subr.mxu0 0.0
    %370 = vmatpush1.msra.mxu0 0.0
    %371 = vmatprep.subr.mxu0 0.0
    %372 = vmatpush1.msra.mxu0 0.0
    %373 = vmatprep.subr.mxu0 0.0
    %374 = vmatpush1.msra.mxu0 0.0
    %375 = vmatprep.subr.mxu0 0.0
    %376 = vmatpush1.msra.mxu0 0.0
    %377 = vmatprep.subr.mxu0 0.0
    %378 = vmatpush1.msra.mxu0 0.0
    %379 = vmatprep.subr.mxu0 0.0
    %380 = vmatpush1.msra.mxu0 0.0
    %381 = vmatprep.subr.mxu0 0.0
    %382 = vmatpush1.msra.mxu0 0.0
    %383 = vmatprep.subr.mxu0 0.0
    %384 = vmatpush1.msra.mxu0 0.0
    %385 = vmatprep.subr.mxu0 0.0
    %386 = vmatpush1.msra.mxu0 0.0
    %387 = vmatprep.subr.mxu0 0.0
    %388 = vmatpush1.msra.mxu0 0.0
    %389 = vmatprep.subr.mxu0 0.0
    %390 = vmatpush1.msra.mxu0 0.0
    %391 = vmatprep.subr.mxu0 0.0
    %392 = vmatpush1.msra.mxu0 0.0
    %393 = vmatprep.subr.mxu0 0.0
    %394 = vmatpush1.msra.mxu0 0.0
    %395 = vmatprep.subr.mxu0 0.0
    %396 = vmatpush1.msra.mxu0 0.0
    %397 = vmatprep.subr.mxu0 0.0
    %398 = vmatpush1.msra.mxu0 0.0
    %399 = vmatprep.subr.mxu0 0.0
    %400 = vmatpush1.msra.mxu0 0.0
    %401 = vmatprep.subr.mxu0 0.0
    %402 = vmatpush1.msra.mxu0 0.0
    %403 = vmatprep.subr.mxu0 0.0
    %404 = vmatpush1.msra.mxu0 0.0
    %405 = vmatprep.subr.mxu0 0.0
    %406 = vmatpush1.msra.mxu0 0.0
    %407 = vmatprep.subr.mxu0 0.0
    %408 = vmatpush1.msra.mxu0 0.0
    %409 = vmatprep.subr.mxu0 0.0
    %410 = vmatpush1.msra.mxu0 0.0
    %411 = vmatprep.subr.mxu0 0.0
    %412 = vmatpush1.msra.mxu0 0.0
    %413 = vmatprep.subr.mxu0 0.0
    %414 = vmatpush1.msra.mxu0 0.0
    %415 = vmatprep.subr.mxu0 0.0
    %416 = vmatpush1.msra.mxu0 0.0
    %417 = vmatprep.subr.mxu0 0.0
    %418 = vmatpush1.msra.mxu0 0.0
    %419 = vmatprep.mubr.f32.mxu0 0.0
    %420 = vmatmul.mubr.f32.gmra.mrb[0].mxu0 %v353
    %v421 = vpop.f32.mrb[0].mxu0
    %v422 = vadd.f32 0.0, %v421
    %v423 = vpop.f32.mrb[0].mxu0
    %424 = vdwg.mxu0
    %v426 = vrot.slane %v320, 7
    %v428 = vadd.f32 %v214, %v426
    %v429 = vxor.u32 %v428, 2147483648
    %v430 = vmul.f32 %v429, 1.442695
    %v431 = vpow.pop %v430
    %v432 = vadd.f32 %v431, 1.0
    %v433 = vrcp.pop %v432
    %v434 = vmul.f32 1.0, %v433
    %v435 = vtanh.pop %v428
    %v437 = vrot.slane %v240, 7
    %v439 = vmul.f32 %v434, %v437
    %441 = vrot.lane.b32.xlu0 %v435, 64
    %v442 = vpop.permute.xlu0 %441
    %v444 = vmul.f32 %v434, %v442
    %446 = vrot.lane.b32.xlu0 %v444, 32
    %v447 = vpop.permute.xlu0 %446
    %v449 = vadd.f32 %v439, %v447
    %v450 = vtanh.pop %v449
    %452 = vrot.lane.b32.xlu0 %v450, 64
    %v453 = vpop.permute.xlu0 %452
    %v455 = vmul.f32 %v434, %v453
    %v457 = vrot.slane %v455, 1
    %458 = vrot.lane.b32.xlu0 %v457, 32
    %v459 = vpop.permute.xlu0 %458
    %v460 = vsel %vm250, %v459, 0
    %462 = vmatprep.subr.mxu0 %v27
    %463 = vmatpush1.msra.mxu0 %v26
    %464 = vmatprep.subr.mxu0 %v29
    %465 = vmatpush1.msra.mxu0 %v28
    %466 = vmatprep.subr.mxu0 %v31
    %467 = vmatpush1.msra.mxu0 %v30
    %468 = vmatprep.subr.mxu0 %v33
    %469 = vmatpush1.msra.mxu0 %v32
    %470 = vmatprep.subr.mxu0 0.0
    %471 = vmatpush1.msra.mxu0 0.0
    %472 = vmatprep.subr.mxu0 0.0
    %473 = vmatpush1.msra.mxu0 0.0
    %474 = vmatprep.subr.mxu0 0.0
    %475 = vmatpush1.msra.mxu0 0.0
    %476 = vmatprep.subr.mxu0 0.0
    %477 = vmatpush1.msra.mxu0 0.0
    %478 = vmatprep.subr.mxu0 0.0
    %479 = vmatpush1.msra.mxu0 0.0
    %480 = vmatprep.subr.mxu0 0.0
    %481 = vmatpush1.msra.mxu0 0.0
    %482 = vmatprep.subr.mxu0 0.0
    %483 = vmatpush1.msra.mxu0 0.0
    %484 = vmatprep.subr.mxu0 0.0
    %485 = vmatpush1.msra.mxu0 0.0
    %486 = vmatprep.subr.mxu0 0.0
    %487 = vmatpush1.msra.mxu0 0.0
    %488 = vmatprep.subr.mxu0 0.0
    %489 = vmatpush1.msra.mxu0 0.0
    %490 = vmatprep.subr.mxu0 0.0
    %491 = vmatpush1.msra.mxu0 0.0
    %492 = vmatprep.subr.mxu0 0.0
    %493 = vmatpush1.msra.mxu0 0.0
    %494 = vmatprep.subr.mxu0 0.0
    %495 = vmatpush1.msra.mxu0 0.0
    %496 = vmatprep.subr.mxu0 0.0
    %497 = vmatpush1.msra.mxu0 0.0
    %498 = vmatprep.subr.mxu0 0.0
    %499 = vmatpush1.msra.mxu0 0.0
    %500 = vmatprep.subr.mxu0 0.0
    %501 = vmatpush1.msra.mxu0 0.0
    %502 = vmatprep.subr.mxu0 0.0
    %503 = vmatpush1.msra.mxu0 0.0
    %504 = vmatprep.subr.mxu0 0.0
    %505 = vmatpush1.msra.mxu0 0.0
    %506 = vmatprep.subr.mxu0 0.0
    %507 = vmatpush1.msra.mxu0 0.0
    %508 = vmatprep.subr.mxu0 0.0
    %509 = vmatpush1.msra.mxu0 0.0
    %510 = vmatprep.subr.mxu0 0.0
    %511 = vmatpush1.msra.mxu0 0.0
    %512 = vmatprep.subr.mxu0 0.0
    %513 = vmatpush1.msra.mxu0 0.0
    %514 = vmatprep.subr.mxu0 0.0
    %515 = vmatpush1.msra.mxu0 0.0
    %516 = vmatprep.subr.mxu0 0.0
    %517 = vmatpush1.msra.mxu0 0.0
    %518 = vmatprep.subr.mxu0 0.0
    %519 = vmatpush1.msra.mxu0 0.0
    %520 = vmatprep.subr.mxu0 0.0
    %521 = vmatpush1.msra.mxu0 0.0
    %522 = vmatprep.subr.mxu0 0.0
    %523 = vmatpush1.msra.mxu0 0.0
    %524 = vmatprep.subr.mxu0 0.0
    %525 = vmatpush1.msra.mxu0 0.0
    %526 = vmatprep.mubr.f32.mxu0 0.0
    %527 = vmatmul.mubr.f32.gmra.mrb[0].mxu0 %v460
    %v528 = vpop.f32.mrb[0].mxu0
    %v529 = vadd.f32 0.0, %v528
    %v530 = vpop.f32.mrb[0].mxu0
    %v531 = vadd.f32 0.0, %v530
    %532 = vdwg.mxu0
    %v533 = vadd.f32 %v531, %v422
    %v534 = vadd.f32 %v533, %v38
    %v535 = vxor.u32 %v534, 2147483648
    %v536 = vmul.f32 %v535, 1.442695
    %v537 = vpow.pop %v536
    %v538 = vadd.f32 %v537, 1.0
    %v539 = vrcp.pop %v538
    %v540 = vmul.f32 1.0, %v539
    %v541 = vtanh.pop %v534
    %v542 = vmul.f32 %v540, %v343
    %544 = vrot.lane.b32.xlu0 %v541, 64
    %v545 = vpop.permute.xlu0 %544
    %v547 = vmul.f32 %v540, %v545
    %549 = vrot.lane.b32.xlu0 %v547, 32
    %v550 = vpop.permute.xlu0 %549
    %v552 = vadd.f32 %v542, %v550
    %v553 = vtanh.pop %v552
    %555 = vrot.lane.b32.xlu0 %v553, 64
    %v556 = vpop.permute.xlu0 %555
    %v558 = vmul.f32 %v540, %v556
    %560 = vrot.lane.b32.xlu0 %v558, 32
    %v561 = vpop.permute.xlu0 %560
    %v562 = vsel %vm250, %v561, 0
    %564 = vmatprep.subr.mxu0 0.0
    %565 = vmatpush1.msra.mxu0 %v34
    %566 = vmatprep.subr.mxu0 0.0
    %567 = vmatpush1.msra.mxu0 %v35
    %568 = vmatprep.subr.mxu0 0.0
    %569 = vmatpush1.msra.mxu0 %v36
    %570 = vmatprep.subr.mxu0 0.0
    %571 = vmatpush1.msra.mxu0 %v37
    %572 = vmatprep.subr.mxu0 0.0
    %573 = vmatpush1.msra.mxu0 0.0
    %574 = vmatprep.subr.mxu0 0.0
    %575 = vmatpush1.msra.mxu0 0.0
    %576 = vmatprep.subr.mxu0 0.0
    %577 = vmatpush1.msra.mxu0 0.0
    %578 = vmatprep.subr.mxu0 0.0
    %579 = vmatpush1.msra.mxu0 0.0
    %580 = vmatprep.subr.mxu0 0.0
    %581 = vmatpush1.msra.mxu0 0.0
    %582 = vmatprep.subr.mxu0 0.0
    %583 = vmatpush1.msra.mxu0 0.0
    %584 = vmatprep.subr.mxu0 0.0
    %585 = vmatpush1.msra.mxu0 0.0
    %586 = vmatprep.subr.mxu0 0.0
    %587 = vmatpush1.msra.mxu0 0.0
    %588 = vmatprep.subr.mxu0 0.0
    %589 = vmatpush1.msra.mxu0 0.0
    %590 = vmatprep.subr.mxu0 0.0
    %591 = vmatpush1.msra.mxu0 0.0
    %592 = vmatprep.subr.mxu0 0.0
    %593 = vmatpush1.msra.mxu0 0.0
    %594 = vmatprep.subr.mxu0 0.0
    %595 = vmatpush1.msra.mxu0 0.0
    %596 = vmatprep.subr.mxu0 0.0
    %597 = vmatpush1.msra.mxu0 0.0
    %598 = vmatprep.subr.mxu0 0.0
    %599 = vmatpush1.msra.mxu0 0.0
    %600 = vmatprep.subr.mxu0 0.0
    %601 = vmatpush1.msra.mxu0 0.0
    %602 = vmatprep.subr.mxu0 0.0
    %603 = vmatpush1.msra.mxu0 0.0
    %604 = vmatprep.subr.mxu0 0.0
    %605 = vmatpush1.msra.mxu0 0.0
    %606 = vmatprep.subr.mxu0 0.0
    %607 = vmatpush1.msra.mxu0 0.0
    %608 = vmatprep.subr.mxu0 0.0
    %609 = vmatpush1.msra.mxu0 0.0
    %610 = vmatprep.subr.mxu0 0.0
    %611 = vmatpush1.msra.mxu0 0.0
    %612 = vmatprep.subr.mxu0 0.0
    %613 = vmatpush1.msra.mxu0 0.0
    %614 = vmatprep.subr.mxu0 0.0
    %615 = vmatpush1.msra.mxu0 0.0
    %616 = vmatprep.subr.mxu0 0.0
    %617 = vmatpush1.msra.mxu0 0.0
    %618 = vmatprep.subr.mxu0 0.0
    %619 = vmatpush1.msra.mxu0 0.0
    %620 = vmatprep.subr.mxu0 0.0
    %621 = vmatpush1.msra.mxu0 0.0
    %622 = vmatprep.subr.mxu0 0.0
    %623 = vmatpush1.msra.mxu0 0.0
    %624 = vmatprep.subr.mxu0 0.0
    %625 = vmatpush1.msra.mxu0 0.0
    %626 = vmatprep.subr.mxu0 0.0
    %627 = vmatpush1.msra.mxu0 0.0
    %628 = vmatprep.mubr.f32.mxu0 0.0
    %629 = vmatmul.mubr.f32.gmra.mrb[0].mxu0 %v562
    %v630 = vpop.f32.mrb[0].mxu0
    %v631 = vadd.f32 0.0, %v630
    %v632 = vpop.f32.mrb[0].mxu0
    %633 = vdwg.mxu0
    %v635 = vrot.slane %v529, 6
    %v637 = vadd.f32 %v214, %v635
    %v638 = vxor.u32 %v637, 2147483648
    %v639 = vmul.f32 %v638, 1.442695
    %v640 = vpow.pop %v639
    %v641 = vadd.f32 %v640, 1.0
    %v642 = vrcp.pop %v641
    %v643 = vmul.f32 1.0, %v642
    %v644 = vtanh.pop %v637
    %v646 = vrot.slane %v449, 7
    %v648 = vmul.f32 %v643, %v646
    %650 = vrot.lane.b32.xlu0 %v644, 64
    %v651 = vpop.permute.xlu0 %650
    %v653 = vmul.f32 %v643, %v651
    %655 = vrot.lane.b32.xlu0 %v653, 32
    %v656 = vpop.permute.xlu0 %655
    %v658 = vadd.f32 %v648, %v656
    %v659 = vtanh.pop %v658
    %661 = vrot.lane.b32.xlu0 %v659, 64
    %v662 = vpop.permute.xlu0 %661
    %v664 = vmul.f32 %v643, %v662
    %v666 = vrot.slane %v664, 2
    %667 = vrot.lane.b32.xlu0 %v666, 32
    %v668 = vpop.permute.xlu0 %667
    %v669 = vsel %vm250, %v668, 0
    %671 = vmatprep.subr.mxu0 %v27
    %672 = vmatpush1.msra.mxu0 %v26
    %673 = vmatprep.subr.mxu0 %v29
    %674 = vmatpush1.msra.mxu0 %v28
    %675 = vmatprep.subr.mxu0 %v31
    %676 = vmatpush1.msra.mxu0 %v30
    %677 = vmatprep.subr.mxu0 %v33
    %678 = vmatpush1.msra.mxu0 %v32
    %679 = vmatprep.subr.mxu0 0.0
    %680 = vmatpush1.msra.mxu0 0.0
    %681 = vmatprep.subr.mxu0 0.0
    %682 = vmatpush1.msra.mxu0 0.0
    %683 = vmatprep.subr.mxu0 0.0
    %684 = vmatpush1.msra.mxu0 0.0
    %685 = vmatprep.subr.mxu0 0.0
    %686 = vmatpush1.msra.mxu0 0.0
    %687 = vmatprep.subr.mxu0 0.0
    %688 = vmatpush1.msra.mxu0 0.0
    %689 = vmatprep.subr.mxu0 0.0
    %690 = vmatpush1.msra.mxu0 0.0
    %691 = vmatprep.subr.mxu0 0.0
    %692 = vmatpush1.msra.mxu0 0.0
    %693 = vmatprep.subr.mxu0 0.0
    %694 = vmatpush1.msra.mxu0 0.0
    %695 = vmatprep.subr.mxu0 0.0
    %696 = vmatpush1.msra.mxu0 0.0
    %697 = vmatprep.subr.mxu0 0.0
    %698 = vmatpush1.msra.mxu0 0.0
    %699 = vmatprep.subr.mxu0 0.0
    %700 = vmatpush1.msra.mxu0 0.0
    %701 = vmatprep.subr.mxu0 0.0
    %702 = vmatpush1.msra.mxu0 0.0
    %703 = vmatprep.subr.mxu0 0.0
    %704 = vmatpush1.msra.mxu0 0.0
    %705 = vmatprep.subr.mxu0 0.0
    %706 = vmatpush1.msra.mxu0 0.0
    %707 = vmatprep.subr.mxu0 0.0
    %708 = vmatpush1.msra.mxu0 0.0
    %709 = vmatprep.subr.mxu0 0.0
    %710 = vmatpush1.msra.mxu0 0.0
    %711 = vmatprep.subr.mxu0 0.0
    %712 = vmatpush1.msra.mxu0 0.0
    %713 = vmatprep.subr.mxu0 0.0
    %714 = vmatpush1.msra.mxu0 0.0
    %715 = vmatprep.subr.mxu0 0.0
    %716 = vmatpush1.msra.mxu0 0.0
    %717 = vmatprep.subr.mxu0 0.0
    %718 = vmatpush1.msra.mxu0 0.0
    %719 = vmatprep.subr.mxu0 0.0
    %720 = vmatpush1.msra.mxu0 0.0
    %721 = vmatprep.subr.mxu0 0.0
    %722 = vmatpush1.msra.mxu0 0.0
    %723 = vmatprep.subr.mxu0 0.0
    %724 = vmatpush1.msra.mxu0 0.0
    %725 = vmatprep.subr.mxu0 0.0
    %726 = vmatpush1.msra.mxu0 0.0
    %727 = vmatprep.subr.mxu0 0.0
    %728 = vmatpush1.msra.mxu0 0.0
    %729 = vmatprep.subr.mxu0 0.0
    %730 = vmatpush1.msra.mxu0 0.0
    %731 = vmatprep.subr.mxu0 0.0
    %732 = vmatpush1.msra.mxu0 0.0
    %733 = vmatprep.subr.mxu0 0.0
    %734 = vmatpush1.msra.mxu0 0.0
    %735 = vmatprep.mubr.f32.mxu0 0.0
    %736 = vmatmul.mubr.f32.gmra.mrb[0].mxu0 %v669
    %v737 = vpop.f32.mrb[0].mxu0
    %v738 = vadd.f32 0.0, %v737
    %v739 = vpop.f32.mrb[0].mxu0
    %v740 = vadd.f32 0.0, %v739
    %741 = vdwg.mxu0
    %v742 = vadd.f32 %v740, %v631
    %v743 = vadd.f32 %v742, %v38
    %v744 = vxor.u32 %v743, 2147483648
    %v745 = vmul.f32 %v744, 1.442695
    %v746 = vpow.pop %v745
    %v747 = vadd.f32 %v746, 1.0
    %v748 = vrcp.pop %v747
    %v749 = vmul.f32 1.0, %v748
    %v750 = vtanh.pop %v743
    %v751 = vmul.f32 %v749, %v552
    %753 = vrot.lane.b32.xlu0 %v750, 64
    %v754 = vpop.permute.xlu0 %753
    %v756 = vmul.f32 %v749, %v754
    %758 = vrot.lane.b32.xlu0 %v756, 32
    %v759 = vpop.permute.xlu0 %758
    %v761 = vadd.f32 %v751, %v759
    %v762 = vtanh.pop %v761
    %764 = vrot.lane.b32.xlu0 %v762, 64
    %v765 = vpop.permute.xlu0 %764
    %v767 = vmul.f32 %v749, %v765
    %769 = vrot.lane.b32.xlu0 %v767, 32
    %v770 = vpop.permute.xlu0 %769
    %v771 = vsel %vm250, %v770, 0
    %773 = vmatprep.subr.mxu0 0.0
    %774 = vmatpush1.msra.mxu0 %v34
    %775 = vmatprep.subr.mxu0 0.0
    %776 = vmatpush1.msra.mxu0 %v35
    %777 = vmatprep.subr.mxu0 0.0
    %778 = vmatpush1.msra.mxu0 %v36
    %779 = vmatprep.subr.mxu0 0.0
    %780 = vmatpush1.msra.mxu0 %v37
    %781 = vmatprep.subr.mxu0 0.0
    %782 = vmatpush1.msra.mxu0 0.0
    %783 = vmatprep.subr.mxu0 0.0
    %784 = vmatpush1.msra.mxu0 0.0
    %785 = vmatprep.subr.mxu0 0.0
    %786 = vmatpush1.msra.mxu0 0.0
    %787 = vmatprep.subr.mxu0 0.0
    %788 = vmatpush1.msra.mxu0 0.0
    %789 = vmatprep.subr.mxu0 0.0
    %790 = vmatpush1.msra.mxu0 0.0
    %791 = vmatprep.subr.mxu0 0.0
    %792 = vmatpush1.msra.mxu0 0.0
    %793 = vmatprep.subr.mxu0 0.0
    %794 = vmatpush1.msra.mxu0 0.0
    %795 = vmatprep.subr.mxu0 0.0
    %796 = vmatpush1.msra.mxu0 0.0
    %797 = vmatprep.subr.mxu0 0.0
    %798 = vmatpush1.msra.mxu0 0.0
    %799 = vmatprep.subr.mxu0 0.0
    %800 = vmatpush1.msra.mxu0 0.0
    %801 = vmatprep.subr.mxu0 0.0
    %802 = vmatpush1.msra.mxu0 0.0
    %803 = vmatprep.subr.mxu0 0.0
    %804 = vmatpush1.msra.mxu0 0.0
    %805 = vmatprep.subr.mxu0 0.0
    %806 = vmatpush1.msra.mxu0 0.0
    %807 = vmatprep.subr.mxu0 0.0
    %808 = vmatpush1.msra.mxu0 0.0
    %809 = vmatprep.subr.mxu0 0.0
    %810 = vmatpush1.msra.mxu0 0.0
    %811 = vmatprep.subr.mxu0 0.0
    %812 = vmatpush1.msra.mxu0 0.0
    %813 = vmatprep.subr.mxu0 0.0
    %814 = vmatpush1.msra.mxu0 0.0
    %815 = vmatprep.subr.mxu0 0.0
    %816 = vmatpush1.msra.mxu0 0.0
    %817 = vmatprep.subr.mxu0 0.0
    %818 = vmatpush1.msra.mxu0 0.0
    %819 = vmatprep.subr.mxu0 0.0
    %820 = vmatpush1.msra.mxu0 0.0
    %821 = vmatprep.subr.mxu0 0.0
    %822 = vmatpush1.msra.mxu0 0.0
    %823 = vmatprep.subr.mxu0 0.0
    %824 = vmatpush1.msra.mxu0 0.0
    %825 = vmatprep.subr.mxu0 0.0
    %826 = vmatpush1.msra.mxu0 0.0
    %827 = vmatprep.subr.mxu0 0.0
    %828 = vmatpush1.msra.mxu0 0.0
    %829 = vmatprep.subr.mxu0 0.0
    %830 = vmatpush1.msra.mxu0 0.0
    %831 = vmatprep.subr.mxu0 0.0
    %832 = vmatpush1.msra.mxu0 0.0
    %833 = vmatprep.subr.mxu0 0.0
    %834 = vmatpush1.msra.mxu0 0.0
    %835 = vmatprep.subr.mxu0 0.0
    %836 = vmatpush1.msra.mxu0 0.0
    %837 = vmatprep.mubr.f32.mxu0 0.0
    %838 = vmatmul.mubr.f32.gmra.mrb[0].mxu0 %v771
    %v839 = vpop.f32.mrb[0].mxu0
    %v840 = vadd.f32 0.0, %v839
    %v841 = vpop.f32.mrb[0].mxu0
    %842 = vdwg.mxu0
    %v844 = vrot.slane %v738, 5
    %v846 = vadd.f32 %v214, %v844
    %v847 = vxor.u32 %v846, 2147483648
    %v848 = vmul.f32 %v847, 1.442695
    %v849 = vpow.pop %v848
    %v850 = vadd.f32 %v849, 1.0
    %v851 = vrcp.pop %v850
    %v852 = vmul.f32 1.0, %v851
    %v853 = vtanh.pop %v846
    %v855 = vrot.slane %v658, 7
    %v857 = vmul.f32 %v852, %v855
    %859 = vrot.lane.b32.xlu0 %v853, 64
    %v860 = vpop.permute.xlu0 %859
    %v862 = vmul.f32 %v852, %v860
    %864 = vrot.lane.b32.xlu0 %v862, 32
    %v865 = vpop.permute.xlu0 %864
    %v867 = vadd.f32 %v857, %v865
    %v868 = vtanh.pop %v867
    %870 = vrot.lane.b32.xlu0 %v868, 64
    %v871 = vpop.permute.xlu0 %870
    %v873 = vmul.f32 %v852, %v871
    %v875 = vrot.slane %v873, 3
    %876 = vrot.lane.b32.xlu0 %v875, 32
    %v877 = vpop.permute.xlu0 %876
    %v878 = vsel %vm250, %v877, 0
    %880 = vmatprep.subr.mxu0 %v27
    %881 = vmatpush1.msra.mxu0 %v26
    %882 = vmatprep.subr.mxu0 %v29
    %883 = vmatpush1.msra.mxu0 %v28
    %884 = vmatprep.subr.mxu0 %v31
    %885 = vmatpush1.msra.mxu0 %v30
    %886 = vmatprep.subr.mxu0 %v33
    %887 = vmatpush1.msra.mxu0 %v32
    %888 = vmatprep.subr.mxu0 0.0
    %889 = vmatpush1.msra.mxu0 0.0
    %890 = vmatprep.subr.mxu0 0.0
    %891 = vmatpush1.msra.mxu0 0.0
    %892 = vmatprep.subr.mxu0 0.0
    %893 = vmatpush1.msra.mxu0 0.0
    %894 = vmatprep.subr.mxu0 0.0
    %895 = vmatpush1.msra.mxu0 0.0
    %896 = vmatprep.subr.mxu0 0.0
    %897 = vmatpush1.msra.mxu0 0.0
    %898 = vmatprep.subr.mxu0 0.0
    %899 = vmatpush1.msra.mxu0 0.0
    %900 = vmatprep.subr.mxu0 0.0
    %901 = vmatpush1.msra.mxu0 0.0
    %902 = vmatprep.subr.mxu0 0.0
    %903 = vmatpush1.msra.mxu0 0.0
    %904 = vmatprep.subr.mxu0 0.0
    %905 = vmatpush1.msra.mxu0 0.0
    %906 = vmatprep.subr.mxu0 0.0
    %907 = vmatpush1.msra.mxu0 0.0
    %908 = vmatprep.subr.mxu0 0.0
    %909 = vmatpush1.msra.mxu0 0.0
    %910 = vmatprep.subr.mxu0 0.0
    %911 = vmatpush1.msra.mxu0 0.0
    %912 = vmatprep.subr.mxu0 0.0
    %913 = vmatpush1.msra.mxu0 0.0
    %914 = vmatprep.subr.mxu0 0.0
    %915 = vmatpush1.msra.mxu0 0.0
    %916 = vmatprep.subr.mxu0 0.0
    %917 = vmatpush1.msra.mxu0 0.0
    %918 = vmatprep.subr.mxu0 0.0
    %919 = vmatpush1.msra.mxu0 0.0
    %920 = vmatprep.subr.mxu0 0.0
    %921 = vmatpush1.msra.mxu0 0.0
    %922 = vmatprep.subr.mxu0 0.0
    %923 = vmatpush1.msra.mxu0 0.0
    %924 = vmatprep.subr.mxu0 0.0
    %925 = vmatpush1.msra.mxu0 0.0
    %926 = vmatprep.subr.mxu0 0.0
    %927 = vmatpush1.msra.mxu0 0.0
    %928 = vmatprep.subr.mxu0 0.0
    %929 = vmatpush1.msra.mxu0 0.0
    %930 = vmatprep.subr.mxu0 0.0
    %931 = vmatpush1.msra.mxu0 0.0
    %932 = vmatprep.subr.mxu0 0.0
    %933 = vmatpush1.msra.mxu0 0.0
    %934 = vmatprep.subr.mxu0 0.0
    %935 = vmatpush1.msra.mxu0 0.0
    %936 = vmatprep.subr.mxu0 0.0
    %937 = vmatpush1.msra.mxu0 0.0
    %938 = vmatprep.subr.mxu0 0.0
    %939 = vmatpush1.msra.mxu0 0.0
    %940 = vmatprep.subr.mxu0 0.0
    %941 = vmatpush1.msra.mxu0 0.0
    %942 = vmatprep.subr.mxu0 0.0
    %943 = vmatpush1.msra.mxu0 0.0
    %944 = vmatprep.mubr.f32.mxu0 0.0
    %945 = vmatmul.mubr.f32.gmra.mrb[0].mxu0 %v878
    %v946 = vpop.f32.mrb[0].mxu0
    %v947 = vadd.f32 0.0, %v946
    %v948 = vpop.f32.mrb[0].mxu0
    %v949 = vadd.f32 0.0, %v948
    %950 = vdwg.mxu0
    %v951 = vadd.f32 %v949, %v840
    %v952 = vadd.f32 %v951, %v38
    %v953 = vxor.u32 %v952, 2147483648
    %v954 = vmul.f32 %v953, 1.442695
    %v955 = vpow.pop %v954
    %v956 = vadd.f32 %v955, 1.0
    %v957 = vrcp.pop %v956
    %v958 = vmul.f32 1.0, %v957
    %v959 = vtanh.pop %v952
    %v960 = vmul.f32 %v958, %v761
    %962 = vrot.lane.b32.xlu0 %v959, 64
    %v963 = vpop.permute.xlu0 %962
    %v965 = vmul.f32 %v958, %v963
    %967 = vrot.lane.b32.xlu0 %v965, 32
    %v968 = vpop.permute.xlu0 %967
    %v970 = vadd.f32 %v960, %v968
    %v971 = vtanh.pop %v970
    %973 = vrot.lane.b32.xlu0 %v971, 64
    %v974 = vpop.permute.xlu0 %973
    %v976 = vmul.f32 %v958, %v974
    %978 = vrot.lane.b32.xlu0 %v976, 32
    %v979 = vpop.permute.xlu0 %978
    %v980 = vsel %vm250, %v979, 0
    %982 = vmatprep.subr.mxu0 0.0
    %983 = vmatpush1.msra.mxu0 %v34
    %984 = vmatprep.subr.mxu0 0.0
    %985 = vmatpush1.msra.mxu0 %v35
    %986 = vmatprep.subr.mxu0 0.0
    %987 = vmatpush1.msra.mxu0 %v36
    %988 = vmatprep.subr.mxu0 0.0
    %989 = vmatpush1.msra.mxu0 %v37
    %990 = vmatprep.subr.mxu0 0.0
    %991 = vmatpush1.msra.mxu0 0.0
    %992 = vmatprep.subr.mxu0 0.0
    %993 = vmatpush1.msra.mxu0 0.0
    %994 = vmatprep.subr.mxu0 0.0
    %995 = vmatpush1.msra.mxu0 0.0
    %996 = vmatprep.subr.mxu0 0.0
    %997 = vmatpush1.msra.mxu0 0.0
    %998 = vmatprep.subr.mxu0 0.0
    %999 = vmatpush1.msra.mxu0 0.0
    %1000 = vmatprep.subr.mxu0 0.0
    %1001 = vmatpush1.msra.mxu0 0.0
    %1002 = vmatprep.subr.mxu0 0.0
    %1003 = vmatpush1.msra.mxu0 0.0
    %1004 = vmatprep.subr.mxu0 0.0
    %1005 = vmatpush1.msra.mxu0 0.0
    %1006 = vmatprep.subr.mxu0 0.0
    %1007 = vmatpush1.msra.mxu0 0.0
    %1008 = vmatprep.subr.mxu0 0.0
    %1009 = vmatpush1.msra.mxu0 0.0
    %1010 = vmatprep.subr.mxu0 0.0
    %1011 = vmatpush1.msra.mxu0 0.0
    %1012 = vmatprep.subr.mxu0 0.0
    %1013 = vmatpush1.msra.mxu0 0.0
    %1014 = vmatprep.subr.mxu0 0.0
    %1015 = vmatpush1.msra.mxu0 0.0
    %1016 = vmatprep.subr.mxu0 0.0
    %1017 = vmatpush1.msra.mxu0 0.0
    %1018 = vmatprep.subr.mxu0 0.0
    %1019 = vmatpush1.msra.mxu0 0.0
    %1020 = vmatprep.subr.mxu0 0.0
    %1021 = vmatpush1.msra.mxu0 0.0
    %1022 = vmatprep.subr.mxu0 0.0
    %1023 = vmatpush1.msra.mxu0 0.0
    %1024 = vmatprep.subr.mxu0 0.0
    %1025 = vmatpush1.msra.mxu0 0.0
    %1026 = vmatprep.subr.mxu0 0.0
    %1027 = vmatpush1.msra.mxu0 0.0
    %1028 = vmatprep.subr.mxu0 0.0
    %1029 = vmatpush1.msra.mxu0 0.0
    %1030 = vmatprep.subr.mxu0 0.0
    %1031 = vmatpush1.msra.mxu0 0.0
    %1032 = vmatprep.subr.mxu0 0.0
    %1033 = vmatpush1.msra.mxu0 0.0
    %1034 = vmatprep.subr.mxu0 0.0
    %1035 = vmatpush1.msra.mxu0 0.0
    %1036 = vmatprep.subr.mxu0 0.0
    %1037 = vmatpush1.msra.mxu0 0.0
    %1038 = vmatprep.subr.mxu0 0.0
    %1039 = vmatpush1.msra.mxu0 0.0
    %1040 = vmatprep.subr.mxu0 0.0
    %1041 = vmatpush1.msra.mxu0 0.0
    %1042 = vmatprep.subr.mxu0 0.0
    %1043 = vmatpush1.msra.mxu0 0.0
    %1044 = vmatprep.subr.mxu0 0.0
    %1045 = vmatpush1.msra.mxu0 0.0
    %1046 = vmatprep.mubr.f32.mxu0 0.0
    %1047 = vmatmul.mubr.f32.gmra.mrb[0].mxu0 %v980
    %v1048 = vpop.f32.mrb[0].mxu0
    %v1049 = vadd.f32 0.0, %v1048
    %v1050 = vpop.f32.mrb[0].mxu0
    %1051 = vdwg.mxu0
    %v1053 = vrot.slane %v947, 4
    %v1055 = vadd.f32 %v214, %v1053
    %v1056 = vxor.u32 %v1055, 2147483648
    %v1057 = vmul.f32 %v1056, 1.442695
    %v1058 = vpow.pop %v1057
    %v1059 = vadd.f32 %v1058, 1.0
    %v1060 = vrcp.pop %v1059
    %v1061 = vmul.f32 1.0, %v1060
    %v1062 = vtanh.pop %v1055
    %v1064 = vrot.slane %v867, 7
    %v1066 = vmul.f32 %v1061, %v1064
    %1068 = vrot.lane.b32.xlu0 %v1062, 64
    %v1069 = vpop.permute.xlu0 %1068
    %v1071 = vmul.f32 %v1061, %v1069
    %1073 = vrot.lane.b32.xlu0 %v1071, 32
    %v1074 = vpop.permute.xlu0 %1073
    %v1076 = vadd.f32 %v1066, %v1074
    %v1077 = vtanh.pop %v1076
    %1079 = vrot.lane.b32.xlu0 %v1077, 64
    %v1080 = vpop.permute.xlu0 %1079
    %v1082 = vmul.f32 %v1061, %v1080
    %v1084 = vrot.slane %v1082, 4
    %1085 = vrot.lane.b32.xlu0 %v1084, 32
    %v1086 = vpop.permute.xlu0 %1085
    %v1087 = vsel %vm250, %v1086, 0
    %1089 = vmatprep.subr.mxu0 %v27
    %1090 = vmatpush1.msra.mxu0 %v26
    %1091 = vmatprep.subr.mxu0 %v29
    %1092 = vmatpush1.msra.mxu0 %v28
    %1093 = vmatprep.subr.mxu0 %v31
    %1094 = vmatpush1.msra.mxu0 %v30
    %1095 = vmatprep.subr.mxu0 %v33
    %1096 = vmatpush1.msra.mxu0 %v32
    %1097 = vmatprep.subr.mxu0 0.0
    %1098 = vmatpush1.msra.mxu0 0.0
    %1099 = vmatprep.subr.mxu0 0.0
    %1100 = vmatpush1.msra.mxu0 0.0
    %1101 = vmatprep.subr.mxu0 0.0
    %1102 = vmatpush1.msra.mxu0 0.0
    %1103 = vmatprep.subr.mxu0 0.0
    %1104 = vmatpush1.msra.mxu0 0.0
    %1105 = vmatprep.subr.mxu0 0.0
    %1106 = vmatpush1.msra.mxu0 0.0
    %1107 = vmatprep.subr.mxu0 0.0
    %1108 = vmatpush1.msra.mxu0 0.0
    %1109 = vmatprep.subr.mxu0 0.0
    %1110 = vmatpush1.msra.mxu0 0.0
    %1111 = vmatprep.subr.mxu0 0.0
    %1112 = vmatpush1.msra.mxu0 0.0
    %1113 = vmatprep.subr.mxu0 0.0
    %1114 = vmatpush1.msra.mxu0 0.0
    %1115 = vmatprep.subr.mxu0 0.0
    %1116 = vmatpush1.msra.mxu0 0.0
    %1117 = vmatprep.subr.mxu0 0.0
    %1118 = vmatpush1.msra.mxu0 0.0
    %1119 = vmatprep.subr.mxu0 0.0
    %1120 = vmatpush1.msra.mxu0 0.0
    %1121 = vmatprep.subr.mxu0 0.0
    %1122 = vmatpush1.msra.mxu0 0.0
    %1123 = vmatprep.subr.mxu0 0.0
    %1124 = vmatpush1.msra.mxu0 0.0
    %1125 = vmatprep.subr.mxu0 0.0
    %1126 = vmatpush1.msra.mxu0 0.0
    %1127 = vmatprep.subr.mxu0 0.0
    %1128 = vmatpush1.msra.mxu0 0.0
    %1129 = vmatprep.subr.mxu0 0.0
    %1130 = vmatpush1.msra.mxu0 0.0
    %1131 = vmatprep.subr.mxu0 0.0
    %1132 = vmatpush1.msra.mxu0 0.0
    %1133 = vmatprep.subr.mxu0 0.0
    %1134 = vmatpush1.msra.mxu0 0.0
    %1135 = vmatprep.subr.mxu0 0.0
    %1136 = vmatpush1.msra.mxu0 0.0
    %1137 = vmatprep.subr.mxu0 0.0
    %1138 = vmatpush1.msra.mxu0 0.0
    %1139 = vmatprep.subr.mxu0 0.0
    %1140 = vmatpush1.msra.mxu0 0.0
    %1141 = vmatprep.subr.mxu0 0.0
    %1142 = vmatpush1.msra.mxu0 0.0
    %1143 = vmatprep.subr.mxu0 0.0
    %1144 = vmatpush1.msra.mxu0 0.0
    %1145 = vmatprep.subr.mxu0 0.0
    %1146 = vmatpush1.msra.mxu0 0.0
    %1147 = vmatprep.subr.mxu0 0.0
    %1148 = vmatpush1.msra.mxu0 0.0
    %1149 = vmatprep.subr.mxu0 0.0
    %1150 = vmatpush1.msra.mxu0 0.0
    %1151 = vmatprep.subr.mxu0 0.0
    %1152 = vmatpush1.msra.mxu0 0.0
    %1153 = vmatprep.mubr.f32.mxu0 0.0
    %1154 = vmatmul.mubr.f32.gmra.mrb[0].mxu0 %v1087
    %v1155 = vpop.f32.mrb[0].mxu0
    %v1156 = vadd.f32 0.0, %v1155
    %v1157 = vpop.f32.mrb[0].mxu0
    %v1158 = vadd.f32 0.0, %v1157
    %1159 = vdwg.mxu0
    %v1160 = vadd.f32 %v1158, %v1049
    %v1161 = vadd.f32 %v1160, %v38
    %v1162 = vxor.u32 %v1161, 2147483648
    %v1163 = vmul.f32 %v1162, 1.442695
    %v1164 = vpow.pop %v1163
    %v1165 = vadd.f32 %v1164, 1.0
    %v1166 = vrcp.pop %v1165
    %v1167 = vmul.f32 1.0, %v1166
    %v1168 = vtanh.pop %v1161
    %v1169 = vmul.f32 %v1167, %v970
    %1171 = vrot.lane.b32.xlu0 %v1168, 64
    %v1172 = vpop.permute.xlu0 %1171
    %v1174 = vmul.f32 %v1167, %v1172
    %1176 = vrot.lane.b32.xlu0 %v1174, 32
    %v1177 = vpop.permute.xlu0 %1176
    %v1179 = vadd.f32 %v1169, %v1177
    %v1180 = vtanh.pop %v1179
    %1182 = vrot.lane.b32.xlu0 %v1180, 64
    %v1183 = vpop.permute.xlu0 %1182
    %v1185 = vmul.f32 %v1167, %v1183
    %1187 = vrot.lane.b32.xlu0 %v1185, 32
    %v1188 = vpop.permute.xlu0 %1187
    %v1189 = vsel %vm250, %v1188, 0
    %1191 = vmatprep.subr.mxu0 0.0
    %1192 = vmatpush1.msra.mxu0 %v34
    %1193 = vmatprep.subr.mxu0 0.0
    %1194 = vmatpush1.msra.mxu0 %v35
    %1195 = vmatprep.subr.mxu0 0.0
    %1196 = vmatpush1.msra.mxu0 %v36
    %1197 = vmatprep.subr.mxu0 0.0
    %1198 = vmatpush1.msra.mxu0 %v37
    %1199 = vmatprep.subr.mxu0 0.0
    %1200 = vmatpush1.msra.mxu0 0.0
    %1201 = vmatprep.subr.mxu0 0.0
    %1202 = vmatpush1.msra.mxu0 0.0
    %1203 = vmatprep.subr.mxu0 0.0
    %1204 = vmatpush1.msra.mxu0 0.0
    %1205 = vmatprep.subr.mxu0 0.0
    %1206 = vmatpush1.msra.mxu0 0.0
    %1207 = vmatprep.subr.mxu0 0.0
    %1208 = vmatpush1.msra.mxu0 0.0
    %1209 = vmatprep.subr.mxu0 0.0
    %1210 = vmatpush1.msra.mxu0 0.0
    %1211 = vmatprep.subr.mxu0 0.0
    %1212 = vmatpush1.msra.mxu0 0.0
    %1213 = vmatprep.subr.mxu0 0.0
    %1214 = vmatpush1.msra.mxu0 0.0
    %1215 = vmatprep.subr.mxu0 0.0
    %1216 = vmatpush1.msra.mxu0 0.0
    %1217 = vmatprep.subr.mxu0 0.0
    %1218 = vmatpush1.msra.mxu0 0.0
    %1219 = vmatprep.subr.mxu0 0.0
    %1220 = vmatpush1.msra.mxu0 0.0
    %1221 = vmatprep.subr.mxu0 0.0
    %1222 = vmatpush1.msra.mxu0 0.0
    %1223 = vmatprep.subr.mxu0 0.0
    %1224 = vmatpush1.msra.mxu0 0.0
    %1225 = vmatprep.subr.mxu0 0.0
    %1226 = vmatpush1.msra.mxu0 0.0
    %1227 = vmatprep.subr.mxu0 0.0
    %1228 = vmatpush1.msra.mxu0 0.0
    %1229 = vmatprep.subr.mxu0 0.0
    %1230 = vmatpush1.msra.mxu0 0.0
    %1231 = vmatprep.subr.mxu0 0.0
    %1232 = vmatpush1.msra.mxu0 0.0
    %1233 = vmatprep.subr.mxu0 0.0
    %1234 = vmatpush1.msra.mxu0 0.0
    %1235 = vmatprep.subr.mxu0 0.0
    %1236 = vmatpush1.msra.mxu0 0.0
    %1237 = vmatprep.subr.mxu0 0.0
    %1238 = vmatpush1.msra.mxu0 0.0
    %1239 = vmatprep.subr.mxu0 0.0
    %1240 = vmatpush1.msra.mxu0 0.0
    %1241 = vmatprep.subr.mxu0 0.0
    %1242 = vmatpush1.msra.mxu0 0.0
    %1243 = vmatprep.subr.mxu0 0.0
    %1244 = vmatpush1.msra.mxu0 0.0
    %1245 = vmatprep.subr.mxu0 0.0
    %1246 = vmatpush1.msra.mxu0 0.0
    %1247 = vmatprep.subr.mxu0 0.0
    %1248 = vmatpush1.msra.mxu0 0.0
    %1249 = vmatprep.subr.mxu0 0.0
    %1250 = vmatpush1.msra.mxu0 0.0
    %1251 = vmatprep.subr.mxu0 0.0
    %1252 = vmatpush1.msra.mxu0 0.0
    %1253 = vmatprep.subr.mxu0 0.0
    %1254 = vmatpush1.msra.mxu0 0.0
    %1255 = vmatprep.mubr.f32.mxu0 0.0
    %1256 = vmatmul.mubr.f32.gmra.mrb[0].mxu0 %v1189
    %v1257 = vpop.f32.mrb[0].mxu0
    %v1258 = vadd.f32 0.0, %v1257
    %v1259 = vpop.f32.mrb[0].mxu0
    %1260 = vdwg.mxu0
    %v1262 = vrot.slane %v1156, 3
    %v1264 = vadd.f32 %v214, %v1262
    %v1265 = vxor.u32 %v1264, 2147483648
    %v1266 = vmul.f32 %v1265, 1.442695
    %v1267 = vpow.pop %v1266
    %v1268 = vadd.f32 %v1267, 1.0
    %v1269 = vrcp.pop %v1268
    %v1270 = vmul.f32 1.0, %v1269
    %v1271 = vtanh.pop %v1264
    %v1273 = vrot.slane %v1076, 7
    %v1275 = vmul.f32 %v1270, %v1273
    %1277 = vrot.lane.b32.xlu0 %v1271, 64
    %v1278 = vpop.permute.xlu0 %1277
    %v1280 = vmul.f32 %v1270, %v1278
    %1282 = vrot.lane.b32.xlu0 %v1280, 32
    %v1283 = vpop.permute.xlu0 %1282
    %v1285 = vadd.f32 %v1275, %v1283
    %v1286 = vtanh.pop %v1285
    %1288 = vrot.lane.b32.xlu0 %v1286, 64
    %v1289 = vpop.permute.xlu0 %1288
    %v1291 = vmul.f32 %v1270, %v1289
    %v1293 = vrot.slane %v1291, 5
    %1294 = vrot.lane.b32.xlu0 %v1293, 32
    %v1295 = vpop.permute.xlu0 %1294
    %v1296 = vsel %vm250, %v1295, 0
    %1298 = vmatprep.subr.mxu0 %v27
    %1299 = vmatpush1.msra.mxu0 %v26
    %1300 = vmatprep.subr.mxu0 %v29
    %1301 = vmatpush1.msra.mxu0 %v28
    %1302 = vmatprep.subr.mxu0 %v31
    %1303 = vmatpush1.msra.mxu0 %v30
    %1304 = vmatprep.subr.mxu0 %v33
    %1305 = vmatpush1.msra.mxu0 %v32
    %1306 = vmatprep.subr.mxu0 0.0
    %1307 = vmatpush1.msra.mxu0 0.0
    %1308 = vmatprep.subr.mxu0 0.0
    %1309 = vmatpush1.msra.mxu0 0.0
    %1310 = vmatprep.subr.mxu0 0.0
    %1311 = vmatpush1.msra.mxu0 0.0
    %1312 = vmatprep.subr.mxu0 0.0
    %1313 = vmatpush1.msra.mxu0 0.0
    %1314 = vmatprep.subr.mxu0 0.0
    %1315 = vmatpush1.msra.mxu0 0.0
    %1316 = vmatprep.subr.mxu0 0.0
    %1317 = vmatpush1.msra.mxu0 0.0
    %1318 = vmatprep.subr.mxu0 0.0
    %1319 = vmatpush1.msra.mxu0 0.0
    %1320 = vmatprep.subr.mxu0 0.0
    %1321 = vmatpush1.msra.mxu0 0.0
    %1322 = vmatprep.subr.mxu0 0.0
    %1323 = vmatpush1.msra.mxu0 0.0
    %1324 = vmatprep.subr.mxu0 0.0
    %1325 = vmatpush1.msra.mxu0 0.0
    %1326 = vmatprep.subr.mxu0 0.0
    %1327 = vmatpush1.msra.mxu0 0.0
    %1328 = vmatprep.subr.mxu0 0.0
    %1329 = vmatpush1.msra.mxu0 0.0
    %1330 = vmatprep.subr.mxu0 0.0
    %1331 = vmatpush1.msra.mxu0 0.0
    %1332 = vmatprep.subr.mxu0 0.0
    %1333 = vmatpush1.msra.mxu0 0.0
    %1334 = vmatprep.subr.mxu0 0.0
    %1335 = vmatpush1.msra.mxu0 0.0
    %1336 = vmatprep.subr.mxu0 0.0
    %1337 = vmatpush1.msra.mxu0 0.0
    %1338 = vmatprep.subr.mxu0 0.0
    %1339 = vmatpush1.msra.mxu0 0.0
    %1340 = vmatprep.subr.mxu0 0.0
    %1341 = vmatpush1.msra.mxu0 0.0
    %1342 = vmatprep.subr.mxu0 0.0
    %1343 = vmatpush1.msra.mxu0 0.0
    %1344 = vmatprep.subr.mxu0 0.0
    %1345 = vmatpush1.msra.mxu0 0.0
    %1346 = vmatprep.subr.mxu0 0.0
    %1347 = vmatpush1.msra.mxu0 0.0
    %1348 = vmatprep.subr.mxu0 0.0
    %1349 = vmatpush1.msra.mxu0 0.0
    %1350 = vmatprep.subr.mxu0 0.0
    %1351 = vmatpush1.msra.mxu0 0.0
    %1352 = vmatprep.subr.mxu0 0.0
    %1353 = vmatpush1.msra.mxu0 0.0
    %1354 = vmatprep.subr.mxu0 0.0
    %1355 = vmatpush1.msra.mxu0 0.0
    %1356 = vmatprep.subr.mxu0 0.0
    %1357 = vmatpush1.msra.mxu0 0.0
    %1358 = vmatprep.subr.mxu0 0.0
    %1359 = vmatpush1.msra.mxu0 0.0
    %1360 = vmatprep.subr.mxu0 0.0
    %1361 = vmatpush1.msra.mxu0 0.0
    %1362 = vmatprep.mubr.f32.mxu0 0.0
    %1363 = vmatmul.mubr.f32.gmra.mrb[0].mxu0 %v1296
    %v1364 = vpop.f32.mrb[0].mxu0
    %v1365 = vadd.f32 0.0, %v1364
    %v1366 = vpop.f32.mrb[0].mxu0
    %v1367 = vadd.f32 0.0, %v1366
    %1368 = vdwg.mxu0
    %v1369 = vadd.f32 %v1367, %v1258
    %v1370 = vadd.f32 %v1369, %v38
    %v1371 = vxor.u32 %v1370, 2147483648
    %v1372 = vmul.f32 %v1371, 1.442695
    %v1373 = vpow.pop %v1372
    %v1374 = vadd.f32 %v1373, 1.0
    %v1375 = vrcp.pop %v1374
    %v1376 = vmul.f32 1.0, %v1375
    %v1377 = vtanh.pop %v1370
    %v1378 = vmul.f32 %v1376, %v1179
    %1380 = vrot.lane.b32.xlu0 %v1377, 64
    %v1381 = vpop.permute.xlu0 %1380
    %v1383 = vmul.f32 %v1376, %v1381
    %1385 = vrot.lane.b32.xlu0 %v1383, 32
    %v1386 = vpop.permute.xlu0 %1385
    %v1388 = vadd.f32 %v1378, %v1386
    %v1389 = vtanh.pop %v1388
    %1391 = vrot.lane.b32.xlu0 %v1389, 64
    %v1392 = vpop.permute.xlu0 %1391
    %v1394 = vmul.f32 %v1376, %v1392
    %1396 = vrot.lane.b32.xlu0 %v1394, 32
    %v1397 = vpop.permute.xlu0 %1396
    %v1398 = vsel %vm250, %v1397, 0
    %1400 = vmatprep.subr.mxu0 0.0
    %1401 = vmatpush1.msra.mxu0 %v34
    %1402 = vmatprep.subr.mxu0 0.0
    %1403 = vmatpush1.msra.mxu0 %v35
    %1404 = vmatprep.subr.mxu0 0.0
    %1405 = vmatpush1.msra.mxu0 %v36
    %1406 = vmatprep.subr.mxu0 0.0
    %1407 = vmatpush1.msra.mxu0 %v37
    %1408 = vmatprep.subr.mxu0 0.0
    %1409 = vmatpush1.msra.mxu0 0.0
    %1410 = vmatprep.subr.mxu0 0.0
    %1411 = vmatpush1.msra.mxu0 0.0
    %1412 = vmatprep.subr.mxu0 0.0
    %1413 = vmatpush1.msra.mxu0 0.0
    %1414 = vmatprep.subr.mxu0 0.0
    %1415 = vmatpush1.msra.mxu0 0.0
    %1416 = vmatprep.subr.mxu0 0.0
    %1417 = vmatpush1.msra.mxu0 0.0
    %1418 = vmatprep.subr.mxu0 0.0
    %1419 = vmatpush1.msra.mxu0 0.0
    %1420 = vmatprep.subr.mxu0 0.0
    %1421 = vmatpush1.msra.mxu0 0.0
    %1422 = vmatprep.subr.mxu0 0.0
    %1423 = vmatpush1.msra.mxu0 0.0
    %1424 = vmatprep.subr.mxu0 0.0
    %1425 = vmatpush1.msra.mxu0 0.0
    %1426 = vmatprep.subr.mxu0 0.0
    %1427 = vmatpush1.msra.mxu0 0.0
    %1428 = vmatprep.subr.mxu0 0.0
    %1429 = vmatpush1.msra.mxu0 0.0
    %1430 = vmatprep.subr.mxu0 0.0
    %1431 = vmatpush1.msra.mxu0 0.0
    %1432 = vmatprep.subr.mxu0 0.0
    %1433 = vmatpush1.msra.mxu0 0.0
    %1434 = vmatprep.subr.mxu0 0.0
    %1435 = vmatpush1.msra.mxu0 0.0
    %1436 = vmatprep.subr.mxu0 0.0
    %1437 = vmatpush1.msra.mxu0 0.0
    %1438 = vmatprep.subr.mxu0 0.0
    %1439 = vmatpush1.msra.mxu0 0.0
    %1440 = vmatprep.subr.mxu0 0.0
    %1441 = vmatpush1.msra.mxu0 0.0
    %1442 = vmatprep.subr.mxu0 0.0
    %1443 = vmatpush1.msra.mxu0 0.0
    %1444 = vmatprep.subr.mxu0 0.0
    %1445 = vmatpush1.msra.mxu0 0.0
    %1446 = vmatprep.subr.mxu0 0.0
    %1447 = vmatpush1.msra.mxu0 0.0
    %1448 = vmatprep.subr.mxu0 0.0
    %1449 = vmatpush1.msra.mxu0 0.0
    %1450 = vmatprep.subr.mxu0 0.0
    %1451 = vmatpush1.msra.mxu0 0.0
    %1452 = vmatprep.subr.mxu0 0.0
    %1453 = vmatpush1.msra.mxu0 0.0
    %1454 = vmatprep.subr.mxu0 0.0
    %1455 = vmatpush1.msra.mxu0 0.0
    %1456 = vmatprep.subr.mxu0 0.0
    %1457 = vmatpush1.msra.mxu0 0.0
    %1458 = vmatprep.subr.mxu0 0.0
    %1459 = vmatpush1.msra.mxu0 0.0
    %1460 = vmatprep.subr.mxu0 0.0
    %1461 = vmatpush1.msra.mxu0 0.0
    %1462 = vmatprep.subr.mxu0 0.0
    %1463 = vmatpush1.msra.mxu0 0.0
    %1464 = vmatprep.mubr.f32.mxu0 0.0
    %1465 = vmatmul.mubr.f32.gmra.mrb[0].mxu0 %v1398
    %v1466 = vpop.f32.mrb[0].mxu0
    %v1467 = vadd.f32 0.0, %v1466
    %v1468 = vpop.f32.mrb[0].mxu0
    %1469 = vdwg.mxu0
    %v1471 = vrot.slane %v1365, 2
    %v1473 = vadd.f32 %v214, %v1471
    %v1474 = vxor.u32 %v1473, 2147483648
    %v1475 = vmul.f32 %v1474, 1.442695
    %v1476 = vpow.pop %v1475
    %v1477 = vadd.f32 %v1476, 1.0
    %v1478 = vrcp.pop %v1477
    %v1479 = vmul.f32 1.0, %v1478
    %v1480 = vtanh.pop %v1473
    %v1482 = vrot.slane %v1285, 7
    %v1484 = vmul.f32 %v1479, %v1482
    %1486 = vrot.lane.b32.xlu0 %v1480, 64
    %v1487 = vpop.permute.xlu0 %1486
    %v1489 = vmul.f32 %v1479, %v1487
    %1491 = vrot.lane.b32.xlu0 %v1489, 32
    %v1492 = vpop.permute.xlu0 %1491
    %v1494 = vadd.f32 %v1484, %v1492
    %v1495 = vtanh.pop %v1494
    %1497 = vrot.lane.b32.xlu0 %v1495, 64
    %v1498 = vpop.permute.xlu0 %1497
    %v1500 = vmul.f32 %v1479, %v1498
    %v1502 = vrot.slane %v1500, 6
    %1503 = vrot.lane.b32.xlu0 %v1502, 32
    %v1504 = vpop.permute.xlu0 %1503
    %v1505 = vsel %vm250, %v1504, 0
    %1507 = vmatprep.subr.mxu0 %v27
    %1508 = vmatpush1.msra.mxu0 %v26
    %1509 = vmatprep.subr.mxu0 %v29
    %1510 = vmatpush1.msra.mxu0 %v28
    %1511 = vmatprep.subr.mxu0 %v31
    %1512 = vmatpush1.msra.mxu0 %v30
    %1513 = vmatprep.subr.mxu0 %v33
    %1514 = vmatpush1.msra.mxu0 %v32
    %1515 = vmatprep.subr.mxu0 0.0
    %1516 = vmatpush1.msra.mxu0 0.0
    %1517 = vmatprep.subr.mxu0 0.0
    %1518 = vmatpush1.msra.mxu0 0.0
    %1519 = vmatprep.subr.mxu0 0.0
    %1520 = vmatpush1.msra.mxu0 0.0
    %1521 = vmatprep.subr.mxu0 0.0
    %1522 = vmatpush1.msra.mxu0 0.0
    %1523 = vmatprep.subr.mxu0 0.0
    %1524 = vmatpush1.msra.mxu0 0.0
    %1525 = vmatprep.subr.mxu0 0.0
    %1526 = vmatpush1.msra.mxu0 0.0
    %1527 = vmatprep.subr.mxu0 0.0
    %1528 = vmatpush1.msra.mxu0 0.0
    %1529 = vmatprep.subr.mxu0 0.0
    %1530 = vmatpush1.msra.mxu0 0.0
    %1531 = vmatprep.subr.mxu0 0.0
    %1532 = vmatpush1.msra.mxu0 0.0
    %1533 = vmatprep.subr.mxu0 0.0
    %1534 = vmatpush1.msra.mxu0 0.0
    %1535 = vmatprep.subr.mxu0 0.0
    %1536 = vmatpush1.msra.mxu0 0.0
    %1537 = vmatprep.subr.mxu0 0.0
    %1538 = vmatpush1.msra.mxu0 0.0
    %1539 = vmatprep.subr.mxu0 0.0
    %1540 = vmatpush1.msra.mxu0 0.0
    %1541 = vmatprep.subr.mxu0 0.0
    %1542 = vmatpush1.msra.mxu0 0.0
    %1543 = vmatprep.subr.mxu0 0.0
    %1544 = vmatpush1.msra.mxu0 0.0
    %1545 = vmatprep.subr.mxu0 0.0
    %1546 = vmatpush1.msra.mxu0 0.0
    %1547 = vmatprep.subr.mxu0 0.0
    %1548 = vmatpush1.msra.mxu0 0.0
    %1549 = vmatprep.subr.mxu0 0.0
    %1550 = vmatpush1.msra.mxu0 0.0
    %1551 = vmatprep.subr.mxu0 0.0
    %1552 = vmatpush1.msra.mxu0 0.0
    %1553 = vmatprep.subr.mxu0 0.0
    %1554 = vmatpush1.msra.mxu0 0.0
    %1555 = vmatprep.subr.mxu0 0.0
    %1556 = vmatpush1.msra.mxu0 0.0
    %1557 = vmatprep.subr.mxu0 0.0
    %1558 = vmatpush1.msra.mxu0 0.0
    %1559 = vmatprep.subr.mxu0 0.0
    %1560 = vmatpush1.msra.mxu0 0.0
    %1561 = vmatprep.subr.mxu0 0.0
    %1562 = vmatpush1.msra.mxu0 0.0
    %1563 = vmatprep.subr.mxu0 0.0
    %1564 = vmatpush1.msra.mxu0 0.0
    %1565 = vmatprep.subr.mxu0 0.0
    %1566 = vmatpush1.msra.mxu0 0.0
    %1567 = vmatprep.subr.mxu0 0.0
    %1568 = vmatpush1.msra.mxu0 0.0
    %1569 = vmatprep.subr.mxu0 0.0
    %1570 = vmatpush1.msra.mxu0 0.0
    %1571 = vmatprep.mubr.f32.mxu0 0.0
    %1572 = vmatmul.mubr.f32.gmra.mrb[0].mxu0 %v1505
    %v1573 = vpop.f32.mrb[0].mxu0
    %v1574 = vadd.f32 0.0, %v1573
    %v1575 = vpop.f32.mrb[0].mxu0
    %v1576 = vadd.f32 0.0, %v1575
    %1577 = vdwg.mxu0
    %v1578 = vadd.f32 %v1576, %v1467
    %v1579 = vadd.f32 %v1578, %v38
    %v1580 = vxor.u32 %v1579, 2147483648
    %v1581 = vmul.f32 %v1580, 1.442695
    %v1582 = vpow.pop %v1581
    %v1583 = vadd.f32 %v1582, 1.0
    %v1584 = vrcp.pop %v1583
    %v1585 = vmul.f32 1.0, %v1584
    %v1586 = vtanh.pop %v1579
    %v1587 = vmul.f32 %v1585, %v1388
    %1589 = vrot.lane.b32.xlu0 %v1586, 64
    %v1590 = vpop.permute.xlu0 %1589
    %v1592 = vmul.f32 %v1585, %v1590
    %1594 = vrot.lane.b32.xlu0 %v1592, 32
    %v1595 = vpop.permute.xlu0 %1594
    %v1597 = vadd.f32 %v1587, %v1595
    %v1598 = vtanh.pop %v1597
    %1600 = vrot.lane.b32.xlu0 %v1598, 64
    %v1601 = vpop.permute.xlu0 %1600
    %v1603 = vmul.f32 %v1585, %v1601
    %1605 = vrot.lane.b32.xlu0 %v1603, 32
    %v1606 = vpop.permute.xlu0 %1605
    %v1607 = vsel %vm250, %v1606, 0
    %1609 = vmatprep.subr.mxu0 0.0
    %1610 = vmatpush1.msra.mxu0 %v34
    %1611 = vmatprep.subr.mxu0 0.0
    %1612 = vmatpush1.msra.mxu0 %v35
    %1613 = vmatprep.subr.mxu0 0.0
    %1614 = vmatpush1.msra.mxu0 %v36
    %1615 = vmatprep.subr.mxu0 0.0
    %1616 = vmatpush1.msra.mxu0 %v37
    %1617 = vmatprep.subr.mxu0 0.0
    %1618 = vmatpush1.msra.mxu0 0.0
    %1619 = vmatprep.subr.mxu0 0.0
    %1620 = vmatpush1.msra.mxu0 0.0
    %1621 = vmatprep.subr.mxu0 0.0
    %1622 = vmatpush1.msra.mxu0 0.0
    %1623 = vmatprep.subr.mxu0 0.0
    %1624 = vmatpush1.msra.mxu0 0.0
    %1625 = vmatprep.subr.mxu0 0.0
    %1626 = vmatpush1.msra.mxu0 0.0
    %1627 = vmatprep.subr.mxu0 0.0
    %1628 = vmatpush1.msra.mxu0 0.0
    %1629 = vmatprep.subr.mxu0 0.0
    %1630 = vmatpush1.msra.mxu0 0.0
    %1631 = vmatprep.subr.mxu0 0.0
    %1632 = vmatpush1.msra.mxu0 0.0
    %1633 = vmatprep.subr.mxu0 0.0
    %1634 = vmatpush1.msra.mxu0 0.0
    %1635 = vmatprep.subr.mxu0 0.0
    %1636 = vmatpush1.msra.mxu0 0.0
    %1637 = vmatprep.subr.mxu0 0.0
    %1638 = vmatpush1.msra.mxu0 0.0
    %1639 = vmatprep.subr.mxu0 0.0
    %1640 = vmatpush1.msra.mxu0 0.0
    %1641 = vmatprep.subr.mxu0 0.0
    %1642 = vmatpush1.msra.mxu0 0.0
    %1643 = vmatprep.subr.mxu0 0.0
    %1644 = vmatpush1.msra.mxu0 0.0
    %1645 = vmatprep.subr.mxu0 0.0
    %1646 = vmatpush1.msra.mxu0 0.0
    %1647 = vmatprep.subr.mxu0 0.0
    %1648 = vmatpush1.msra.mxu0 0.0
    %1649 = vmatprep.subr.mxu0 0.0
    %1650 = vmatpush1.msra.mxu0 0.0
    %1651 = vmatprep.subr.mxu0 0.0
    %1652 = vmatpush1.msra.mxu0 0.0
    %1653 = vmatprep.subr.mxu0 0.0
    %1654 = vmatpush1.msra.mxu0 0.0
    %1655 = vmatprep.subr.mxu0 0.0
    %1656 = vmatpush1.msra.mxu0 0.0
    %1657 = vmatprep.subr.mxu0 0.0
    %1658 = vmatpush1.msra.mxu0 0.0
    %1659 = vmatprep.subr.mxu0 0.0
    %1660 = vmatpush1.msra.mxu0 0.0
    %1661 = vmatprep.subr.mxu0 0.0
    %1662 = vmatpush1.msra.mxu0 0.0
    %1663 = vmatprep.subr.mxu0 0.0
    %1664 = vmatpush1.msra.mxu0 0.0
    %1665 = vmatprep.subr.mxu0 0.0
    %1666 = vmatpush1.msra.mxu0 0.0
    %1667 = vmatprep.subr.mxu0 0.0
    %1668 = vmatpush1.msra.mxu0 0.0
    %1669 = vmatprep.subr.mxu0 0.0
    %1670 = vmatpush1.msra.mxu0 0.0
    %1671 = vmatprep.subr.mxu0 0.0
    %1672 = vmatpush1.msra.mxu0 0.0
    %1673 = vmatprep.mubr.f32.mxu0 0.0
    %1674 = vmatmul.mubr.f32.gmra.mrb[0].mxu0 %v1607
    %v1675 = vpop.f32.mrb[0].mxu0
    %v1676 = vadd.f32 0.0, %v1675
    %v1677 = vpop.f32.mrb[0].mxu0
    %1678 = vdwg.mxu0
    %v1680 = vrot.slane %v1574, 1
    %v1682 = vadd.f32 %v214, %v1680
    %v1683 = vxor.u32 %v1682, 2147483648
    %v1684 = vmul.f32 %v1683, 1.442695
    %v1685 = vpow.pop %v1684
    %v1686 = vadd.f32 %v1685, 1.0
    %v1687 = vrcp.pop %v1686
    %v1688 = vmul.f32 1.0, %v1687
    %v1689 = vtanh.pop %v1682
    %v1691 = vrot.slane %v1494, 7
    %v1693 = vmul.f32 %v1688, %v1691
    %1695 = vrot.lane.b32.xlu0 %v1689, 64
    %v1696 = vpop.permute.xlu0 %1695
    %v1698 = vmul.f32 %v1688, %v1696
    %1700 = vrot.lane.b32.xlu0 %v1698, 32
    %v1701 = vpop.permute.xlu0 %1700
    %v1703 = vadd.f32 %v1693, %v1701
    %v1704 = vtanh.pop %v1703
    %1706 = vrot.lane.b32.xlu0 %v1704, 64
    %v1707 = vpop.permute.xlu0 %1706
    %v1709 = vmul.f32 %v1688, %v1707
    %v1711 = vrot.slane %v1709, 7
    %1712 = vrot.lane.b32.xlu0 %v1711, 32
    %v1713 = vpop.permute.xlu0 %1712
    %v1714 = vsel %vm250, %v1713, 0
    %1716 = vmatprep.subr.mxu0 %v27
    %1717 = vmatpush1.msra.mxu0 %v26
    %1718 = vmatprep.subr.mxu0 %v29
    %1719 = vmatpush1.msra.mxu0 %v28
    %1720 = vmatprep.subr.mxu0 %v31
    %1721 = vmatpush1.msra.mxu0 %v30
    %1722 = vmatprep.subr.mxu0 %v33
    %1723 = vmatpush1.msra.mxu0 %v32
    %1724 = vmatprep.subr.mxu0 0.0
    %1725 = vmatpush1.msra.mxu0 0.0
    %1726 = vmatprep.subr.mxu0 0.0
    %1727 = vmatpush1.msra.mxu0 0.0
    %1728 = vmatprep.subr.mxu0 0.0
    %1729 = vmatpush1.msra.mxu0 0.0
    %1730 = vmatprep.subr.mxu0 0.0
    %1731 = vmatpush1.msra.mxu0 0.0
    %1732 = vmatprep.subr.mxu0 0.0
    %1733 = vmatpush1.msra.mxu0 0.0
    %1734 = vmatprep.subr.mxu0 0.0
    %1735 = vmatpush1.msra.mxu0 0.0
    %1736 = vmatprep.subr.mxu0 0.0
    %1737 = vmatpush1.msra.mxu0 0.0
    %1738 = vmatprep.subr.mxu0 0.0
    %1739 = vmatpush1.msra.mxu0 0.0
    %1740 = vmatprep.subr.mxu0 0.0
    %1741 = vmatpush1.msra.mxu0 0.0
    %1742 = vmatprep.subr.mxu0 0.0
    %1743 = vmatpush1.msra.mxu0 0.0
    %1744 = vmatprep.subr.mxu0 0.0
    %1745 = vmatpush1.msra.mxu0 0.0
    %1746 = vmatprep.subr.mxu0 0.0
    %1747 = vmatpush1.msra.mxu0 0.0
    %1748 = vmatprep.subr.mxu0 0.0
    %1749 = vmatpush1.msra.mxu0 0.0
    %1750 = vmatprep.subr.mxu0 0.0
    %1751 = vmatpush1.msra.mxu0 0.0
    %1752 = vmatprep.subr.mxu0 0.0
    %1753 = vmatpush1.msra.mxu0 0.0
    %1754 = vmatprep.subr.mxu0 0.0
    %1755 = vmatpush1.msra.mxu0 0.0
    %1756 = vmatprep.subr.mxu0 0.0
    %1757 = vmatpush1.msra.mxu0 0.0
    %1758 = vmatprep.subr.mxu0 0.0
    %1759 = vmatpush1.msra.mxu0 0.0
    %1760 = vmatprep.subr.mxu0 0.0
    %1761 = vmatpush1.msra.mxu0 0.0
    %1762 = vmatprep.subr.mxu0 0.0
    %1763 = vmatpush1.msra.mxu0 0.0
    %1764 = vmatprep.subr.mxu0 0.0
    %1765 = vmatpush1.msra.mxu0 0.0
    %1766 = vmatprep.subr.mxu0 0.0
    %1767 = vmatpush1.msra.mxu0 0.0
    %1768 = vmatprep.subr.mxu0 0.0
    %1769 = vmatpush1.msra.mxu0 0.0
    %1770 = vmatprep.subr.mxu0 0.0
    %1771 = vmatpush1.msra.mxu0 0.0
    %1772 = vmatprep.subr.mxu0 0.0
    %1773 = vmatpush1.msra.mxu0 0.0
    %1774 = vmatprep.subr.mxu0 0.0
    %1775 = vmatpush1.msra.mxu0 0.0
    %1776 = vmatprep.subr.mxu0 0.0
    %1777 = vmatpush1.msra.mxu0 0.0
    %1778 = vmatprep.subr.mxu0 0.0
    %1779 = vmatpush1.msra.mxu0 0.0
    %1780 = vmatprep.mubr.f32.mxu0 0.0
    %1781 = vmatmul.mubr.f32.gmra.mrb[0].mxu0 %v1714
    %v1782 = vpop.f32.mrb[0].mxu0
    %v1783 = vadd.f32 0.0, %v1782
    %v1784 = vpop.f32.mrb[0].mxu0
    %v1785 = vadd.f32 0.0, %v1784
    %1786 = vdwg.mxu0
    %v1787 = vadd.f32 %v1785, %v1676
    %v1788 = vadd.f32 %v1787, %v38
    %v1789 = vxor.u32 %v1788, 2147483648
    %v1790 = vmul.f32 %v1789, 1.442695
    %v1791 = vpow.pop %v1790
    %v1792 = vadd.f32 %v1791, 1.0
    %v1793 = vrcp.pop %v1792
    %v1794 = vmul.f32 1.0, %v1793
    %v1795 = vtanh.pop %v1788
    %v1796 = vmul.f32 %v1794, %v1597
    %1798 = vrot.lane.b32.xlu0 %v1795, 64
    %v1799 = vpop.permute.xlu0 %1798
    %v1801 = vmul.f32 %v1794, %v1799
    %1803 = vrot.lane.b32.xlu0 %v1801, 32
    %v1804 = vpop.permute.xlu0 %1803
    %v1806 = vadd.f32 %v1796, %v1804
    %v1807 = vtanh.pop %v1806
    %1809 = vrot.lane.b32.xlu0 %v1807, 64
    %v1810 = vpop.permute.xlu0 %1809
    %v1812 = vmul.f32 %v1794, %v1810
    %1814 = vrot.lane.b32.xlu0 %v1812, 32
    %v1815 = vpop.permute.xlu0 %1814
    %v1816 = vsel %vm250, %v1815, 0
    %1818 = vmatprep.subr.mxu0 0.0
    %1819 = vmatpush1.msra.mxu0 %v34
    %1820 = vmatprep.subr.mxu0 0.0
    %1821 = vmatpush1.msra.mxu0 %v35
    %1822 = vmatprep.subr.mxu0 0.0
    %1823 = vmatpush1.msra.mxu0 %v36
    %1824 = vmatprep.subr.mxu0 0.0
    %1825 = vmatpush1.msra.mxu0 %v37
    %1826 = vmatprep.subr.mxu0 0.0
    %1827 = vmatpush1.msra.mxu0 0.0
    %1828 = vmatprep.subr.mxu0 0.0
    %1829 = vmatpush1.msra.mxu0 0.0
    %1830 = vmatprep.subr.mxu0 0.0
    %1831 = vmatpush1.msra.mxu0 0.0
    %1832 = vmatprep.subr.mxu0 0.0
    %1833 = vmatpush1.msra.mxu0 0.0
    %1834 = vmatprep.subr.mxu0 0.0
    %1835 = vmatpush1.msra.mxu0 0.0
    %1836 = vmatprep.subr.mxu0 0.0
    %1837 = vmatpush1.msra.mxu0 0.0
    %1838 = vmatprep.subr.mxu0 0.0
    %1839 = vmatpush1.msra.mxu0 0.0
    %1840 = vmatprep.subr.mxu0 0.0
    %1841 = vmatpush1.msra.mxu0 0.0
    %1842 = vmatprep.subr.mxu0 0.0
    %1843 = vmatpush1.msra.mxu0 0.0
    %1844 = vmatprep.subr.mxu0 0.0
    %1845 = vmatpush1.msra.mxu0 0.0
    %1846 = vmatprep.subr.mxu0 0.0
    %1847 = vmatpush1.msra.mxu0 0.0
    %1848 = vmatprep.subr.mxu0 0.0
    %1849 = vmatpush1.msra.mxu0 0.0
    %1850 = vmatprep.subr.mxu0 0.0
    %1851 = vmatpush1.msra.mxu0 0.0
    %1852 = vmatprep.subr.mxu0 0.0
    %1853 = vmatpush1.msra.mxu0 0.0
    %1854 = vmatprep.subr.mxu0 0.0
    %1855 = vmatpush1.msra.mxu0 0.0
    %1856 = vmatprep.subr.mxu0 0.0
    %1857 = vmatpush1.msra.mxu0 0.0
    %1858 = vmatprep.subr.mxu0 0.0
    %1859 = vmatpush1.msra.mxu0 0.0
    %1860 = vmatprep.subr.mxu0 0.0
    %1861 = vmatpush1.msra.mxu0 0.0
    %1862 = vmatprep.subr.mxu0 0.0
    %1863 = vmatpush1.msra.mxu0 0.0
    %1864 = vmatprep.subr.mxu0 0.0
    %1865 = vmatpush1.msra.mxu0 0.0
    %1866 = vmatprep.subr.mxu0 0.0
    %1867 = vmatpush1.msra.mxu0 0.0
    %1868 = vmatprep.subr.mxu0 0.0
    %1869 = vmatpush1.msra.mxu0 0.0
    %1870 = vmatprep.subr.mxu0 0.0
    %1871 = vmatpush1.msra.mxu0 0.0
    %1872 = vmatprep.subr.mxu0 0.0
    %1873 = vmatpush1.msra.mxu0 0.0
    %1874 = vmatprep.subr.mxu0 0.0
    %1875 = vmatpush1.msra.mxu0 0.0
    %1876 = vmatprep.subr.mxu0 0.0
    %1877 = vmatpush1.msra.mxu0 0.0
    %1878 = vmatprep.subr.mxu0 0.0
    %1879 = vmatpush1.msra.mxu0 0.0
    %1880 = vmatprep.subr.mxu0 0.0
    %1881 = vmatpush1.msra.mxu0 0.0
    %1882 = vmatprep.mubr.f32.mxu0 0.0
    %1883 = vmatmul.mubr.f32.gmra.mrb[0].mxu0 %v1816
    %v1884 = vpop.f32.mrb[0].mxu0
    %v1885 = vadd.f32 0.0, %v1884
    %v1886 = vpop.f32.mrb[0].mxu0
    %1887 = vdwg.mxu0
    %v1888 = vadd.f32 %v219, %v1783
    %v1889 = vxor.u32 %v1888, 2147483648
    %v1890 = vmul.f32 %v1889, 1.442695
    %v1891 = vpow.pop %v1890
    %v1892 = vadd.f32 %v1891, 1.0
    %v1893 = vrcp.pop %v1892
    %v1894 = vmul.f32 1.0, %v1893
    %v1895 = vtanh.pop %v1888
    %v1897 = vrot.slane %v1703, 7
    %v1899 = vmul.f32 %v1894, %v1897
    %1901 = vrot.lane.b32.xlu0 %v1895, 64
    %v1902 = vpop.permute.xlu0 %1901
    %v1904 = vmul.f32 %v1894, %v1902
    %1906 = vrot.lane.b32.xlu0 %v1904, 32
    %v1907 = vpop.permute.xlu0 %1906
    %v1909 = vadd.f32 %v1899, %v1907
    %v1910 = vtanh.pop %v1909
    %1912 = vrot.lane.b32.xlu0 %v1910, 64
    %v1913 = vpop.permute.xlu0 %1912
    %v1915 = vmul.f32 %v1894, %v1913
    %1917 = vrot.lane.b32.xlu0 %v1915, 32
    %v1918 = vpop.permute.xlu0 %1917
    %v1919 = vsel %vm250, %v1918, 0
    %1921 = vmatprep.subr.mxu0 %v27
    %1922 = vmatpush1.msra.mxu0 %v26
    %1923 = vmatprep.subr.mxu0 %v29
    %1924 = vmatpush1.msra.mxu0 %v28
    %1925 = vmatprep.subr.mxu0 %v31
    %1926 = vmatpush1.msra.mxu0 %v30
    %1927 = vmatprep.subr.mxu0 %v33
    %1928 = vmatpush1.msra.mxu0 %v32
    %1929 = vmatprep.subr.mxu0 0.0
    %1930 = vmatpush1.msra.mxu0 0.0
    %1931 = vmatprep.subr.mxu0 0.0
    %1932 = vmatpush1.msra.mxu0 0.0
    %1933 = vmatprep.subr.mxu0 0.0
    %1934 = vmatpush1.msra.mxu0 0.0
    %1935 = vmatprep.subr.mxu0 0.0
    %1936 = vmatpush1.msra.mxu0 0.0
    %1937 = vmatprep.subr.mxu0 0.0
    %1938 = vmatpush1.msra.mxu0 0.0
    %1939 = vmatprep.subr.mxu0 0.0
    %1940 = vmatpush1.msra.mxu0 0.0
    %1941 = vmatprep.subr.mxu0 0.0
    %1942 = vmatpush1.msra.mxu0 0.0
    %1943 = vmatprep.subr.mxu0 0.0
    %1944 = vmatpush1.msra.mxu0 0.0
    %1945 = vmatprep.subr.mxu0 0.0
    %1946 = vmatpush1.msra.mxu0 0.0
    %1947 = vmatprep.subr.mxu0 0.0
    %1948 = vmatpush1.msra.mxu0 0.0
    %1949 = vmatprep.subr.mxu0 0.0
    %1950 = vmatpush1.msra.mxu0 0.0
    %1951 = vmatprep.subr.mxu0 0.0
    %1952 = vmatpush1.msra.mxu0 0.0
    %1953 = vmatprep.subr.mxu0 0.0
    %1954 = vmatpush1.msra.mxu0 0.0
    %1955 = vmatprep.subr.mxu0 0.0
    %1956 = vmatpush1.msra.mxu0 0.0
    %1957 = vmatprep.subr.mxu0 0.0
    %1958 = vmatpush1.msra.mxu0 0.0
    %1959 = vmatprep.subr.mxu0 0.0
    %1960 = vmatpush1.msra.mxu0 0.0
    %1961 = vmatprep.subr.mxu0 0.0
    %1962 = vmatpush1.msra.mxu0 0.0
    %1963 = vmatprep.subr.mxu0 0.0
    %1964 = vmatpush1.msra.mxu0 0.0
    %1965 = vmatprep.subr.mxu0 0.0
    %1966 = vmatpush1.msra.mxu0 0.0
    %1967 = vmatprep.subr.mxu0 0.0
    %1968 = vmatpush1.msra.mxu0 0.0
    %1969 = vmatprep.subr.mxu0 0.0
    %1970 = vmatpush1.msra.mxu0 0.0
    %1971 = vmatprep.subr.mxu0 0.0
    %1972 = vmatpush1.msra.mxu0 0.0
    %1973 = vmatprep.subr.mxu0 0.0
    %1974 = vmatpush1.msra.mxu0 0.0
    %1975 = vmatprep.subr.mxu0 0.0
    %1976 = vmatpush1.msra.mxu0 0.0
    %1977 = vmatprep.subr.mxu0 0.0
    %1978 = vmatpush1.msra.mxu0 0.0
    %1979 = vmatprep.subr.mxu0 0.0
    %1980 = vmatpush1.msra.mxu0 0.0
    %1981 = vmatprep.subr.mxu0 0.0
    %1982 = vmatpush1.msra.mxu0 0.0
    %1983 = vmatprep.subr.mxu0 0.0
    %1984 = vmatpush1.msra.mxu0 0.0
    %1985 = vmatprep.mubr.f32.mxu0 0.0
    %1986 = vmatmul.mubr.f32.gmra.mrb[0].mxu0 %v1919
    %v1987 = vpop.f32.mrb[0].mxu0
    %v1988 = vadd.f32 0.0, %v1987
    %v1989 = vpop.f32.mrb[0].mxu0
    %v1990 = vadd.f32 0.0, %v1989
    %1991 = vdwg.mxu0
    %v1992 = vadd.f32 %v1990, %v1885
    %v1993 = vadd.f32 %v1992, %v38
    %v1994 = vxor.u32 %v1993, 2147483648
    %v1995 = vmul.f32 %v1994, 1.442695
    %v1996 = vpow.pop %v1995
    %v1997 = vadd.f32 %v1996, 1.0
    %v1998 = vrcp.pop %v1997
    %v1999 = vmul.f32 1.0, %v1998
    %v2000 = vtanh.pop %v1993
    %v2001 = vmul.f32 %v1999, %v1806
    %2003 = vrot.lane.b32.xlu0 %v2000, 64
    %v2004 = vpop.permute.xlu0 %2003
    %v2006 = vmul.f32 %v1999, %v2004
    %2008 = vrot.lane.b32.xlu0 %v2006, 32
    %v2009 = vpop.permute.xlu0 %2008
    %v2011 = vadd.f32 %v2001, %v2009
    %v2012 = vtanh.pop %v2011
    %2014 = vrot.lane.b32.xlu0 %v2012, 64
    %v2015 = vpop.permute.xlu0 %2014
    %v2017 = vmul.f32 %v1999, %v2015
    %2019 = vrot.lane.b32.xlu0 %v2017, 32
    %v2020 = vpop.permute.xlu0 %2019
    %v2021 = vsel %vm250, %v2020, 0
    %2023 = vmatprep.subr.mxu0 0.0
    %2024 = vmatpush1.msra.mxu0 %v34
    %2025 = vmatprep.subr.mxu0 0.0
    %2026 = vmatpush1.msra.mxu0 %v35
    %2027 = vmatprep.subr.mxu0 0.0
    %2028 = vmatpush1.msra.mxu0 %v36
    %2029 = vmatprep.subr.mxu0 0.0
    %2030 = vmatpush1.msra.mxu0 %v37
    %2031 = vmatprep.subr.mxu0 0.0
    %2032 = vmatpush1.msra.mxu0 0.0
    %2033 = vmatprep.subr.mxu0 0.0
    %2034 = vmatpush1.msra.mxu0 0.0
    %2035 = vmatprep.subr.mxu0 0.0
    %2036 = vmatpush1.msra.mxu0 0.0
    %2037 = vmatprep.subr.mxu0 0.0
    %2038 = vmatpush1.msra.mxu0 0.0
    %2039 = vmatprep.subr.mxu0 0.0
    %2040 = vmatpush1.msra.mxu0 0.0
    %2041 = vmatprep.subr.mxu0 0.0
    %2042 = vmatpush1.msra.mxu0 0.0
    %2043 = vmatprep.subr.mxu0 0.0
    %2044 = vmatpush1.msra.mxu0 0.0
    %2045 = vmatprep.subr.mxu0 0.0
    %2046 = vmatpush1.msra.mxu0 0.0
    %2047 = vmatprep.subr.mxu0 0.0
    %2048 = vmatpush1.msra.mxu0 0.0
    %2049 = vmatprep.subr.mxu0 0.0
    %2050 = vmatpush1.msra.mxu0 0.0
    %2051 = vmatprep.subr.mxu0 0.0
    %2052 = vmatpush1.msra.mxu0 0.0
    %2053 = vmatprep.subr.mxu0 0.0
    %2054 = vmatpush1.msra.mxu0 0.0
    %2055 = vmatprep.subr.mxu0 0.0
    %2056 = vmatpush1.msra.mxu0 0.0
    %2057 = vmatprep.subr.mxu0 0.0
    %2058 = vmatpush1.msra.mxu0 0.0
    %2059 = vmatprep.subr.mxu0 0.0
    %2060 = vmatpush1.msra.mxu0 0.0
    %2061 = vmatprep.subr.mxu0 0.0
    %2062 = vmatpush1.msra.mxu0 0.0
    %2063 = vmatprep.subr.mxu0 0.0
    %2064 = vmatpush1.msra.mxu0 0.0
    %2065 = vmatprep.subr.mxu0 0.0
    %2066 = vmatpush1.msra.mxu0 0.0
    %2067 = vmatprep.subr.mxu0 0.0
    %2068 = vmatpush1.msra.mxu0 0.0
    %2069 = vmatprep.subr.mxu0 0.0
    %2070 = vmatpush1.msra.mxu0 0.0
    %2071 = vmatprep.subr.mxu0 0.0
    %2072 = vmatpush1.msra.mxu0 0.0
    %2073 = vmatprep.subr.mxu0 0.0
    %2074 = vmatpush1.msra.mxu0 0.0
    %2075 = vmatprep.subr.mxu0 0.0
    %2076 = vmatpush1.msra.mxu0 0.0
    %2077 = vmatprep.subr.mxu0 0.0
    %2078 = vmatpush1.msra.mxu0 0.0
    %2079 = vmatprep.subr.mxu0 0.0
    %2080 = vmatpush1.msra.mxu0 0.0
    %2081 = vmatprep.subr.mxu0 0.0
    %2082 = vmatpush1.msra.mxu0 0.0
    %2083 = vmatprep.subr.mxu0 0.0
    %2084 = vmatpush1.msra.mxu0 0.0
    %2085 = vmatprep.subr.mxu0 0.0
    %2086 = vmatpush1.msra.mxu0 0.0
    %2087 = vmatprep.mubr.f32.mxu0 0.0
    %2088 = vmatmul.mubr.f32.gmra.mrb[0].mxu0 %v2021
    %v2089 = vpop.f32.mrb[0].mxu0
    %v2090 = vadd.f32 0.0, %v2089
    %v2091 = vpop.f32.mrb[0].mxu0
    %2092 = vdwg.mxu0
    %v2094 = vrot.slane %v1988, 7
    %v2096 = vadd.f32 %v219, %v2094
    %v2097 = vxor.u32 %v2096, 2147483648
    %v2098 = vmul.f32 %v2097, 1.442695
    %v2099 = vpow.pop %v2098
    %v2100 = vadd.f32 %v2099, 1.0
    %v2101 = vrcp.pop %v2100
    %v2102 = vmul.f32 1.0, %v2101
    %v2103 = vtanh.pop %v2096
    %v2105 = vrot.slane %v1909, 7
    %v2107 = vmul.f32 %v2102, %v2105
    %2109 = vrot.lane.b32.xlu0 %v2103, 64
    %v2110 = vpop.permute.xlu0 %2109
    %v2112 = vmul.f32 %v2102, %v2110
    %2114 = vrot.lane.b32.xlu0 %v2112, 32
    %v2115 = vpop.permute.xlu0 %2114
    %v2117 = vadd.f32 %v2107, %v2115
    %v2118 = vtanh.pop %v2117
    %2120 = vrot.lane.b32.xlu0 %v2118, 64
    %v2121 = vpop.permute.xlu0 %2120
    %v2123 = vmul.f32 %v2102, %v2121
    %v2125 = vrot.slane %v2123, 1
    %2126 = vrot.lane.b32.xlu0 %v2125, 32
    %v2127 = vpop.permute.xlu0 %2126
    %v2128 = vsel %vm250, %v2127, 0
    %2130 = vmatprep.subr.mxu0 %v27
    %2131 = vmatpush1.msra.mxu0 %v26
    %2132 = vmatprep.subr.mxu0 %v29
    %2133 = vmatpush1.msra.mxu0 %v28
    %2134 = vmatprep.subr.mxu0 %v31
    %2135 = vmatpush1.msra.mxu0 %v30
    %2136 = vmatprep.subr.mxu0 %v33
    %2137 = vmatpush1.msra.mxu0 %v32
    %2138 = vmatprep.subr.mxu0 0.0
    %2139 = vmatpush1.msra.mxu0 0.0
    %2140 = vmatprep.subr.mxu0 0.0
    %2141 = vmatpush1.msra.mxu0 0.0
    %2142 = vmatprep.subr.mxu0 0.0
    %2143 = vmatpush1.msra.mxu0 0.0
    %2144 = vmatprep.subr.mxu0 0.0
    %2145 = vmatpush1.msra.mxu0 0.0
    %2146 = vmatprep.subr.mxu0 0.0
    %2147 = vmatpush1.msra.mxu0 0.0
    %2148 = vmatprep.subr.mxu0 0.0
    %2149 = vmatpush1.msra.mxu0 0.0
    %2150 = vmatprep.subr.mxu0 0.0
    %2151 = vmatpush1.msra.mxu0 0.0
    %2152 = vmatprep.subr.mxu0 0.0
    %2153 = vmatpush1.msra.mxu0 0.0
    %2154 = vmatprep.subr.mxu0 0.0
    %2155 = vmatpush1.msra.mxu0 0.0
    %2156 = vmatprep.subr.mxu0 0.0
    %2157 = vmatpush1.msra.mxu0 0.0
    %2158 = vmatprep.subr.mxu0 0.0
    %2159 = vmatpush1.msra.mxu0 0.0
    %2160 = vmatprep.subr.mxu0 0.0
    %2161 = vmatpush1.msra.mxu0 0.0
    %2162 = vmatprep.subr.mxu0 0.0
    %2163 = vmatpush1.msra.mxu0 0.0
    %2164 = vmatprep.subr.mxu0 0.0
    %2165 = vmatpush1.msra.mxu0 0.0
    %2166 = vmatprep.subr.mxu0 0.0
    %2167 = vmatpush1.msra.mxu0 0.0
    %2168 = vmatprep.subr.mxu0 0.0
    %2169 = vmatpush1.msra.mxu0 0.0
    %2170 = vmatprep.subr.mxu0 0.0
    %2171 = vmatpush1.msra.mxu0 0.0
    %2172 = vmatprep.subr.mxu0 0.0
    %2173 = vmatpush1.msra.mxu0 0.0
    %2174 = vmatprep.subr.mxu0 0.0
    %2175 = vmatpush1.msra.mxu0 0.0
    %2176 = vmatprep.subr.mxu0 0.0
    %2177 = vmatpush1.msra.mxu0 0.0
    %2178 = vmatprep.subr.mxu0 0.0
    %2179 = vmatpush1.msra.mxu0 0.0
    %2180 = vmatprep.subr.mxu0 0.0
    %2181 = vmatpush1.msra.mxu0 0.0
    %2182 = vmatprep.subr.mxu0 0.0
    %2183 = vmatpush1.msra.mxu0 0.0
    %2184 = vmatprep.subr.mxu0 0.0
    %2185 = vmatpush1.msra.mxu0 0.0
    %2186 = vmatprep.subr.mxu0 0.0
    %2187 = vmatpush1.msra.mxu0 0.0
    %2188 = vmatprep.subr.mxu0 0.0
    %2189 = vmatpush1.msra.mxu0 0.0
    %2190 = vmatprep.subr.mxu0 0.0
    %2191 = vmatpush1.msra.mxu0 0.0
    %2192 = vmatprep.subr.mxu0 0.0
    %2193 = vmatpush1.msra.mxu0 0.0
    %2194 = vmatprep.mubr.f32.mxu0 0.0
    %2195 = vmatmul.mubr.f32.gmra.mrb[0].mxu0 %v2128
    %v2196 = vpop.f32.mrb[0].mxu0
    %v2197 = vadd.f32 0.0, %v2196
    %v2198 = vpop.f32.mrb[0].mxu0
    %v2199 = vadd.f32 0.0, %v2198
    %2200 = vdwg.mxu0
    %v2201 = vadd.f32 %v2199, %v2090
    %v2202 = vadd.f32 %v2201, %v38
    %v2203 = vxor.u32 %v2202, 2147483648
    %v2204 = vmul.f32 %v2203, 1.442695
    %v2205 = vpow.pop %v2204
    %v2206 = vadd.f32 %v2205, 1.0
    %v2207 = vrcp.pop %v2206
    %v2208 = vmul.f32 1.0, %v2207
    %v2209 = vtanh.pop %v2202
    %v2210 = vmul.f32 %v2208, %v2011
    %2212 = vrot.lane.b32.xlu0 %v2209, 64
    %v2213 = vpop.permute.xlu0 %2212
    %v2215 = vmul.f32 %v2208, %v2213
    %2217 = vrot.lane.b32.xlu0 %v2215, 32
    %v2218 = vpop.permute.xlu0 %2217
    %v2220 = vadd.f32 %v2210, %v2218
    %v2221 = vtanh.pop %v2220
    %2223 = vrot.lane.b32.xlu0 %v2221, 64
    %v2224 = vpop.permute.xlu0 %2223
    %v2226 = vmul.f32 %v2208, %v2224
    %2228 = vrot.lane.b32.xlu0 %v2226, 32
    %v2229 = vpop.permute.xlu0 %2228
    %v2230 = vsel %vm250, %v2229, 0
    %2232 = vmatprep.subr.mxu0 0.0
    %2233 = vmatpush1.msra.mxu0 %v34
    %2234 = vmatprep.subr.mxu0 0.0
    %2235 = vmatpush1.msra.mxu0 %v35
    %2236 = vmatprep.subr.mxu0 0.0
    %2237 = vmatpush1.msra.mxu0 %v36
    %2238 = vmatprep.subr.mxu0 0.0
    %2239 = vmatpush1.msra.mxu0 %v37
    %2240 = vmatprep.subr.mxu0 0.0
    %2241 = vmatpush1.msra.mxu0 0.0
    %2242 = vmatprep.subr.mxu0 0.0
    %2243 = vmatpush1.msra.mxu0 0.0
    %2244 = vmatprep.subr.mxu0 0.0
    %2245 = vmatpush1.msra.mxu0 0.0
    %2246 = vmatprep.subr.mxu0 0.0
    %2247 = vmatpush1.msra.mxu0 0.0
    %2248 = vmatprep.subr.mxu0 0.0
    %2249 = vmatpush1.msra.mxu0 0.0
    %2250 = vmatprep.subr.mxu0 0.0
    %2251 = vmatpush1.msra.mxu0 0.0
    %2252 = vmatprep.subr.mxu0 0.0
    %2253 = vmatpush1.msra.mxu0 0.0
    %2254 = vmatprep.subr.mxu0 0.0
    %2255 = vmatpush1.msra.mxu0 0.0
    %2256 = vmatprep.subr.mxu0 0.0
    %2257 = vmatpush1.msra.mxu0 0.0
    %2258 = vmatprep.subr.mxu0 0.0
    %2259 = vmatpush1.msra.mxu0 0.0
    %2260 = vmatprep.subr.mxu0 0.0
    %2261 = vmatpush1.msra.mxu0 0.0
    %2262 = vmatprep.subr.mxu0 0.0
    %2263 = vmatpush1.msra.mxu0 0.0
    %2264 = vmatprep.subr.mxu0 0.0
    %2265 = vmatpush1.msra.mxu0 0.0
    %2266 = vmatprep.subr.mxu0 0.0
    %2267 = vmatpush1.msra.mxu0 0.0
    %2268 = vmatprep.subr.mxu0 0.0
    %2269 = vmatpush1.msra.mxu0 0.0
    %2270 = vmatprep.subr.mxu0 0.0
    %2271 = vmatpush1.msra.mxu0 0.0
    %2272 = vmatprep.subr.mxu0 0.0
    %2273 = vmatpush1.msra.mxu0 0.0
    %2274 = vmatprep.subr.mxu0 0.0
    %2275 = vmatpush1.msra.mxu0 0.0
    %2276 = vmatprep.subr.mxu0 0.0
    %2277 = vmatpush1.msra.mxu0 0.0
    %2278 = vmatprep.subr.mxu0 0.0
    %2279 = vmatpush1.msra.mxu0 0.0
    %2280 = vmatprep.subr.mxu0 0.0
    %2281 = vmatpush1.msra.mxu0 0.0
    %2282 = vmatprep.subr.mxu0 0.0
    %2283 = vmatpush1.msra.mxu0 0.0
    %2284 = vmatprep.subr.mxu0 0.0
    %2285 = vmatpush1.msra.mxu0 0.0
    %2286 = vmatprep.subr.mxu0 0.0
    %2287 = vmatpush1.msra.mxu0 0.0
    %2288 = vmatprep.subr.mxu0 0.0
    %2289 = vmatpush1.msra.mxu0 0.0
    %2290 = vmatprep.subr.mxu0 0.0
    %2291 = vmatpush1.msra.mxu0 0.0
    %2292 = vmatprep.subr.mxu0 0.0
    %2293 = vmatpush1.msra.mxu0 0.0
    %2294 = vmatprep.subr.mxu0 0.0
    %2295 = vmatpush1.msra.mxu0 0.0
    %2296 = vmatprep.mubr.f32.mxu0 0.0
    %2297 = vmatmul.mubr.f32.gmra.mrb[0].mxu0 %v2230
    %v2298 = vpop.f32.mrb[0].mxu0
    %v2299 = vadd.f32 0.0, %v2298
    %v2300 = vpop.f32.mrb[0].mxu0
    %2301 = vdwg.mxu0
    %v2303 = vrot.slane %v2197, 6
    %v2305 = vadd.f32 %v219, %v2303
    %v2306 = vxor.u32 %v2305, 2147483648
    %v2307 = vmul.f32 %v2306, 1.442695
    %v2308 = vpow.pop %v2307
    %v2309 = vadd.f32 %v2308, 1.0
    %v2310 = vrcp.pop %v2309
    %v2311 = vmul.f32 1.0, %v2310
    %v2312 = vtanh.pop %v2305
    %v2314 = vrot.slane %v2117, 7
    %v2316 = vmul.f32 %v2311, %v2314
    %2318 = vrot.lane.b32.xlu0 %v2312, 64
    %v2319 = vpop.permute.xlu0 %2318
    %v2321 = vmul.f32 %v2311, %v2319
    %2323 = vrot.lane.b32.xlu0 %v2321, 32
    %v2324 = vpop.permute.xlu0 %2323
    %v2326 = vadd.f32 %v2316, %v2324
    %v2327 = vtanh.pop %v2326
    %2329 = vrot.lane.b32.xlu0 %v2327, 64
    %v2330 = vpop.permute.xlu0 %2329
    %v2332 = vmul.f32 %v2311, %v2330
    %v2334 = vrot.slane %v2332, 2
    %2335 = vrot.lane.b32.xlu0 %v2334, 32
    %v2336 = vpop.permute.xlu0 %2335
    %v2337 = vsel %vm250, %v2336, 0
    %2339 = vmatprep.subr.mxu0 %v27
    %2340 = vmatpush1.msra.mxu0 %v26
    %2341 = vmatprep.subr.mxu0 %v29
    %2342 = vmatpush1.msra.mxu0 %v28
    %2343 = vmatprep.subr.mxu0 %v31
    %2344 = vmatpush1.msra.mxu0 %v30
    %2345 = vmatprep.subr.mxu0 %v33
    %2346 = vmatpush1.msra.mxu0 %v32
    %2347 = vmatprep.subr.mxu0 0.0
    %2348 = vmatpush1.msra.mxu0 0.0
    %2349 = vmatprep.subr.mxu0 0.0
    %2350 = vmatpush1.msra.mxu0 0.0
    %2351 = vmatprep.subr.mxu0 0.0
    %2352 = vmatpush1.msra.mxu0 0.0
    %2353 = vmatprep.subr.mxu0 0.0
    %2354 = vmatpush1.msra.mxu0 0.0
    %2355 = vmatprep.subr.mxu0 0.0
    %2356 = vmatpush1.msra.mxu0 0.0
    %2357 = vmatprep.subr.mxu0 0.0
    %2358 = vmatpush1.msra.mxu0 0.0
    %2359 = vmatprep.subr.mxu0 0.0
    %2360 = vmatpush1.msra.mxu0 0.0
    %2361 = vmatprep.subr.mxu0 0.0
    %2362 = vmatpush1.msra.mxu0 0.0
    %2363 = vmatprep.subr.mxu0 0.0
    %2364 = vmatpush1.msra.mxu0 0.0
    %2365 = vmatprep.subr.mxu0 0.0
    %2366 = vmatpush1.msra.mxu0 0.0
    %2367 = vmatprep.subr.mxu0 0.0
    %2368 = vmatpush1.msra.mxu0 0.0
    %2369 = vmatprep.subr.mxu0 0.0
    %2370 = vmatpush1.msra.mxu0 0.0
    %2371 = vmatprep.subr.mxu0 0.0
    %2372 = vmatpush1.msra.mxu0 0.0
    %2373 = vmatprep.subr.mxu0 0.0
    %2374 = vmatpush1.msra.mxu0 0.0
    %2375 = vmatprep.subr.mxu0 0.0
    %2376 = vmatpush1.msra.mxu0 0.0
    %2377 = vmatprep.subr.mxu0 0.0
    %2378 = vmatpush1.msra.mxu0 0.0
    %2379 = vmatprep.subr.mxu0 0.0
    %2380 = vmatpush1.msra.mxu0 0.0
    %2381 = vmatprep.subr.mxu0 0.0
    %2382 = vmatpush1.msra.mxu0 0.0
    %2383 = vmatprep.subr.mxu0 0.0
    %2384 = vmatpush1.msra.mxu0 0.0
    %2385 = vmatprep.subr.mxu0 0.0
    %2386 = vmatpush1.msra.mxu0 0.0
    %2387 = vmatprep.subr.mxu0 0.0
    %2388 = vmatpush1.msra.mxu0 0.0
    %2389 = vmatprep.subr.mxu0 0.0
    %2390 = vmatpush1.msra.mxu0 0.0
    %2391 = vmatprep.subr.mxu0 0.0
    %2392 = vmatpush1.msra.mxu0 0.0
    %2393 = vmatprep.subr.mxu0 0.0
    %2394 = vmatpush1.msra.mxu0 0.0
    %2395 = vmatprep.subr.mxu0 0.0
    %2396 = vmatpush1.msra.mxu0 0.0
    %2397 = vmatprep.subr.mxu0 0.0
    %2398 = vmatpush1.msra.mxu0 0.0
    %2399 = vmatprep.subr.mxu0 0.0
    %2400 = vmatpush1.msra.mxu0 0.0
    %2401 = vmatprep.subr.mxu0 0.0
    %2402 = vmatpush1.msra.mxu0 0.0
    %2403 = vmatprep.mubr.f32.mxu0 0.0
    %2404 = vmatmul.mubr.f32.gmra.mrb[0].mxu0 %v2337
    %v2405 = vpop.f32.mrb[0].mxu0
    %v2406 = vadd.f32 0.0, %v2405
    %v2407 = vpop.f32.mrb[0].mxu0
    %v2408 = vadd.f32 0.0, %v2407
    %2409 = vdwg.mxu0
    %v2410 = vadd.f32 %v2408, %v2299
    %v2411 = vadd.f32 %v2410, %v38
    %v2412 = vxor.u32 %v2411, 2147483648
    %v2413 = vmul.f32 %v2412, 1.442695
    %v2414 = vpow.pop %v2413
    %v2415 = vadd.f32 %v2414, 1.0
    %v2416 = vrcp.pop %v2415
    %v2417 = vmul.f32 1.0, %v2416
    %v2418 = vtanh.pop %v2411
    %v2419 = vmul.f32 %v2417, %v2220
    %2421 = vrot.lane.b32.xlu0 %v2418, 64
    %v2422 = vpop.permute.xlu0 %2421
    %v2424 = vmul.f32 %v2417, %v2422
    %2426 = vrot.lane.b32.xlu0 %v2424, 32
    %v2427 = vpop.permute.xlu0 %2426
    %v2429 = vadd.f32 %v2419, %v2427
    %v2430 = vtanh.pop %v2429
    %2432 = vrot.lane.b32.xlu0 %v2430, 64
    %v2433 = vpop.permute.xlu0 %2432
    %v2435 = vmul.f32 %v2417, %v2433
    %2437 = vrot.lane.b32.xlu0 %v2435, 32
    %v2438 = vpop.permute.xlu0 %2437
    %v2439 = vsel %vm250, %v2438, 0
    %2441 = vmatprep.subr.mxu0 0.0
    %2442 = vmatpush1.msra.mxu0 %v34
    %2443 = vmatprep.subr.mxu0 0.0
    %2444 = vmatpush1.msra.mxu0 %v35
    %2445 = vmatprep.subr.mxu0 0.0
    %2446 = vmatpush1.msra.mxu0 %v36
    %2447 = vmatprep.subr.mxu0 0.0
    %2448 = vmatpush1.msra.mxu0 %v37
    %2449 = vmatprep.subr.mxu0 0.0
    %2450 = vmatpush1.msra.mxu0 0.0
    %2451 = vmatprep.subr.mxu0 0.0
    %2452 = vmatpush1.msra.mxu0 0.0
    %2453 = vmatprep.subr.mxu0 0.0
    %2454 = vmatpush1.msra.mxu0 0.0
    %2455 = vmatprep.subr.mxu0 0.0
    %2456 = vmatpush1.msra.mxu0 0.0
    %2457 = vmatprep.subr.mxu0 0.0
    %2458 = vmatpush1.msra.mxu0 0.0
    %2459 = vmatprep.subr.mxu0 0.0
    %2460 = vmatpush1.msra.mxu0 0.0
    %2461 = vmatprep.subr.mxu0 0.0
    %2462 = vmatpush1.msra.mxu0 0.0
    %2463 = vmatprep.subr.mxu0 0.0
    %2464 = vmatpush1.msra.mxu0 0.0
    %2465 = vmatprep.subr.mxu0 0.0
    %2466 = vmatpush1.msra.mxu0 0.0
    %2467 = vmatprep.subr.mxu0 0.0
    %2468 = vmatpush1.msra.mxu0 0.0
    %2469 = vmatprep.subr.mxu0 0.0
    %2470 = vmatpush1.msra.mxu0 0.0
    %2471 = vmatprep.subr.mxu0 0.0
    %2472 = vmatpush1.msra.mxu0 0.0
    %2473 = vmatprep.subr.mxu0 0.0
    %2474 = vmatpush1.msra.mxu0 0.0
    %2475 = vmatprep.subr.mxu0 0.0
    %2476 = vmatpush1.msra.mxu0 0.0
    %2477 = vmatprep.subr.mxu0 0.0
    %2478 = vmatpush1.msra.mxu0 0.0
    %2479 = vmatprep.subr.mxu0 0.0
    %2480 = vmatpush1.msra.mxu0 0.0
    %2481 = vmatprep.subr.mxu0 0.0
    %2482 = vmatpush1.msra.mxu0 0.0
    %2483 = vmatprep.subr.mxu0 0.0
    %2484 = vmatpush1.msra.mxu0 0.0
    %2485 = vmatprep.subr.mxu0 0.0
    %2486 = vmatpush1.msra.mxu0 0.0
    %2487 = vmatprep.subr.mxu0 0.0
    %2488 = vmatpush1.msra.mxu0 0.0
    %2489 = vmatprep.subr.mxu0 0.0
    %2490 = vmatpush1.msra.mxu0 0.0
    %2491 = vmatprep.subr.mxu0 0.0
    %2492 = vmatpush1.msra.mxu0 0.0
    %2493 = vmatprep.subr.mxu0 0.0
    %2494 = vmatpush1.msra.mxu0 0.0
    %2495 = vmatprep.subr.mxu0 0.0
    %2496 = vmatpush1.msra.mxu0 0.0
    %2497 = vmatprep.subr.mxu0 0.0
    %2498 = vmatpush1.msra.mxu0 0.0
    %2499 = vmatprep.subr.mxu0 0.0
    %2500 = vmatpush1.msra.mxu0 0.0
    %2501 = vmatprep.subr.mxu0 0.0
    %2502 = vmatpush1.msra.mxu0 0.0
    %2503 = vmatprep.subr.mxu0 0.0
    %2504 = vmatpush1.msra.mxu0 0.0
    %2505 = vmatprep.mubr.f32.mxu0 0.0
    %2506 = vmatmul.mubr.f32.gmra.mrb[0].mxu0 %v2439
    %v2507 = vpop.f32.mrb[0].mxu0
    %v2508 = vadd.f32 0.0, %v2507
    %v2509 = vpop.f32.mrb[0].mxu0
    %2510 = vdwg.mxu0
    %v2512 = vrot.slane %v2406, 5
    %v2514 = vadd.f32 %v219, %v2512
    %v2515 = vxor.u32 %v2514, 2147483648
    %v2516 = vmul.f32 %v2515, 1.442695
    %v2517 = vpow.pop %v2516
    %v2518 = vadd.f32 %v2517, 1.0
    %v2519 = vrcp.pop %v2518
    %v2520 = vmul.f32 1.0, %v2519
    %v2521 = vtanh.pop %v2514
    %v2523 = vrot.slane %v2326, 7
    %v2525 = vmul.f32 %v2520, %v2523
    %2527 = vrot.lane.b32.xlu0 %v2521, 64
    %v2528 = vpop.permute.xlu0 %2527
    %v2530 = vmul.f32 %v2520, %v2528
    %2532 = vrot.lane.b32.xlu0 %v2530, 32
    %v2533 = vpop.permute.xlu0 %2532
    %v2535 = vadd.f32 %v2525, %v2533
    %v2536 = vtanh.pop %v2535
    %2538 = vrot.lane.b32.xlu0 %v2536, 64
    %v2539 = vpop.permute.xlu0 %2538
    %v2541 = vmul.f32 %v2520, %v2539
    %v2543 = vrot.slane %v2541, 3
    %2544 = vrot.lane.b32.xlu0 %v2543, 32
    %v2545 = vpop.permute.xlu0 %2544
    %v2546 = vsel %vm250, %v2545, 0
    %2548 = vmatprep.subr.mxu0 %v27
    %2549 = vmatpush1.msra.mxu0 %v26
    %2550 = vmatprep.subr.mxu0 %v29
    %2551 = vmatpush1.msra.mxu0 %v28
    %2552 = vmatprep.subr.mxu0 %v31
    %2553 = vmatpush1.msra.mxu0 %v30
    %2554 = vmatprep.subr.mxu0 %v33
    %2555 = vmatpush1.msra.mxu0 %v32
    %2556 = vmatprep.subr.mxu0 0.0
    %2557 = vmatpush1.msra.mxu0 0.0
    %2558 = vmatprep.subr.mxu0 0.0
    %2559 = vmatpush1.msra.mxu0 0.0
    %2560 = vmatprep.subr.mxu0 0.0
    %2561 = vmatpush1.msra.mxu0 0.0
    %2562 = vmatprep.subr.mxu0 0.0
    %2563 = vmatpush1.msra.mxu0 0.0
    %2564 = vmatprep.subr.mxu0 0.0
    %2565 = vmatpush1.msra.mxu0 0.0
    %2566 = vmatprep.subr.mxu0 0.0
    %2567 = vmatpush1.msra.mxu0 0.0
    %2568 = vmatprep.subr.mxu0 0.0
    %2569 = vmatpush1.msra.mxu0 0.0
    %2570 = vmatprep.subr.mxu0 0.0
    %2571 = vmatpush1.msra.mxu0 0.0
    %2572 = vmatprep.subr.mxu0 0.0
    %2573 = vmatpush1.msra.mxu0 0.0
    %2574 = vmatprep.subr.mxu0 0.0
    %2575 = vmatpush1.msra.mxu0 0.0
    %2576 = vmatprep.subr.mxu0 0.0
    %2577 = vmatpush1.msra.mxu0 0.0
    %2578 = vmatprep.subr.mxu0 0.0
    %2579 = vmatpush1.msra.mxu0 0.0
    %2580 = vmatprep.subr.mxu0 0.0
    %2581 = vmatpush1.msra.mxu0 0.0
    %2582 = vmatprep.subr.mxu0 0.0
    %2583 = vmatpush1.msra.mxu0 0.0
    %2584 = vmatprep.subr.mxu0 0.0
    %2585 = vmatpush1.msra.mxu0 0.0
    %2586 = vmatprep.subr.mxu0 0.0
    %2587 = vmatpush1.msra.mxu0 0.0
    %2588 = vmatprep.subr.mxu0 0.0
    %2589 = vmatpush1.msra.mxu0 0.0
    %2590 = vmatprep.subr.mxu0 0.0
    %2591 = vmatpush1.msra.mxu0 0.0
    %2592 = vmatprep.subr.mxu0 0.0
    %2593 = vmatpush1.msra.mxu0 0.0
    %2594 = vmatprep.subr.mxu0 0.0
    %2595 = vmatpush1.msra.mxu0 0.0
    %2596 = vmatprep.subr.mxu0 0.0
    %2597 = vmatpush1.msra.mxu0 0.0
    %2598 = vmatprep.subr.mxu0 0.0
    %2599 = vmatpush1.msra.mxu0 0.0
    %2600 = vmatprep.subr.mxu0 0.0
    %2601 = vmatpush1.msra.mxu0 0.0
    %2602 = vmatprep.subr.mxu0 0.0
    %2603 = vmatpush1.msra.mxu0 0.0
    %2604 = vmatprep.subr.mxu0 0.0
    %2605 = vmatpush1.msra.mxu0 0.0
    %2606 = vmatprep.subr.mxu0 0.0
    %2607 = vmatpush1.msra.mxu0 0.0
    %2608 = vmatprep.subr.mxu0 0.0
    %2609 = vmatpush1.msra.mxu0 0.0
    %2610 = vmatprep.subr.mxu0 0.0
    %2611 = vmatpush1.msra.mxu0 0.0
    %2612 = vmatprep.mubr.f32.mxu0 0.0
    %2613 = vmatmul.mubr.f32.gmra.mrb[0].mxu0 %v2546
    %v2614 = vpop.f32.mrb[0].mxu0
    %v2615 = vadd.f32 0.0, %v2614
    %v2616 = vpop.f32.mrb[0].mxu0
    %v2617 = vadd.f32 0.0, %v2616
    %2618 = vdwg.mxu0
    %v2619 = vadd.f32 %v2617, %v2508
    %v2620 = vadd.f32 %v2619, %v38
    %v2621 = vxor.u32 %v2620, 2147483648
    %v2622 = vmul.f32 %v2621, 1.442695
    %v2623 = vpow.pop %v2622
    %v2624 = vadd.f32 %v2623, 1.0
    %v2625 = vrcp.pop %v2624
    %v2626 = vmul.f32 1.0, %v2625
    %v2627 = vtanh.pop %v2620
    %v2628 = vmul.f32 %v2626, %v2429
    %2630 = vrot.lane.b32.xlu0 %v2627, 64
    %v2631 = vpop.permute.xlu0 %2630
    %v2633 = vmul.f32 %v2626, %v2631
    %2635 = vrot.lane.b32.xlu0 %v2633, 32
    %v2636 = vpop.permute.xlu0 %2635
    %v2638 = vadd.f32 %v2628, %v2636
    %v2639 = vtanh.pop %v2638
    %2641 = vrot.lane.b32.xlu0 %v2639, 64
    %v2642 = vpop.permute.xlu0 %2641
    %v2644 = vmul.f32 %v2626, %v2642
    %2646 = vrot.lane.b32.xlu0 %v2644, 32
    %v2647 = vpop.permute.xlu0 %2646
    %v2648 = vsel %vm250, %v2647, 0
    %2650 = vmatprep.subr.mxu0 0.0
    %2651 = vmatpush1.msra.mxu0 %v34
    %2652 = vmatprep.subr.mxu0 0.0
    %2653 = vmatpush1.msra.mxu0 %v35
    %2654 = vmatprep.subr.mxu0 0.0
    %2655 = vmatpush1.msra.mxu0 %v36
    %2656 = vmatprep.subr.mxu0 0.0
    %2657 = vmatpush1.msra.mxu0 %v37
    %2658 = vmatprep.subr.mxu0 0.0
    %2659 = vmatpush1.msra.mxu0 0.0
    %2660 = vmatprep.subr.mxu0 0.0
    %2661 = vmatpush1.msra.mxu0 0.0
    %2662 = vmatprep.subr.mxu0 0.0
    %2663 = vmatpush1.msra.mxu0 0.0
    %2664 = vmatprep.subr.mxu0 0.0
    %2665 = vmatpush1.msra.mxu0 0.0
    %2666 = vmatprep.subr.mxu0 0.0
    %2667 = vmatpush1.msra.mxu0 0.0
    %2668 = vmatprep.subr.mxu0 0.0
    %2669 = vmatpush1.msra.mxu0 0.0
    %2670 = vmatprep.subr.mxu0 0.0
    %2671 = vmatpush1.msra.mxu0 0.0
    %2672 = vmatprep.subr.mxu0 0.0
    %2673 = vmatpush1.msra.mxu0 0.0
    %2674 = vmatprep.subr.mxu0 0.0
    %2675 = vmatpush1.msra.mxu0 0.0
    %2676 = vmatprep.subr.mxu0 0.0
    %2677 = vmatpush1.msra.mxu0 0.0
    %2678 = vmatprep.subr.mxu0 0.0
    %2679 = vmatpush1.msra.mxu0 0.0
    %2680 = vmatprep.subr.mxu0 0.0
    %2681 = vmatpush1.msra.mxu0 0.0
    %2682 = vmatprep.subr.mxu0 0.0
    %2683 = vmatpush1.msra.mxu0 0.0
    %2684 = vmatprep.subr.mxu0 0.0
    %2685 = vmatpush1.msra.mxu0 0.0
    %2686 = vmatprep.subr.mxu0 0.0
    %2687 = vmatpush1.msra.mxu0 0.0
    %2688 = vmatprep.subr.mxu0 0.0
    %2689 = vmatpush1.msra.mxu0 0.0
    %2690 = vmatprep.subr.mxu0 0.0
    %2691 = vmatpush1.msra.mxu0 0.0
    %2692 = vmatprep.subr.mxu0 0.0
    %2693 = vmatpush1.msra.mxu0 0.0
    %2694 = vmatprep.subr.mxu0 0.0
    %2695 = vmatpush1.msra.mxu0 0.0
    %2696 = vmatprep.subr.mxu0 0.0
    %2697 = vmatpush1.msra.mxu0 0.0
    %2698 = vmatprep.subr.mxu0 0.0
    %2699 = vmatpush1.msra.mxu0 0.0
    %2700 = vmatprep.subr.mxu0 0.0
    %2701 = vmatpush1.msra.mxu0 0.0
    %2702 = vmatprep.subr.mxu0 0.0
    %2703 = vmatpush1.msra.mxu0 0.0
    %2704 = vmatprep.subr.mxu0 0.0
    %2705 = vmatpush1.msra.mxu0 0.0
    %2706 = vmatprep.subr.mxu0 0.0
    %2707 = vmatpush1.msra.mxu0 0.0
    %2708 = vmatprep.subr.mxu0 0.0
    %2709 = vmatpush1.msra.mxu0 0.0
    %2710 = vmatprep.subr.mxu0 0.0
    %2711 = vmatpush1.msra.mxu0 0.0
    %2712 = vmatprep.subr.mxu0 0.0
    %2713 = vmatpush1.msra.mxu0 0.0
    %2714 = vmatprep.mubr.f32.mxu0 0.0
    %2715 = vmatmul.mubr.f32.gmra.mrb[0].mxu0 %v2648
    %v2716 = vpop.f32.mrb[0].mxu0
    %v2717 = vadd.f32 0.0, %v2716
    %v2718 = vpop.f32.mrb[0].mxu0
    %2719 = vdwg.mxu0
    %v2721 = vrot.slane %v2615, 4
    %v2723 = vadd.f32 %v219, %v2721
    %v2724 = vxor.u32 %v2723, 2147483648
    %v2725 = vmul.f32 %v2724, 1.442695
    %v2726 = vpow.pop %v2725
    %v2727 = vadd.f32 %v2726, 1.0
    %v2728 = vrcp.pop %v2727
    %v2729 = vmul.f32 1.0, %v2728
    %v2730 = vtanh.pop %v2723
    %v2732 = vrot.slane %v2535, 7
    %v2734 = vmul.f32 %v2729, %v2732
    %2736 = vrot.lane.b32.xlu0 %v2730, 64
    %v2737 = vpop.permute.xlu0 %2736
    %v2739 = vmul.f32 %v2729, %v2737
    %2741 = vrot.lane.b32.xlu0 %v2739, 32
    %v2742 = vpop.permute.xlu0 %2741
    %v2744 = vadd.f32 %v2734, %v2742
    %v2745 = vtanh.pop %v2744
    %2747 = vrot.lane.b32.xlu0 %v2745, 64
    %v2748 = vpop.permute.xlu0 %2747
    %v2750 = vmul.f32 %v2729, %v2748
    %v2752 = vrot.slane %v2750, 4
    %2753 = vrot.lane.b32.xlu0 %v2752, 32
    %v2754 = vpop.permute.xlu0 %2753
    %v2755 = vsel %vm250, %v2754, 0
    %2757 = vmatprep.subr.mxu0 %v27
    %2758 = vmatpush1.msra.mxu0 %v26
    %2759 = vmatprep.subr.mxu0 %v29
    %2760 = vmatpush1.msra.mxu0 %v28
    %2761 = vmatprep.subr.mxu0 %v31
    %2762 = vmatpush1.msra.mxu0 %v30
    %2763 = vmatprep.subr.mxu0 %v33
    %2764 = vmatpush1.msra.mxu0 %v32
    %2765 = vmatprep.subr.mxu0 0.0
    %2766 = vmatpush1.msra.mxu0 0.0
    %2767 = vmatprep.subr.mxu0 0.0
    %2768 = vmatpush1.msra.mxu0 0.0
    %2769 = vmatprep.subr.mxu0 0.0
    %2770 = vmatpush1.msra.mxu0 0.0
    %2771 = vmatprep.subr.mxu0 0.0
    %2772 = vmatpush1.msra.mxu0 0.0
    %2773 = vmatprep.subr.mxu0 0.0
    %2774 = vmatpush1.msra.mxu0 0.0
    %2775 = vmatprep.subr.mxu0 0.0
    %2776 = vmatpush1.msra.mxu0 0.0
    %2777 = vmatprep.subr.mxu0 0.0
    %2778 = vmatpush1.msra.mxu0 0.0
    %2779 = vmatprep.subr.mxu0 0.0
    %2780 = vmatpush1.msra.mxu0 0.0
    %2781 = vmatprep.subr.mxu0 0.0
    %2782 = vmatpush1.msra.mxu0 0.0
    %2783 = vmatprep.subr.mxu0 0.0
    %2784 = vmatpush1.msra.mxu0 0.0
    %2785 = vmatprep.subr.mxu0 0.0
    %2786 = vmatpush1.msra.mxu0 0.0
    %2787 = vmatprep.subr.mxu0 0.0
    %2788 = vmatpush1.msra.mxu0 0.0
    %2789 = vmatprep.subr.mxu0 0.0
    %2790 = vmatpush1.msra.mxu0 0.0
    %2791 = vmatprep.subr.mxu0 0.0
    %2792 = vmatpush1.msra.mxu0 0.0
    %2793 = vmatprep.subr.mxu0 0.0
    %2794 = vmatpush1.msra.mxu0 0.0
    %2795 = vmatprep.subr.mxu0 0.0
    %2796 = vmatpush1.msra.mxu0 0.0
    %2797 = vmatprep.subr.mxu0 0.0
    %2798 = vmatpush1.msra.mxu0 0.0
    %2799 = vmatprep.subr.mxu0 0.0
    %2800 = vmatpush1.msra.mxu0 0.0
    %2801 = vmatprep.subr.mxu0 0.0
    %2802 = vmatpush1.msra.mxu0 0.0
    %2803 = vmatprep.subr.mxu0 0.0
    %2804 = vmatpush1.msra.mxu0 0.0
    %2805 = vmatprep.subr.mxu0 0.0
    %2806 = vmatpush1.msra.mxu0 0.0
    %2807 = vmatprep.subr.mxu0 0.0
    %2808 = vmatpush1.msra.mxu0 0.0
    %2809 = vmatprep.subr.mxu0 0.0
    %2810 = vmatpush1.msra.mxu0 0.0
    %2811 = vmatprep.subr.mxu0 0.0
    %2812 = vmatpush1.msra.mxu0 0.0
    %2813 = vmatprep.subr.mxu0 0.0
    %2814 = vmatpush1.msra.mxu0 0.0
    %2815 = vmatprep.subr.mxu0 0.0
    %2816 = vmatpush1.msra.mxu0 0.0
    %2817 = vmatprep.subr.mxu0 0.0
    %2818 = vmatpush1.msra.mxu0 0.0
    %2819 = vmatprep.subr.mxu0 0.0
    %2820 = vmatpush1.msra.mxu0 0.0
    %2821 = vmatprep.mubr.f32.mxu0 0.0
    %2822 = vmatmul.mubr.f32.gmra.mrb[0].mxu0 %v2755
    %v2823 = vpop.f32.mrb[0].mxu0
    %v2824 = vadd.f32 0.0, %v2823
    %v2825 = vpop.f32.mrb[0].mxu0
    %v2826 = vadd.f32 0.0, %v2825
    %2827 = vdwg.mxu0
    %v2828 = vadd.f32 %v2826, %v2717
    %v2829 = vadd.f32 %v2828, %v38
    %v2830 = vxor.u32 %v2829, 2147483648
    %v2831 = vmul.f32 %v2830, 1.442695
    %v2832 = vpow.pop %v2831
    %v2833 = vadd.f32 %v2832, 1.0
    %v2834 = vrcp.pop %v2833
    %v2835 = vmul.f32 1.0, %v2834
    %v2836 = vtanh.pop %v2829
    %v2837 = vmul.f32 %v2835, %v2638
    %2839 = vrot.lane.b32.xlu0 %v2836, 64
    %v2840 = vpop.permute.xlu0 %2839
    %v2842 = vmul.f32 %v2835, %v2840
    %2844 = vrot.lane.b32.xlu0 %v2842, 32
    %v2845 = vpop.permute.xlu0 %2844
    %v2847 = vadd.f32 %v2837, %v2845
    %v2848 = vtanh.pop %v2847
    %2850 = vrot.lane.b32.xlu0 %v2848, 64
    %v2851 = vpop.permute.xlu0 %2850
    %v2853 = vmul.f32 %v2835, %v2851
    %2855 = vrot.lane.b32.xlu0 %v2853, 32
    %v2856 = vpop.permute.xlu0 %2855
    %v2857 = vsel %vm250, %v2856, 0
    %2859 = vmatprep.subr.mxu0 0.0
    %2860 = vmatpush1.msra.mxu0 %v34
    %2861 = vmatprep.subr.mxu0 0.0
    %2862 = vmatpush1.msra.mxu0 %v35
    %2863 = vmatprep.subr.mxu0 0.0
    %2864 = vmatpush1.msra.mxu0 %v36
    %2865 = vmatprep.subr.mxu0 0.0
    %2866 = vmatpush1.msra.mxu0 %v37
    %2867 = vmatprep.subr.mxu0 0.0
    %2868 = vmatpush1.msra.mxu0 0.0
    %2869 = vmatprep.subr.mxu0 0.0
    %2870 = vmatpush1.msra.mxu0 0.0
    %2871 = vmatprep.subr.mxu0 0.0
    %2872 = vmatpush1.msra.mxu0 0.0
    %2873 = vmatprep.subr.mxu0 0.0
    %2874 = vmatpush1.msra.mxu0 0.0
    %2875 = vmatprep.subr.mxu0 0.0
    %2876 = vmatpush1.msra.mxu0 0.0
    %2877 = vmatprep.subr.mxu0 0.0
    %2878 = vmatpush1.msra.mxu0 0.0
    %2879 = vmatprep.subr.mxu0 0.0
    %2880 = vmatpush1.msra.mxu0 0.0
    %2881 = vmatprep.subr.mxu0 0.0
    %2882 = vmatpush1.msra.mxu0 0.0
    %2883 = vmatprep.subr.mxu0 0.0
    %2884 = vmatpush1.msra.mxu0 0.0
    %2885 = vmatprep.subr.mxu0 0.0
    %2886 = vmatpush1.msra.mxu0 0.0
    %2887 = vmatprep.subr.mxu0 0.0
    %2888 = vmatpush1.msra.mxu0 0.0
    %2889 = vmatprep.subr.mxu0 0.0
    %2890 = vmatpush1.msra.mxu0 0.0
    %2891 = vmatprep.subr.mxu0 0.0
    %2892 = vmatpush1.msra.mxu0 0.0
    %2893 = vmatprep.subr.mxu0 0.0
    %2894 = vmatpush1.msra.mxu0 0.0
    %2895 = vmatprep.subr.mxu0 0.0
    %2896 = vmatpush1.msra.mxu0 0.0
    %2897 = vmatprep.subr.mxu0 0.0
    %2898 = vmatpush1.msra.mxu0 0.0
    %2899 = vmatprep.subr.mxu0 0.0
    %2900 = vmatpush1.msra.mxu0 0.0
    %2901 = vmatprep.subr.mxu0 0.0
    %2902 = vmatpush1.msra.mxu0 0.0
    %2903 = vmatprep.subr.mxu0 0.0
    %2904 = vmatpush1.msra.mxu0 0.0
    %2905 = vmatprep.subr.mxu0 0.0
    %2906 = vmatpush1.msra.mxu0 0.0
    %2907 = vmatprep.subr.mxu0 0.0
    %2908 = vmatpush1.msra.mxu0 0.0
    %2909 = vmatprep.subr.mxu0 0.0
    %2910 = vmatpush1.msra.mxu0 0.0
    %2911 = vmatprep.subr.mxu0 0.0
    %2912 = vmatpush1.msra.mxu0 0.0
    %2913 = vmatprep.subr.mxu0 0.0
    %2914 = vmatpush1.msra.mxu0 0.0
    %2915 = vmatprep.subr.mxu0 0.0
    %2916 = vmatpush1.msra.mxu0 0.0
    %2917 = vmatprep.subr.mxu0 0.0
    %2918 = vmatpush1.msra.mxu0 0.0
    %2919 = vmatprep.subr.mxu0 0.0
    %2920 = vmatpush1.msra.mxu0 0.0
    %2921 = vmatprep.subr.mxu0 0.0
    %2922 = vmatpush1.msra.mxu0 0.0
    %2923 = vmatprep.mubr.f32.mxu0 0.0
    %2924 = vmatmul.mubr.f32.gmra.mrb[0].mxu0 %v2857
    %v2925 = vpop.f32.mrb[0].mxu0
    %v2926 = vadd.f32 0.0, %v2925
    %v2927 = vpop.f32.mrb[0].mxu0
    %2928 = vdwg.mxu0
    %v2930 = vrot.slane %v2824, 3
    %v2932 = vadd.f32 %v219, %v2930
    %v2933 = vxor.u32 %v2932, 2147483648
    %v2934 = vmul.f32 %v2933, 1.442695
    %v2935 = vpow.pop %v2934
    %v2936 = vadd.f32 %v2935, 1.0
    %v2937 = vrcp.pop %v2936
    %v2938 = vmul.f32 1.0, %v2937
    %v2939 = vtanh.pop %v2932
    %v2941 = vrot.slane %v2744, 7
    %v2943 = vmul.f32 %v2938, %v2941
    %2945 = vrot.lane.b32.xlu0 %v2939, 64
    %v2946 = vpop.permute.xlu0 %2945
    %v2948 = vmul.f32 %v2938, %v2946
    %2950 = vrot.lane.b32.xlu0 %v2948, 32
    %v2951 = vpop.permute.xlu0 %2950
    %v2953 = vadd.f32 %v2943, %v2951
    %v2954 = vtanh.pop %v2953
    %2956 = vrot.lane.b32.xlu0 %v2954, 64
    %v2957 = vpop.permute.xlu0 %2956
    %v2959 = vmul.f32 %v2938, %v2957
    %v2961 = vrot.slane %v2959, 5
    %2962 = vrot.lane.b32.xlu0 %v2961, 32
    %v2963 = vpop.permute.xlu0 %2962
    %v2964 = vsel %vm250, %v2963, 0
    %2966 = vmatprep.subr.mxu0 %v27
    %2967 = vmatpush1.msra.mxu0 %v26
    %2968 = vmatprep.subr.mxu0 %v29
    %2969 = vmatpush1.msra.mxu0 %v28
    %2970 = vmatprep.subr.mxu0 %v31
    %2971 = vmatpush1.msra.mxu0 %v30
    %2972 = vmatprep.subr.mxu0 %v33
    %2973 = vmatpush1.msra.mxu0 %v32
    %2974 = vmatprep.subr.mxu0 0.0
    %2975 = vmatpush1.msra.mxu0 0.0
    %2976 = vmatprep.subr.mxu0 0.0
    %2977 = vmatpush1.msra.mxu0 0.0
    %2978 = vmatprep.subr.mxu0 0.0
    %2979 = vmatpush1.msra.mxu0 0.0
    %2980 = vmatprep.subr.mxu0 0.0
    %2981 = vmatpush1.msra.mxu0 0.0
    %2982 = vmatprep.subr.mxu0 0.0
    %2983 = vmatpush1.msra.mxu0 0.0
    %2984 = vmatprep.subr.mxu0 0.0
    %2985 = vmatpush1.msra.mxu0 0.0
    %2986 = vmatprep.subr.mxu0 0.0
    %2987 = vmatpush1.msra.mxu0 0.0
    %2988 = vmatprep.subr.mxu0 0.0
    %2989 = vmatpush1.msra.mxu0 0.0
    %2990 = vmatprep.subr.mxu0 0.0
    %2991 = vmatpush1.msra.mxu0 0.0
    %2992 = vmatprep.subr.mxu0 0.0
    %2993 = vmatpush1.msra.mxu0 0.0
    %2994 = vmatprep.subr.mxu0 0.0
    %2995 = vmatpush1.msra.mxu0 0.0
    %2996 = vmatprep.subr.mxu0 0.0
    %2997 = vmatpush1.msra.mxu0 0.0
    %2998 = vmatprep.subr.mxu0 0.0
    %2999 = vmatpush1.msra.mxu0 0.0
    %3000 = vmatprep.subr.mxu0 0.0
    %3001 = vmatpush1.msra.mxu0 0.0
    %3002 = vmatprep.subr.mxu0 0.0
    %3003 = vmatpush1.msra.mxu0 0.0
    %3004 = vmatprep.subr.mxu0 0.0
    %3005 = vmatpush1.msra.mxu0 0.0
    %3006 = vmatprep.subr.mxu0 0.0
    %3007 = vmatpush1.msra.mxu0 0.0
    %3008 = vmatprep.subr.mxu0 0.0
    %3009 = vmatpush1.msra.mxu0 0.0
    %3010 = vmatprep.subr.mxu0 0.0
    %3011 = vmatpush1.msra.mxu0 0.0
    %3012 = vmatprep.subr.mxu0 0.0
    %3013 = vmatpush1.msra.mxu0 0.0
    %3014 = vmatprep.subr.mxu0 0.0
    %3015 = vmatpush1.msra.mxu0 0.0
    %3016 = vmatprep.subr.mxu0 0.0
    %3017 = vmatpush1.msra.mxu0 0.0
    %3018 = vmatprep.subr.mxu0 0.0
    %3019 = vmatpush1.msra.mxu0 0.0
    %3020 = vmatprep.subr.mxu0 0.0
    %3021 = vmatpush1.msra.mxu0 0.0
    %3022 = vmatprep.subr.mxu0 0.0
    %3023 = vmatpush1.msra.mxu0 0.0
    %3024 = vmatprep.subr.mxu0 0.0
    %3025 = vmatpush1.msra.mxu0 0.0
    %3026 = vmatprep.subr.mxu0 0.0
    %3027 = vmatpush1.msra.mxu0 0.0
    %3028 = vmatprep.subr.mxu0 0.0
    %3029 = vmatpush1.msra.mxu0 0.0
    %3030 = vmatprep.mubr.f32.mxu0 0.0
    %3031 = vmatmul.mubr.f32.gmra.mrb[0].mxu0 %v2964
    %v3032 = vpop.f32.mrb[0].mxu0
    %v3033 = vadd.f32 0.0, %v3032
    %v3034 = vpop.f32.mrb[0].mxu0
    %v3035 = vadd.f32 0.0, %v3034
    %3036 = vdwg.mxu0
    %v3037 = vadd.f32 %v3035, %v2926
    %v3038 = vadd.f32 %v3037, %v38
    %v3039 = vxor.u32 %v3038, 2147483648
    %v3040 = vmul.f32 %v3039, 1.442695
    %v3041 = vpow.pop %v3040
    %v3042 = vadd.f32 %v3041, 1.0
    %v3043 = vrcp.pop %v3042
    %v3044 = vmul.f32 1.0, %v3043
    %v3045 = vtanh.pop %v3038
    %v3046 = vmul.f32 %v3044, %v2847
    %3048 = vrot.lane.b32.xlu0 %v3045, 64
    %v3049 = vpop.permute.xlu0 %3048
    %v3051 = vmul.f32 %v3044, %v3049
    %3053 = vrot.lane.b32.xlu0 %v3051, 32
    %v3054 = vpop.permute.xlu0 %3053
    %v3056 = vadd.f32 %v3046, %v3054
    %v3057 = vtanh.pop %v3056
    %3059 = vrot.lane.b32.xlu0 %v3057, 64
    %v3060 = vpop.permute.xlu0 %3059
    %v3062 = vmul.f32 %v3044, %v3060
    %3064 = vrot.lane.b32.xlu0 %v3062, 32
    %v3065 = vpop.permute.xlu0 %3064
    %v3066 = vsel %vm250, %v3065, 0
    %3068 = vmatprep.subr.mxu0 0.0
    %3069 = vmatpush1.msra.mxu0 %v34
    %3070 = vmatprep.subr.mxu0 0.0
    %3071 = vmatpush1.msra.mxu0 %v35
    %3072 = vmatprep.subr.mxu0 0.0
    %3073 = vmatpush1.msra.mxu0 %v36
    %3074 = vmatprep.subr.mxu0 0.0
    %3075 = vmatpush1.msra.mxu0 %v37
    %3076 = vmatprep.subr.mxu0 0.0
    %3077 = vmatpush1.msra.mxu0 0.0
    %3078 = vmatprep.subr.mxu0 0.0
    %3079 = vmatpush1.msra.mxu0 0.0
    %3080 = vmatprep.subr.mxu0 0.0
    %3081 = vmatpush1.msra.mxu0 0.0
    %3082 = vmatprep.subr.mxu0 0.0
    %3083 = vmatpush1.msra.mxu0 0.0
    %3084 = vmatprep.subr.mxu0 0.0
    %3085 = vmatpush1.msra.mxu0 0.0
    %3086 = vmatprep.subr.mxu0 0.0
    %3087 = vmatpush1.msra.mxu0 0.0
    %3088 = vmatprep.subr.mxu0 0.0
    %3089 = vmatpush1.msra.mxu0 0.0
    %3090 = vmatprep.subr.mxu0 0.0
    %3091 = vmatpush1.msra.mxu0 0.0
    %3092 = vmatprep.subr.mxu0 0.0
    %3093 = vmatpush1.msra.mxu0 0.0
    %3094 = vmatprep.subr.mxu0 0.0
    %3095 = vmatpush1.msra.mxu0 0.0
    %3096 = vmatprep.subr.mxu0 0.0
    %3097 = vmatpush1.msra.mxu0 0.0
    %3098 = vmatprep.subr.mxu0 0.0
    %3099 = vmatpush1.msra.mxu0 0.0
    %3100 = vmatprep.subr.mxu0 0.0
    %3101 = vmatpush1.msra.mxu0 0.0
    %3102 = vmatprep.subr.mxu0 0.0
    %3103 = vmatpush1.msra.mxu0 0.0
    %3104 = vmatprep.subr.mxu0 0.0
    %3105 = vmatpush1.msra.mxu0 0.0
    %3106 = vmatprep.subr.mxu0 0.0
    %3107 = vmatpush1.msra.mxu0 0.0
    %3108 = vmatprep.subr.mxu0 0.0
    %3109 = vmatpush1.msra.mxu0 0.0
    %3110 = vmatprep.subr.mxu0 0.0
    %3111 = vmatpush1.msra.mxu0 0.0
    %3112 = vmatprep.subr.mxu0 0.0
    %3113 = vmatpush1.msra.mxu0 0.0
    %3114 = vmatprep.subr.mxu0 0.0
    %3115 = vmatpush1.msra.mxu0 0.0
    %3116 = vmatprep.subr.mxu0 0.0
    %3117 = vmatpush1.msra.mxu0 0.0
    %3118 = vmatprep.subr.mxu0 0.0
    %3119 = vmatpush1.msra.mxu0 0.0
    %3120 = vmatprep.subr.mxu0 0.0
    %3121 = vmatpush1.msra.mxu0 0.0
    %3122 = vmatprep.subr.mxu0 0.0
    %3123 = vmatpush1.msra.mxu0 0.0
    %3124 = vmatprep.subr.mxu0 0.0
    %3125 = vmatpush1.msra.mxu0 0.0
    %3126 = vmatprep.subr.mxu0 0.0
    %3127 = vmatpush1.msra.mxu0 0.0
    %3128 = vmatprep.subr.mxu0 0.0
    %3129 = vmatpush1.msra.mxu0 0.0
    %3130 = vmatprep.subr.mxu0 0.0
    %3131 = vmatpush1.msra.mxu0 0.0
    %3132 = vmatprep.mubr.f32.mxu0 0.0
    %3133 = vmatmul.mubr.f32.gmra.mrb[0].mxu0 %v3066
    %v3134 = vpop.f32.mrb[0].mxu0
    %v3135 = vadd.f32 0.0, %v3134
    %v3136 = vpop.f32.mrb[0].mxu0
    %3137 = vdwg.mxu0
    %v3139 = vrot.slane %v3033, 2
    %v3141 = vadd.f32 %v219, %v3139
    %v3142 = vxor.u32 %v3141, 2147483648
    %v3143 = vmul.f32 %v3142, 1.442695
    %v3144 = vpow.pop %v3143
    %v3145 = vadd.f32 %v3144, 1.0
    %v3146 = vrcp.pop %v3145
    %v3147 = vmul.f32 1.0, %v3146
    %v3148 = vtanh.pop %v3141
    %v3150 = vrot.slane %v2953, 7
    %v3152 = vmul.f32 %v3147, %v3150
    %3154 = vrot.lane.b32.xlu0 %v3148, 64
    %v3155 = vpop.permute.xlu0 %3154
    %v3157 = vmul.f32 %v3147, %v3155
    %3159 = vrot.lane.b32.xlu0 %v3157, 32
    %v3160 = vpop.permute.xlu0 %3159
    %v3162 = vadd.f32 %v3152, %v3160
    %v3163 = vtanh.pop %v3162
    %3165 = vrot.lane.b32.xlu0 %v3163, 64
    %v3166 = vpop.permute.xlu0 %3165
    %v3168 = vmul.f32 %v3147, %v3166
    %v3170 = vrot.slane %v3168, 6
    %3171 = vrot.lane.b32.xlu0 %v3170, 32
    %v3172 = vpop.permute.xlu0 %3171
    %v3173 = vsel %vm250, %v3172, 0
    %3175 = vmatprep.subr.mxu0 %v27
    %3176 = vmatpush1.msra.mxu0 %v26
    %3177 = vmatprep.subr.mxu0 %v29
    %3178 = vmatpush1.msra.mxu0 %v28
    %3179 = vmatprep.subr.mxu0 %v31
    %3180 = vmatpush1.msra.mxu0 %v30
    %3181 = vmatprep.subr.mxu0 %v33
    %3182 = vmatpush1.msra.mxu0 %v32
    %3183 = vmatprep.subr.mxu0 0.0
    %3184 = vmatpush1.msra.mxu0 0.0
    %3185 = vmatprep.subr.mxu0 0.0
    %3186 = vmatpush1.msra.mxu0 0.0
    %3187 = vmatprep.subr.mxu0 0.0
    %3188 = vmatpush1.msra.mxu0 0.0
    %3189 = vmatprep.subr.mxu0 0.0
    %3190 = vmatpush1.msra.mxu0 0.0
    %3191 = vmatprep.subr.mxu0 0.0
    %3192 = vmatpush1.msra.mxu0 0.0
    %3193 = vmatprep.subr.mxu0 0.0
    %3194 = vmatpush1.msra.mxu0 0.0
    %3195 = vmatprep.subr.mxu0 0.0
    %3196 = vmatpush1.msra.mxu0 0.0
    %3197 = vmatprep.subr.mxu0 0.0
    %3198 = vmatpush1.msra.mxu0 0.0
    %3199 = vmatprep.subr.mxu0 0.0
    %3200 = vmatpush1.msra.mxu0 0.0
    %3201 = vmatprep.subr.mxu0 0.0
    %3202 = vmatpush1.msra.mxu0 0.0
    %3203 = vmatprep.subr.mxu0 0.0
    %3204 = vmatpush1.msra.mxu0 0.0
    %3205 = vmatprep.subr.mxu0 0.0
    %3206 = vmatpush1.msra.mxu0 0.0
    %3207 = vmatprep.subr.mxu0 0.0
    %3208 = vmatpush1.msra.mxu0 0.0
    %3209 = vmatprep.subr.mxu0 0.0
    %3210 = vmatpush1.msra.mxu0 0.0
    %3211 = vmatprep.subr.mxu0 0.0
    %3212 = vmatpush1.msra.mxu0 0.0
    %3213 = vmatprep.subr.mxu0 0.0
    %3214 = vmatpush1.msra.mxu0 0.0
    %3215 = vmatprep.subr.mxu0 0.0
    %3216 = vmatpush1.msra.mxu0 0.0
    %3217 = vmatprep.subr.mxu0 0.0
    %3218 = vmatpush1.msra.mxu0 0.0
    %3219 = vmatprep.subr.mxu0 0.0
    %3220 = vmatpush1.msra.mxu0 0.0
    %3221 = vmatprep.subr.mxu0 0.0
    %3222 = vmatpush1.msra.mxu0 0.0
    %3223 = vmatprep.subr.mxu0 0.0
    %3224 = vmatpush1.msra.mxu0 0.0
    %3225 = vmatprep.subr.mxu0 0.0
    %3226 = vmatpush1.msra.mxu0 0.0
    %3227 = vmatprep.subr.mxu0 0.0
    %3228 = vmatpush1.msra.mxu0 0.0
    %3229 = vmatprep.subr.mxu0 0.0
    %3230 = vmatpush1.msra.mxu0 0.0
    %3231 = vmatprep.subr.mxu0 0.0
    %3232 = vmatpush1.msra.mxu0 0.0
    %3233 = vmatprep.subr.mxu0 0.0
    %3234 = vmatpush1.msra.mxu0 0.0
    %3235 = vmatprep.subr.mxu0 0.0
    %3236 = vmatpush1.msra.mxu0 0.0
    %3237 = vmatprep.subr.mxu0 0.0
    %3238 = vmatpush1.msra.mxu0 0.0
    %3239 = vmatprep.mubr.f32.mxu0 0.0
    %3240 = vmatmul.mubr.f32.gmra.mrb[0].mxu0 %v3173
    %v3241 = vpop.f32.mrb[0].mxu0
    %v3242 = vadd.f32 0.0, %v3241
    %v3243 = vpop.f32.mrb[0].mxu0
    %v3244 = vadd.f32 0.0, %v3243
    %3245 = vdwg.mxu0
    %v3246 = vadd.f32 %v3244, %v3135
    %v3247 = vadd.f32 %v3246, %v38
    %v3248 = vxor.u32 %v3247, 2147483648
    %v3249 = vmul.f32 %v3248, 1.442695
    %v3250 = vpow.pop %v3249
    %v3251 = vadd.f32 %v3250, 1.0
    %v3252 = vrcp.pop %v3251
    %v3253 = vmul.f32 1.0, %v3252
    %v3254 = vtanh.pop %v3247
    %v3255 = vmul.f32 %v3253, %v3056
    %3257 = vrot.lane.b32.xlu0 %v3254, 64
    %v3258 = vpop.permute.xlu0 %3257
    %v3260 = vmul.f32 %v3253, %v3258
    %3262 = vrot.lane.b32.xlu0 %v3260, 32
    %v3263 = vpop.permute.xlu0 %3262
    %v3265 = vadd.f32 %v3255, %v3263
    %v3266 = vtanh.pop %v3265
    %3268 = vrot.lane.b32.xlu0 %v3266, 64
    %v3269 = vpop.permute.xlu0 %3268
    %v3271 = vmul.f32 %v3253, %v3269
    %3273 = vrot.lane.b32.xlu0 %v3271, 32
    %v3274 = vpop.permute.xlu0 %3273
    %v3275 = vsel %vm250, %v3274, 0
    %3277 = vmatprep.subr.mxu0 0.0
    %3278 = vmatpush1.msra.mxu0 %v34
    %3279 = vmatprep.subr.mxu0 0.0
    %3280 = vmatpush1.msra.mxu0 %v35
    %3281 = vmatprep.subr.mxu0 0.0
    %3282 = vmatpush1.msra.mxu0 %v36
    %3283 = vmatprep.subr.mxu0 0.0
    %3284 = vmatpush1.msra.mxu0 %v37
    %3285 = vmatprep.subr.mxu0 0.0
    %3286 = vmatpush1.msra.mxu0 0.0
    %3287 = vmatprep.subr.mxu0 0.0
    %3288 = vmatpush1.msra.mxu0 0.0
    %3289 = vmatprep.subr.mxu0 0.0
    %3290 = vmatpush1.msra.mxu0 0.0
    %3291 = vmatprep.subr.mxu0 0.0
    %3292 = vmatpush1.msra.mxu0 0.0
    %3293 = vmatprep.subr.mxu0 0.0
    %3294 = vmatpush1.msra.mxu0 0.0
    %3295 = vmatprep.subr.mxu0 0.0
    %3296 = vmatpush1.msra.mxu0 0.0
    %3297 = vmatprep.subr.mxu0 0.0
    %3298 = vmatpush1.msra.mxu0 0.0
    %3299 = vmatprep.subr.mxu0 0.0
    %3300 = vmatpush1.msra.mxu0 0.0
    %3301 = vmatprep.subr.mxu0 0.0
    %3302 = vmatpush1.msra.mxu0 0.0
    %3303 = vmatprep.subr.mxu0 0.0
    %3304 = vmatpush1.msra.mxu0 0.0
    %3305 = vmatprep.subr.mxu0 0.0
    %3306 = vmatpush1.msra.mxu0 0.0
    %3307 = vmatprep.subr.mxu0 0.0
    %3308 = vmatpush1.msra.mxu0 0.0
    %3309 = vmatprep.subr.mxu0 0.0
    %3310 = vmatpush1.msra.mxu0 0.0
    %3311 = vmatprep.subr.mxu0 0.0
    %3312 = vmatpush1.msra.mxu0 0.0
    %3313 = vmatprep.subr.mxu0 0.0
    %3314 = vmatpush1.msra.mxu0 0.0
    %3315 = vmatprep.subr.mxu0 0.0
    %3316 = vmatpush1.msra.mxu0 0.0
    %3317 = vmatprep.subr.mxu0 0.0
    %3318 = vmatpush1.msra.mxu0 0.0
    %3319 = vmatprep.subr.mxu0 0.0
    %3320 = vmatpush1.msra.mxu0 0.0
    %3321 = vmatprep.subr.mxu0 0.0
    %3322 = vmatpush1.msra.mxu0 0.0
    %3323 = vmatprep.subr.mxu0 0.0
    %3324 = vmatpush1.msra.mxu0 0.0
    %3325 = vmatprep.subr.mxu0 0.0
    %3326 = vmatpush1.msra.mxu0 0.0
    %3327 = vmatprep.subr.mxu0 0.0
    %3328 = vmatpush1.msra.mxu0 0.0
    %3329 = vmatprep.subr.mxu0 0.0
    %3330 = vmatpush1.msra.mxu0 0.0
    %3331 = vmatprep.subr.mxu0 0.0
    %3332 = vmatpush1.msra.mxu0 0.0
    %3333 = vmatprep.subr.mxu0 0.0
    %3334 = vmatpush1.msra.mxu0 0.0
    %3335 = vmatprep.subr.mxu0 0.0
    %3336 = vmatpush1.msra.mxu0 0.0
    %3337 = vmatprep.subr.mxu0 0.0
    %3338 = vmatpush1.msra.mxu0 0.0
    %3339 = vmatprep.subr.mxu0 0.0
    %3340 = vmatpush1.msra.mxu0 0.0
    %3341 = vmatprep.mubr.f32.mxu0 0.0
    %3342 = vmatmul.mubr.f32.gmra.mrb[0].mxu0 %v3275
    %v3343 = vpop.f32.mrb[0].mxu0
    %v3344 = vadd.f32 0.0, %v3343
    %v3345 = vpop.f32.mrb[0].mxu0
    %3346 = vdwg.mxu0
    %v3348 = vrot.slane %v3242, 1
    %v3350 = vadd.f32 %v219, %v3348
    %v3351 = vxor.u32 %v3350, 2147483648
    %v3352 = vmul.f32 %v3351, 1.442695
    %v3353 = vpow.pop %v3352
    %v3354 = vadd.f32 %v3353, 1.0
    %v3355 = vrcp.pop %v3354
    %v3356 = vmul.f32 1.0, %v3355
    %v3357 = vtanh.pop %v3350
    %v3359 = vrot.slane %v3162, 7
    %v3361 = vmul.f32 %v3356, %v3359
    %3363 = vrot.lane.b32.xlu0 %v3357, 64
    %v3364 = vpop.permute.xlu0 %3363
    %v3366 = vmul.f32 %v3356, %v3364
    %3368 = vrot.lane.b32.xlu0 %v3366, 32
    %v3369 = vpop.permute.xlu0 %3368
    %v3371 = vadd.f32 %v3361, %v3369
    %v3372 = vtanh.pop %v3371
    %3374 = vrot.lane.b32.xlu0 %v3372, 64
    %v3375 = vpop.permute.xlu0 %3374
    %v3377 = vmul.f32 %v3356, %v3375
    %v3379 = vrot.slane %v3377, 7
    %3380 = vrot.lane.b32.xlu0 %v3379, 32
    %v3381 = vpop.permute.xlu0 %3380
    %v3382 = vsel %vm250, %v3381, 0
    %3384 = vmatprep.subr.mxu0 %v27
    %3385 = vmatpush1.msra.mxu0 %v26
    %3386 = vmatprep.subr.mxu0 %v29
    %3387 = vmatpush1.msra.mxu0 %v28
    %3388 = vmatprep.subr.mxu0 %v31
    %3389 = vmatpush1.msra.mxu0 %v30
    %3390 = vmatprep.subr.mxu0 %v33
    %3391 = vmatpush1.msra.mxu0 %v32
    %3392 = vmatprep.subr.mxu0 0.0
    %3393 = vmatpush1.msra.mxu0 0.0
    %3394 = vmatprep.subr.mxu0 0.0
    %3395 = vmatpush1.msra.mxu0 0.0
    %3396 = vmatprep.subr.mxu0 0.0
    %3397 = vmatpush1.msra.mxu0 0.0
    %3398 = vmatprep.subr.mxu0 0.0
    %3399 = vmatpush1.msra.mxu0 0.0
    %3400 = vmatprep.subr.mxu0 0.0
    %3401 = vmatpush1.msra.mxu0 0.0
    %3402 = vmatprep.subr.mxu0 0.0
    %3403 = vmatpush1.msra.mxu0 0.0
    %3404 = vmatprep.subr.mxu0 0.0
    %3405 = vmatpush1.msra.mxu0 0.0
    %3406 = vmatprep.subr.mxu0 0.0
    %3407 = vmatpush1.msra.mxu0 0.0
    %3408 = vmatprep.subr.mxu0 0.0
    %3409 = vmatpush1.msra.mxu0 0.0
    %3410 = vmatprep.subr.mxu0 0.0
    %3411 = vmatpush1.msra.mxu0 0.0
    %3412 = vmatprep.subr.mxu0 0.0
    %3413 = vmatpush1.msra.mxu0 0.0
    %3414 = vmatprep.subr.mxu0 0.0
    %3415 = vmatpush1.msra.mxu0 0.0
    %3416 = vmatprep.subr.mxu0 0.0
    %3417 = vmatpush1.msra.mxu0 0.0
    %3418 = vmatprep.subr.mxu0 0.0
    %3419 = vmatpush1.msra.mxu0 0.0
    %3420 = vmatprep.subr.mxu0 0.0
    %3421 = vmatpush1.msra.mxu0 0.0
    %3422 = vmatprep.subr.mxu0 0.0
    %3423 = vmatpush1.msra.mxu0 0.0
    %3424 = vmatprep.subr.mxu0 0.0
    %3425 = vmatpush1.msra.mxu0 0.0
    %3426 = vmatprep.subr.mxu0 0.0
    %3427 = vmatpush1.msra.mxu0 0.0
    %3428 = vmatprep.subr.mxu0 0.0
    %3429 = vmatpush1.msra.mxu0 0.0
    %3430 = vmatprep.subr.mxu0 0.0
    %3431 = vmatpush1.msra.mxu0 0.0
    %3432 = vmatprep.subr.mxu0 0.0
    %3433 = vmatpush1.msra.mxu0 0.0
    %3434 = vmatprep.subr.mxu0 0.0
    %3435 = vmatpush1.msra.mxu0 0.0
    %3436 = vmatprep.subr.mxu0 0.0
    %3437 = vmatpush1.msra.mxu0 0.0
    %3438 = vmatprep.subr.mxu0 0.0
    %3439 = vmatpush1.msra.mxu0 0.0
    %3440 = vmatprep.subr.mxu0 0.0
    %3441 = vmatpush1.msra.mxu0 0.0
    %3442 = vmatprep.subr.mxu0 0.0
    %3443 = vmatpush1.msra.mxu0 0.0
    %3444 = vmatprep.subr.mxu0 0.0
    %3445 = vmatpush1.msra.mxu0 0.0
    %3446 = vmatprep.subr.mxu0 0.0
    %3447 = vmatpush1.msra.mxu0 0.0
    %3448 = vmatprep.mubr.f32.mxu0 0.0
    %3449 = vmatmul.mubr.f32.gmra.mrb[0].mxu0 %v3382
    %v3450 = vpop.f32.mrb[0].mxu0
    %v3451 = vpop.f32.mrb[0].mxu0
    %v3452 = vadd.f32 0.0, %v3451
    %3453 = vdwg.mxu0
    %v3454 = vadd.f32 %v3452, %v3344
    %v3455 = vadd.f32 %v3454, %v38
    %v3456 = vxor.u32 %v3455, 2147483648
    %v3457 = vmul.f32 %v3456, 1.442695
    %v3458 = vpow.pop %v3457
    %v3459 = vadd.f32 %v3458, 1.0
    %v3460 = vrcp.pop %v3459
    %v3461 = vmul.f32 1.0, %v3460
    %v3462 = vtanh.pop %v3455
    %v3463 = vmul.f32 %v3461, %v3265
    %3465 = vrot.lane.b32.xlu0 %v3462, 64
    %v3466 = vpop.permute.xlu0 %3465
    %v3468 = vmul.f32 %v3461, %v3466
    %3470 = vrot.lane.b32.xlu0 %v3468, 32
    %v3471 = vpop.permute.xlu0 %3470
    %v3473 = vadd.f32 %v3463, %v3471
    %v3474 = vtanh.pop %v3473
    %3476 = vrot.lane.b32.xlu0 %v3474, 64
    %v3477 = vpop.permute.xlu0 %3476
    %v3479 = vmul.f32 %v3461, %v3477
    %3481 = vrot.lane.b32.xlu0 %v39, 96
    %v3482 = vpop.permute.xlu0 %3481
    %v3484 = vmul.f32 %v3479, %v3482
    %3486 = vrot.lane.b32.xlu0 %v3484, 32
    %v3487 = vpop.permute.xlu0 %3486
    %vm3489 = vcmask 253952
    %v3490 = vsel %vm3489, %v3487, 0.0
    %3491 = vadd.xlane.f32.xlu0 %v3490
    %v3492 = vpop.xlane.xlu0 %3491
    %v3493 = vadd.f32 %v3492, %v39
    %3495 = vrot.lane.b32.xlu0 %v3493, 96
    %v3496 = vpop.permute.xlu0 %3495
    %vm3498 = vcmask 0
    %3499 = vst.msk [vmem:[#allocation2] sm:$0x1] %vm3498, %v3496
    // Predicated region
    $region10: #{cnn_lstm_forward.1} parent=1 // pred_check
      _
    $region11: #{cnn_lstm_forward.1} parent=1 // pred_check_branch
      %3501 = sbr.rel (0) target = $region13
    $region12: #{cnn_lstm_forward.1} parent=1 // pred_region
      %s3503 = ssub.s32 16, 16
      %3504 = vsyncadd [#allocation3], %s3503
      %s3506 = sshll.u32 [#allocation2], 4
      %s3507 = int_to_ptr.vmem [resolvable:$true] %s3506
      %3509 = dma.vmem_to_hbm [thread:$0]  %s3507, 16, %s2, [#allocation3]
    $region13: #{cnn_lstm_forward.1} parent=1 // pred_fallthru
      _
    // Predicated region
    $region14: #{cnn_lstm_forward.1} parent=1 // pred_check
      _
    $region15: #{cnn_lstm_forward.1} parent=1 // pred_check_branch
      %3511 = sbr.rel (0) target = $region17
    $region16: #{cnn_lstm_forward.1} parent=1 // pred_region
      %3512 = dma.done [#allocation3], 16
    $region17: #{cnn_lstm_forward.1} parent=1 // pred_fallthru
      _
    %3513 = vsyncpa [#allocation3], 1

</llo_original>
